<compile_context>
chip_gen: v5e
topology: v5e:2x2
jax: 0.10.0
libtpu: 0.0.40
codegen_flags: <defaults>
</compile_context>

<pallas_src>
import numpy as np
import jax
import jax.numpy as jnp
from jax.experimental import pallas as pl
from jax.experimental.pallas import tpu as pltpu

INPUTS_UNITS = 512    # fcs1_units
OUTPUTS_UNITS = 384   # fc2_units
TILE_B = 512          # batch tile: multiple of 256 (v6e/v7x MXU edge)


def _critic_kernel(x_ref,                       # [TILE_B, S+A]  bf16
                   w1_ref, b1_ref,              # [S+A, 512] bf16, [1, 512] f32
                   w2s_ref, w2a_ref, b2_ref,    # [512, 384] / [S+A, 384] bf16, [1, 384] f32
                   w3_ref, b3_ref,              # [1, 384] bf16, [1, 1] f32
                   out_ref):                    # [TILE_B, 1] f32
    x = x_ref[...]                                                  # bf16

    # fcs1 + ReLU (W1 zero-padded over the action rows -> x @ W1p == state @ W1)
    xs = jnp.dot(x, w1_ref[...], preferred_element_type=jnp.float32) + b1_ref[...]
    xs = jnp.maximum(xs, 0.0).astype(jnp.bfloat16)                  # bf16 for next MXU pass

    # fc2 on concat([xs, action]) == xs @ W2s + action @ W2a, then ReLU
    # (W2a zero-padded over the state rows -> x @ W2ap == action @ W2a)
    h = (jnp.dot(xs, w2s_ref[...], preferred_element_type=jnp.float32)
         + jnp.dot(x, w2a_ref[...], preferred_element_type=jnp.float32)
         + b2_ref[...])
    h = jnp.maximum(h, 0.0)                                         # f32

    # fc3 (output width 1): VPU multiply + lane reduction instead of N=1 matmul.
    w3_row = w3_ref[...].astype(jnp.float32)                        # (1, 384)
    q = jnp.sum(h * w3_row, axis=-1, keepdims=True) + b3_ref[...]
    out_ref[...] = q.astype(out_ref.dtype)


def critic_forward(state, action, params, tile_b=TILE_B):
    """Run the full Critic forward pass as a batch-tiled Pallas kernel.

    state:  [B, state_size]  float32
    action: [B, action_size] float32
    returns [B, 1] float32
    """
    B = state.shape[0]
    w1p, b1, w2s, w2ap, b2, w3_row, b3 = params
    din = w1p.shape[0]                      # state_size + action_size
    f1 = w1p.shape[1]                       # 512
    f2 = w2s.shape[1]                       # 384

    # Single merged bf16 input stream; pad batch up to a multiple of tile_b.
    x = jnp.concatenate([state, action], axis=1).astype(jnp.bfloat16)
    b_pad = ((B + tile_b - 1) // tile_b) * tile_b
    if b_pad != B:
        x = jnp.pad(x, ((0, b_pad - B), (0, 0)))
    grid = (b_pad // tile_b,)

    # Tiled input/output; weights & biases resident (constant block index).
    def const_spec(arr):
        return pl.BlockSpec(arr.shape, lambda i: (0, 0))

    in_specs = [pl.BlockSpec((tile_b, din), lambda i: (i, 0)),
                const_spec(w1p), const_spec(b1),
                const_spec(w2s), const_spec(w2ap), const_spec(b2),
                const_spec(w3_row), const_spec(b3)]
    out_specs = pl.BlockSpec((tile_b, 1), lambda i: (i, 0))

    flops = 2 * b_pad * (din * f1 + (f1 + din) * f2 + f2)
    bytes_accessed = (x.size * 2
                      + (w1p.size + w2s.size + w2ap.size + w3_row.size) * 2
                      + (b1.size + b2.size + b3.size) * 4
                      + b_pad * 4)

    out = pl.pallas_call(
        _critic_kernel,
        out_shape=jax.ShapeDtypeStruct((b_pad, 1), jnp.float32),
        grid=grid,
        in_specs=in_specs,
        out_specs=out_specs,
        compiler_params=pltpu.CompilerParams(
            dimension_semantics=("parallel",),        # shard batch across TCs (v7x)
            vmem_limit_bytes=48 * 1024 * 1024),       # fits v7x 64 MiB physical VMEM
        cost_estimate=pl.CostEstimate(flops=flops, transcendentals=0,
                                      bytes_accessed=bytes_accessed),
    )(x, w1p, b1, w2s, w2ap, b2, w3_row, b3)

    return out[:B]


def init_critic_params(key, state_size, action_size,
                       fcs1_units=INPUTS_UNITS, fc2_units=OUTPUTS_UNITS):
    """Deterministic parameter init mirroring Critic.reset_parameters().

    Note: the PyTorch hidden_init() uses weight.size()[0] (== out_features)
    as `fan_in`, so the limits are 1/sqrt(out_features) — reproduced here.
    Biases keep the default nn.Linear init range (±1/sqrt(in_features)).

    Weights are stored transposed ([in, out]) in bf16; the first-layer and
    action-branch weights are zero-padded so the kernel can feed a single
    concatenated [state|action] input to both matmuls with no slicing.
    """
    ks = jax.random.split(key, 6)
    lim1 = 1.0 / np.sqrt(fcs1_units)
    lim2 = 1.0 / np.sqrt(fc2_units)
    lim3 = 0.003
    din = state_size + action_size

    w1 = jax.random.uniform(ks[0], (state_size, fcs1_units),
                            jnp.float32, -lim1, lim1)
    # zero rows for the action part of the merged input
    w1p = jnp.concatenate(
        [w1, jnp.zeros((action_size, fcs1_units), jnp.float32)], axis=0
    ).astype(jnp.bfloat16)
    b1 = jax.random.uniform(ks[1], (1, fcs1_units), jnp.float32,
                            -1.0 / np.sqrt(state_size), 1.0 / np.sqrt(state_size))

    w2 = jax.random.uniform(ks[2], (fcs1_units + action_size, fc2_units),
                            jnp.float32, -lim2, lim2)
    w2s = w2[:fcs1_units, :].astype(jnp.bfloat16)          # state-branch part of fc2
    # zero rows for the state part of the merged input
    w2ap = jnp.concatenate(
        [jnp.zeros((state_size, fc2_units), jnp.float32), w2[fcs1_units:, :]], axis=0
    ).astype(jnp.bfloat16)
    b2 = jax.random.uniform(ks[3], (1, fc2_units), jnp.float32,
                            -1.0 / np.sqrt(fcs1_units + action_size),
                            1.0 / np.sqrt(fcs1_units + action_size))

    w3_row = jax.random.uniform(ks[4], (1, fc2_units), jnp.float32,
                                -lim3, lim3).astype(jnp.bfloat16)
    b3 = jax.random.uniform(ks[5], (1, 1), jnp.float32,
                            -1.0 / np.sqrt(fc2_units), 1.0 / np.sqrt(fc2_units))

    return (w1p, b1, w2s, w2ap, b2, w3_row, b3)


def critic_reference(state, action, params):
    """Pure-JAX (fp32) reference using the same bf16-stored weights."""
    w1p, b1, w2s, w2ap, b2, w3_row, b3 = params
    S = state.shape[1]
    x = jnp.concatenate([state, action], axis=1).astype(jnp.bfloat16).astype(jnp.float32)
    w1 = w1p.astype(jnp.float32)[:S, :]
    w2a = w2ap.astype(jnp.float32)[S:, :]
    xs = jnp.maximum(x[:, :S] @ w1 + b1, 0.0)
    h = jnp.maximum(xs @ w2s.astype(jnp.float32)
                    + x[:, S:] @ w2a + b2, 0.0)
    return h @ w3_row.astype(jnp.float32).T + b3


if __name__ == "__main__":
    batch = 8
    state_size = 16
    action_size = 8

    key = jax.random.PRNGKey(0)
    k_state, k_action, k_params = jax.random.split(key, 3)

    state = jax.random.normal(k_state, (batch, state_size), jnp.float32)
    action = jax.random.normal(k_action, (batch, action_size), jnp.float32)
    params = init_critic_params(k_params, state_size, action_size)

    q = critic_forward(state, action, params)
    jax.block_until_ready(q)

    q_ref = critic_reference(state, action, params)
    # bf16 activations inside the kernel -> loosened tolerance vs fp32 reference.
    np.testing.assert_allclose(np.asarray(q), np.asarray(q_ref),
                               rtol=5e-2, atol=1e-2)
    assert q.shape == (batch, 1)

    print("KERNEL_OK")
</pallas_src>

<mosaic_0001>
module attributes {stable_mosaic.version = 11 : i64} {
  func.func @_critic_kernel(%arg0: i32, %arg1: memref<512x24xbf16, #tpu.memory_space<vmem>>, %arg2: memref<24x512xbf16, #tpu.memory_space<vmem>>, %arg3: memref<1x512xf32, #tpu.memory_space<vmem>>, %arg4: memref<512x384xbf16, #tpu.memory_space<vmem>>, %arg5: memref<24x384xbf16, #tpu.memory_space<vmem>>, %arg6: memref<1x384xf32, #tpu.memory_space<vmem>>, %arg7: memref<1x384xbf16, #tpu.memory_space<vmem>>, %arg8: memref<1x1xf32, #tpu.memory_space<vmem>>, %arg9: memref<512x1xf32, #tpu.memory_space<vmem>>) attributes {dimension_semantics = [#tpu.dimension_semantics<parallel>], iteration_bounds = array<i64: 1>, scalar_prefetch = 0 : i64, scratch_operands = 0 : i64, tpu.core_type = #tpu.core_type<tc>, window_params = [{transform_indices = @transform_0, window_bounds = array<i64: 512, 24>}, {pipeline_mode = #tpu.pipeline_mode<synchronous>, transform_indices = @transform_1, window_bounds = array<i64: 24, 512>}, {pipeline_mode = #tpu.pipeline_mode<synchronous>, transform_indices = @transform_2, window_bounds = array<i64: 1, 512>}, {pipeline_mode = #tpu.pipeline_mode<synchronous>, transform_indices = @transform_3, window_bounds = array<i64: 512, 384>}, {pipeline_mode = #tpu.pipeline_mode<synchronous>, transform_indices = @transform_4, window_bounds = array<i64: 24, 384>}, {pipeline_mode = #tpu.pipeline_mode<synchronous>, transform_indices = @transform_5, window_bounds = array<i64: 1, 384>}, {pipeline_mode = #tpu.pipeline_mode<synchronous>, transform_indices = @transform_6, window_bounds = array<i64: 1, 384>}, {pipeline_mode = #tpu.pipeline_mode<synchronous>, transform_indices = @transform_7, window_bounds = array<i64: 1, 1>}, {transform_indices = @transform_8, window_bounds = array<i64: 512, 1>}]} {
    %c0 = arith.constant 0 : index
    %c0_0 = arith.constant 0 : index
    %0 = vector.load %arg1[%c0, %c0_0] : memref<512x24xbf16, #tpu.memory_space<vmem>>, vector<512x24xbf16>
    %c0_1 = arith.constant 0 : index
    %c0_2 = arith.constant 0 : index
    %1 = vector.load %arg2[%c0_1, %c0_2] : memref<24x512xbf16, #tpu.memory_space<vmem>>, vector<24x512xbf16>
    %cst = arith.constant dense<0.000000e+00> : vector<512x512xf32>
    %2 = tpu.matmul %0, %1, %cst {dimension_numbers = #tpu.dot_dimension_numbers<[1], [0], [0], [1], [0, 0, 1, 1], [], []>} : vector<512x24xbf16>, vector<24x512xbf16>, vector<512x512xf32> -> vector<512x512xf32>
    %c0_3 = arith.constant 0 : index
    %c0_4 = arith.constant 0 : index
    %3 = vector.load %arg3[%c0_3, %c0_4] : memref<1x512xf32, #tpu.memory_space<vmem>>, vector<1x512xf32>
    %4 = vector.broadcast %3 : vector<1x512xf32> to vector<512x512xf32>
    %5 = arith.addf %2, %4 : vector<512x512xf32>
    %cst_5 = arith.constant 0.000000e+00 : f32
    %6 = vector.broadcast %cst_5 : f32 to vector<512x512xf32>
    %7 = arith.maximumf %5, %6 : vector<512x512xf32>
    %8 = arith.truncf %7 : vector<512x512xf32> to vector<512x512xbf16>
    %c0_6 = arith.constant 0 : index
    %c0_7 = arith.constant 0 : index
    %9 = vector.load %arg4[%c0_6, %c0_7] : memref<512x384xbf16, #tpu.memory_space<vmem>>, vector<512x384xbf16>
    %cst_8 = arith.constant dense<0.000000e+00> : vector<512x384xf32>
    %10 = tpu.matmul %8, %9, %cst_8 {dimension_numbers = #tpu.dot_dimension_numbers<[1], [0], [0], [1], [0, 0, 1, 1], [], []>} : vector<512x512xbf16>, vector<512x384xbf16>, vector<512x384xf32> -> vector<512x384xf32>
    %c0_9 = arith.constant 0 : index
    %c0_10 = arith.constant 0 : index
    %11 = vector.load %arg5[%c0_9, %c0_10] : memref<24x384xbf16, #tpu.memory_space<vmem>>, vector<24x384xbf16>
    %cst_11 = arith.constant dense<0.000000e+00> : vector<512x384xf32>
    %12 = tpu.matmul %0, %11, %cst_11 {dimension_numbers = #tpu.dot_dimension_numbers<[1], [0], [0], [1], [0, 0, 1, 1], [], []>} : vector<512x24xbf16>, vector<24x384xbf16>, vector<512x384xf32> -> vector<512x384xf32>
    %13 = arith.addf %10, %12 : vector<512x384xf32>
    %c0_12 = arith.constant 0 : index
    %c0_13 = arith.constant 0 : index
    %14 = vector.load %arg6[%c0_12, %c0_13] : memref<1x384xf32, #tpu.memory_space<vmem>>, vector<1x384xf32>
    %15 = vector.broadcast %14 : vector<1x384xf32> to vector<512x384xf32>
    %16 = arith.addf %13, %15 : vector<512x384xf32>
    %cst_14 = arith.constant 0.000000e+00 : f32
    %17 = vector.broadcast %cst_14 : f32 to vector<512x384xf32>
    %18 = arith.maximumf %16, %17 : vector<512x384xf32>
    %c0_15 = arith.constant 0 : index
    %c0_16 = arith.constant 0 : index
    %19 = vector.load %arg7[%c0_15, %c0_16] : memref<1x384xbf16, #tpu.memory_space<vmem>>, vector<1x384xbf16>
    %20 = arith.extf %19 : vector<1x384xbf16> to vector<1x384xf32>
    %21 = vector.broadcast %20 : vector<1x384xf32> to vector<512x384xf32>
    %22 = arith.mulf %18, %21 : vector<512x384xf32>
    %cst_17 = arith.constant dense<0.000000e+00> : vector<512xf32>
    %23 = vector.multi_reduction <add>, %22, %cst_17 [1] : vector<512x384xf32> to vector<512xf32>
    %24 = vector.shape_cast %23 : vector<512xf32> to vector<512x1xf32>
    %c0_18 = arith.constant 0 : index
    %c0_19 = arith.constant 0 : index
    %25 = vector.load %arg8[%c0_18, %c0_19] : memref<1x1xf32, #tpu.memory_space<vmem>>, vector<1x1xf32>
    %26 = vector.broadcast %25 : vector<1x1xf32> to vector<512x1xf32>
    %27 = arith.addf %24, %26 : vector<512x1xf32>
    %c0_20 = arith.constant 0 : index
    %c0_21 = arith.constant 0 : index
    %28 = vector.load %arg9[%c0_20, %c0_21] : memref<512x1xf32, #tpu.memory_space<vmem>>, vector<512x1xf32>
    tpu.vector_store %arg9[%c0_20, %c0_21], %27 {strides = array<i32>} : memref<512x1xf32, #tpu.memory_space<vmem>>, vector<512x1xf32>,
    return
  }
  func.func @transform_0(%arg0: i32) -> (i32, i32) {
    %c0_i32 = arith.constant 0 : i32
    %c0_i32_0 = arith.constant 0 : i32
    return %arg0, %c0_i32 : i32, i32
  }
  func.func @transform_1(%arg0: i32) -> (i32, i32) {
    %c0_i32 = arith.constant 0 : i32
    %c0_i32_0 = arith.constant 0 : i32
    %c0_i32_1 = arith.constant 0 : i32
    return %c0_i32, %c0_i32_0 : i32, i32
  }
  func.func @transform_2(%arg0: i32) -> (i32, i32) {
    %c0_i32 = arith.constant 0 : i32
    %c0_i32_0 = arith.constant 0 : i32
    %c0_i32_1 = arith.constant 0 : i32
    return %c0_i32, %c0_i32_0 : i32, i32
  }
  func.func @transform_3(%arg0: i32) -> (i32, i32) {
    %c0_i32 = arith.constant 0 : i32
    %c0_i32_0 = arith.constant 0 : i32
    %c0_i32_1 = arith.constant 0 : i32
    return %c0_i32, %c0_i32_0 : i32, i32
  }
  func.func @transform_4(%arg0: i32) -> (i32, i32) {
    %c0_i32 = arith.constant 0 : i32
    %c0_i32_0 = arith.constant 0 : i32
    %c0_i32_1 = arith.constant 0 : i32
    return %c0_i32, %c0_i32_0 : i32, i32
  }
  func.func @transform_5(%arg0: i32) -> (i32, i32) {
    %c0_i32 = arith.constant 0 : i32
    %c0_i32_0 = arith.constant 0 : i32
    %c0_i32_1 = arith.constant 0 : i32
    return %c0_i32, %c0_i32_0 : i32, i32
  }
  func.func @transform_6(%arg0: i32) -> (i32, i32) {
    %c0_i32 = arith.constant 0 : i32
    %c0_i32_0 = arith.constant 0 : i32
    %c0_i32_1 = arith.constant 0 : i32
    return %c0_i32, %c0_i32_0 : i32, i32
  }
  func.func @transform_7(%arg0: i32) -> (i32, i32) {
    %c0_i32 = arith.constant 0 : i32
    %c0_i32_0 = arith.constant 0 : i32
    %c0_i32_1 = arith.constant 0 : i32
    return %c0_i32, %c0_i32_0 : i32, i32
  }
  func.func @transform_8(%arg0: i32) -> (i32, i32) {
    %c0_i32 = arith.constant 0 : i32
    %c0_i32_0 = arith.constant 0 : i32
    return %arg0, %c0_i32 : i32, i32
  }
}

</mosaic_0001>

<llo_original>
// kernel: tpu_custom_call.1
$region0: #{tpu_custom_call.1}
  #allocation0 [shape = 'u32[]', space=smem, size = 0x4, offset = 0x4, fixed_abs, tag = 'smem constant byte address 0x4 - core index']
  #allocation1 [shape = 'u32[72,128]{1,0:T(1,128)}', space=vmem, size = 0x9000, scoped, tag = 'internal scratch']
  #allocation2 [shape = 'f32[1,1]{1,0:T(1,128)S(1)}', space=vmem, size = 0x200, scoped, tag = 'scoped memory for tpu_custom_call.1']
  %s0 = inlined_call_operand.vmem [shape: bf16[512,24], index: 0, kind: input, shape index: {}]
  %s1 = inlined_call_operand.vmem [shape: bf16[24,512], index: 1, kind: input, shape index: {}]
  %s2 = inlined_call_operand.vmem [shape: f32[1,512], index: 2, kind: input, shape index: {}]
  %s3 = inlined_call_operand.hbm [shape: bf16[512,384], index: 3, kind: input, shape index: {}]
  %s4 = inlined_call_operand.vmem [shape: bf16[24,384], index: 4, kind: input, shape index: {}]
  %s5 = inlined_call_operand.vmem [shape: f32[1,384], index: 5, kind: input, shape index: {}]
  %s6 = inlined_call_operand.vmem [shape: bf16[1,384], index: 6, kind: input, shape index: {}]
  %s7 = inlined_call_operand.<no memory space> [shape: f32[1,1], index: 7, kind: input, shape index: {}]
  %s8 = inlined_call_operand.vmem [shape: f32[512,1], index: 8, kind: output, shape index: {}]
  %s9 = sld [smem:[#allocation0]]
  $region46: #{tpu_custom_call.1} parent=0
    _
  %s11 = ssub.s32 1, %s9
  %s12 = scalar_select 0, %s11, %s9
  %v13 = vstv %s7
  %14 = vst [vmem:[#allocation2] sm:$0x1] %v13
  $region1: #{tpu_custom_call.1} parent=0
    #allocation3 [shape = 'u8[393216]{0}', space=vmem, size = 0x60000, scoped, tag = 'input window, operand 3, single buffered']
    #allocation4 [shape = 's32[1]{0}', space=sflag, size = 0x4, scoped, tag = 'scoped memory for tpu_custom_call.1']
    %15 = vsyncpa [#allocation4], 0
    // Predicated region
    $region2: #{tpu_custom_call.1} parent=1 // pred_check
      _
    $region3: #{tpu_custom_call.1} parent=1 // pred_check_branch
      %17 = sbr.rel (0) target = $region5
    $region4: #{tpu_custom_call.1} parent=1 // pred_region
      _
    $region5: #{tpu_custom_call.1} parent=1 // pred_fallthru
      _
    // Predicated region
    $region6: #{tpu_custom_call.1} parent=1 // pred_check
      _
    $region7: #{tpu_custom_call.1} parent=1 // pred_check_branch
      %19 = sbr.rel (0) target = $region9
    $region8: #{tpu_custom_call.1} parent=1 // pred_region
      _
    $region9: #{tpu_custom_call.1} parent=1 // pred_fallthru
      _
    // Predicated region
    $region10: #{tpu_custom_call.1} parent=1 // pred_check
      _
    $region11: #{tpu_custom_call.1} parent=1 // pred_check_branch
      %21 = sbr.rel (0) target = $region13
    $region12: #{tpu_custom_call.1} parent=1 // pred_region
      _
    $region13: #{tpu_custom_call.1} parent=1 // pred_fallthru
      _
    // Predicated region
    $region14: #{tpu_custom_call.1} parent=1 // pred_check
      _
    $region15: #{tpu_custom_call.1} parent=1 // pred_check_branch
      %23 = sbr.rel (0) target = $region17
    $region16: #{tpu_custom_call.1} parent=1 // pred_region
      %25 = vsyncadd [#allocation4], 0
      %s26 = sshll.u32 %s3, 4
      %s27 = int_to_ptr.hbm [resolvable:$true] %s26
      %s28 = sshll.u32 [#allocation3], 4
      %s29 = int_to_ptr.vmem [resolvable:$true] %s28
      %34 = dma.hbm_to_vmem [thread:$0]  %s27, 12288, %s29, [#allocation4], 192, 192, 12
    $region17: #{tpu_custom_call.1} parent=1 // pred_fallthru
      _
    // Predicated region
    $region18: #{tpu_custom_call.1} parent=1 // pred_check
      _
    $region19: #{tpu_custom_call.1} parent=1 // pred_check_branch
      %36 = sbr.rel (0) target = $region21
    $region20: #{tpu_custom_call.1} parent=1 // pred_region
      _
    $region21: #{tpu_custom_call.1} parent=1 // pred_fallthru
      _
    // Predicated region
    $region22: #{tpu_custom_call.1} parent=1 // pred_check
      _
    $region23: #{tpu_custom_call.1} parent=1 // pred_check_branch
      %38 = sbr.rel (0) target = $region25
    $region24: #{tpu_custom_call.1} parent=1 // pred_region
      _
    $region25: #{tpu_custom_call.1} parent=1 // pred_fallthru
      _
    // Predicated region
    $region26: #{tpu_custom_call.1} parent=1 // pred_check
      _
    $region27: #{tpu_custom_call.1} parent=1 // pred_check_branch
      %40 = sbr.rel (0) target = $region29
    $region28: #{tpu_custom_call.1} parent=1 // pred_region
      _
    $region29: #{tpu_custom_call.1} parent=1 // pred_fallthru
      _
    // Predicated region
    $region30: #{tpu_custom_call.1} parent=1 // pred_check
      _
    $region31: #{tpu_custom_call.1} parent=1 // pred_check_branch
      %42 = sbr.rel (0) target = $region33
    $region32: #{tpu_custom_call.1} parent=1 // pred_region
      _
    $region33: #{tpu_custom_call.1} parent=1 // pred_fallthru
      _
    // Predicated region
    $region34: #{tpu_custom_call.1} parent=1 // pred_check
      _
    $region35: #{tpu_custom_call.1} parent=1 // pred_check_branch
      %44 = sbr.rel (0) target = $region37
    $region36: #{tpu_custom_call.1} parent=1 // pred_region
      %46 = dma.done [#allocation4], 12288
    $region37: #{tpu_custom_call.1} parent=1 // pred_fallthru
      _
    %v48 = vld [vmem:[%s0] sm:$0xf]
    %v49 = vld [vmem:[%s0 + $0x4] sm:$0xf]
    %v50 = vld [vmem:[%s0 + $0x8] sm:$0xf]
    %v51 = vld [vmem:[%s0 + $0xc] sm:$0xf]
    %v52 = vld [vmem:[%s0 + $0x10] sm:$0xf]
    %v53 = vld [vmem:[%s0 + $0x14] sm:$0xf]
    %v54 = vld [vmem:[%s0 + $0x18] sm:$0xf]
    %v55 = vld [vmem:[%s0 + $0x1c] sm:$0xf]
    %v56 = vld [vmem:[%s0 + $0x20] sm:$0xf]
    %v57 = vld [vmem:[%s0 + $0x24] sm:$0xf]
    %v58 = vld [vmem:[%s0 + $0x28] sm:$0xf]
    %v59 = vld [vmem:[%s0 + $0x2c] sm:$0xf]
    %v60 = vld [vmem:[%s0 + $0x30] sm:$0xf]
    %v61 = vld [vmem:[%s0 + $0x34] sm:$0xf]
    %v62 = vld [vmem:[%s0 + $0x38] sm:$0xf]
    %v63 = vld [vmem:[%s0 + $0x3c] sm:$0xf]
    %v64 = vld [vmem:[%s0 + $0x40] sm:$0xf]
    %v65 = vld [vmem:[%s0 + $0x44] sm:$0xf]
    %v66 = vld [vmem:[%s0 + $0x48] sm:$0xf]
    %v67 = vld [vmem:[%s0 + $0x4c] sm:$0xf]
    %v68 = vld [vmem:[%s0 + $0x50] sm:$0xf]
    %v69 = vld [vmem:[%s0 + $0x54] sm:$0xf]
    %v70 = vld [vmem:[%s0 + $0x58] sm:$0xf]
    %v71 = vld [vmem:[%s0 + $0x5c] sm:$0xf]
    %v72 = vld [vmem:[%s0 + $0x60] sm:$0xf]
    %v73 = vld [vmem:[%s0 + $0x64] sm:$0xf]
    %v74 = vld [vmem:[%s0 + $0x68] sm:$0xf]
    %v75 = vld [vmem:[%s0 + $0x6c] sm:$0xf]
    %v76 = vld [vmem:[%s0 + $0x70] sm:$0xf]
    %v77 = vld [vmem:[%s0 + $0x74] sm:$0xf]
    %v78 = vld [vmem:[%s0 + $0x78] sm:$0xf]
    %v79 = vld [vmem:[%s0 + $0x7c] sm:$0xf]
    %v80 = vld [vmem:[%s0 + $0x80] sm:$0xf]
    %v81 = vld [vmem:[%s0 + $0x84] sm:$0xf]
    %v82 = vld [vmem:[%s0 + $0x88] sm:$0xf]
    %v83 = vld [vmem:[%s0 + $0x8c] sm:$0xf]
    %v84 = vld [vmem:[%s0 + $0x90] sm:$0xf]
    %v85 = vld [vmem:[%s0 + $0x94] sm:$0xf]
    %v86 = vld [vmem:[%s0 + $0x98] sm:$0xf]
    %v87 = vld [vmem:[%s0 + $0x9c] sm:$0xf]
    %v88 = vld [vmem:[%s0 + $0xa0] sm:$0xf]
    %v89 = vld [vmem:[%s0 + $0xa4] sm:$0xf]
    %v90 = vld [vmem:[%s0 + $0xa8] sm:$0xf]
    %v91 = vld [vmem:[%s0 + $0xac] sm:$0xf]
    %v92 = vld [vmem:[%s0 + $0xb0] sm:$0xf]
    %v93 = vld [vmem:[%s0 + $0xb4] sm:$0xf]
    %v94 = vld [vmem:[%s0 + $0xb8] sm:$0xf]
    %v95 = vld [vmem:[%s0 + $0xbc] sm:$0xf]
    %v96 = vld [vmem:[%s0 + $0xc0] sm:$0xf]
    %v97 = vld [vmem:[%s0 + $0xc4] sm:$0xf]
    %v98 = vld [vmem:[%s0 + $0xc8] sm:$0xf]
    %v99 = vld [vmem:[%s0 + $0xcc] sm:$0xf]
    %v100 = vld [vmem:[%s0 + $0xd0] sm:$0xf]
    %v101 = vld [vmem:[%s0 + $0xd4] sm:$0xf]
    %v102 = vld [vmem:[%s0 + $0xd8] sm:$0xf]
    %v103 = vld [vmem:[%s0 + $0xdc] sm:$0xf]
    %v104 = vld [vmem:[%s0 + $0xe0] sm:$0xf]
    %v105 = vld [vmem:[%s0 + $0xe4] sm:$0xf]
    %v106 = vld [vmem:[%s0 + $0xe8] sm:$0xf]
    %v107 = vld [vmem:[%s0 + $0xec] sm:$0xf]
    %v108 = vld [vmem:[%s0 + $0xf0] sm:$0xf]
    %v109 = vld [vmem:[%s0 + $0xf4] sm:$0xf]
    %v110 = vld [vmem:[%s0 + $0xf8] sm:$0xf]
    %v111 = vld [vmem:[%s0 + $0xfc] sm:$0xf]
    %v112 = vld [vmem:[%s1] sm:$0xff]
    %v113 = vld [vmem:[%s1 + $0x8] sm:$0xff]
    %v114 = vld [vmem:[%s1 + $0x10] sm:$0xff]
    %v115 = vld [vmem:[%s1 + $0x18] sm:$0xff]
    %v116 = vld [vmem:[%s1 + $0x20] sm:$0xff]
    %v117 = vld [vmem:[%s1 + $0x28] sm:$0xff]
    %v118 = vld [vmem:[%s2] sm:$0xf]
    %v120 = vperm.slane %v118, 0
    %v121 = vperm.slane %v118, 1
    %v122 = vperm.slane %v118, 2
    %v123 = vperm.slane %v118, 3
    %v192 = vunpack.c.l.b16 %v48
    %v193 = vunpack.c.l.b16 %v49
    %v194 = vunpack.c.l.b16 %v50
    %v195 = vunpack.c.l.b16 %v51
    %v196 = vunpack.c.l.b16 %v52
    %v197 = vunpack.c.l.b16 %v53
    %v198 = vunpack.c.l.b16 %v54
    %v199 = vunpack.c.l.b16 %v55
    %v200 = vunpack.c.l.b16 %v56
    %v201 = vunpack.c.l.b16 %v57
    %v202 = vunpack.c.l.b16 %v58
    %v203 = vunpack.c.l.b16 %v59
    %v204 = vunpack.c.l.b16 %v60
    %v205 = vunpack.c.l.b16 %v61
    %v206 = vunpack.c.l.b16 %v62
    %v207 = vunpack.c.l.b16 %v63
    %v208 = vunpack.c.l.b16 %v64
    %v209 = vunpack.c.l.b16 %v65
    %v210 = vunpack.c.l.b16 %v66
    %v211 = vunpack.c.l.b16 %v67
    %v212 = vunpack.c.l.b16 %v68
    %v213 = vunpack.c.l.b16 %v69
    %v214 = vunpack.c.l.b16 %v70
    %v215 = vunpack.c.l.b16 %v71
    %v216 = vunpack.c.l.b16 %v72
    %v217 = vunpack.c.l.b16 %v73
    %v218 = vunpack.c.l.b16 %v74
    %v219 = vunpack.c.l.b16 %v75
    %v220 = vunpack.c.l.b16 %v76
    %v221 = vunpack.c.l.b16 %v77
    %v222 = vunpack.c.l.b16 %v78
    %v223 = vunpack.c.l.b16 %v79
    %v224 = vunpack.c.l.b16 %v80
    %v225 = vunpack.c.l.b16 %v81
    %v226 = vunpack.c.l.b16 %v82
    %v227 = vunpack.c.l.b16 %v83
    %v228 = vunpack.c.l.b16 %v84
    %v229 = vunpack.c.l.b16 %v85
    %v230 = vunpack.c.l.b16 %v86
    %v231 = vunpack.c.l.b16 %v87
    %v232 = vunpack.c.l.b16 %v88
    %v233 = vunpack.c.l.b16 %v89
    %v234 = vunpack.c.l.b16 %v90
    %v235 = vunpack.c.l.b16 %v91
    %v236 = vunpack.c.l.b16 %v92
    %v237 = vunpack.c.l.b16 %v93
    %v238 = vunpack.c.l.b16 %v94
    %v239 = vunpack.c.l.b16 %v95
    %v240 = vunpack.c.l.b16 %v96
    %v241 = vunpack.c.l.b16 %v97
    %v242 = vunpack.c.l.b16 %v98
    %v243 = vunpack.c.l.b16 %v99
    %v244 = vunpack.c.l.b16 %v100
    %v245 = vunpack.c.l.b16 %v101
    %v246 = vunpack.c.l.b16 %v102
    %v247 = vunpack.c.l.b16 %v103
    %v248 = vunpack.c.l.b16 %v104
    %v249 = vunpack.c.l.b16 %v105
    %v250 = vunpack.c.l.b16 %v106
    %v251 = vunpack.c.l.b16 %v107
    %v252 = vunpack.c.l.b16 %v108
    %v253 = vunpack.c.l.b16 %v109
    %v254 = vunpack.c.l.b16 %v110
    %v255 = vunpack.c.l.b16 %v111
    %v256 = vpack.c.b16 %v193, %v192
    %v257 = vpack.c.b16 %v195, %v194
    %v258 = vpack.c.b16 %v197, %v196
    %v259 = vpack.c.b16 %v199, %v198
    %v260 = vpack.c.b16 %v201, %v200
    %v261 = vpack.c.b16 %v203, %v202
    %v262 = vpack.c.b16 %v205, %v204
    %v263 = vpack.c.b16 %v207, %v206
    %v264 = vpack.c.b16 %v209, %v208
    %v265 = vpack.c.b16 %v211, %v210
    %v266 = vpack.c.b16 %v213, %v212
    %v267 = vpack.c.b16 %v215, %v214
    %v268 = vpack.c.b16 %v217, %v216
    %v269 = vpack.c.b16 %v219, %v218
    %v270 = vpack.c.b16 %v221, %v220
    %v271 = vpack.c.b16 %v223, %v222
    %v272 = vpack.c.b16 %v225, %v224
    %v273 = vpack.c.b16 %v227, %v226
    %v274 = vpack.c.b16 %v229, %v228
    %v275 = vpack.c.b16 %v231, %v230
    %v276 = vpack.c.b16 %v233, %v232
    %v277 = vpack.c.b16 %v235, %v234
    %v278 = vpack.c.b16 %v237, %v236
    %v279 = vpack.c.b16 %v239, %v238
    %v280 = vpack.c.b16 %v241, %v240
    %v281 = vpack.c.b16 %v243, %v242
    %v282 = vpack.c.b16 %v245, %v244
    %v283 = vpack.c.b16 %v247, %v246
    %v284 = vpack.c.b16 %v249, %v248
    %v285 = vpack.c.b16 %v251, %v250
    %v286 = vpack.c.b16 %v253, %v252
    %v287 = vpack.c.b16 %v255, %v254
    %v294 = vunpack.c.l.b16 %v112
    %v295 = vunpack.c.h.b16 %v112
    %v296 = vunpack.c.l.b16 %v113
    %v297 = vunpack.c.h.b16 %v113
    %v298 = vunpack.c.l.b16 %v114
    %v299 = vunpack.c.h.b16 %v114
    %v300 = vunpack.c.l.b16 %v115
    %v301 = vunpack.c.h.b16 %v115
    %v302 = vunpack.c.l.b16 %v116
    %v303 = vunpack.c.h.b16 %v116
    %v304 = vunpack.c.l.b16 %v117
    %v305 = vunpack.c.h.b16 %v117
    %v306 = vpack.c.b16 %v298, %v294
    %v307 = vpack.c.b16 %v299, %v295
    %v308 = vpack.c.b16 %v300, %v296
    %v309 = vpack.c.b16 %v301, %v297
    %v310 = vpack.c.b16 %v302, %v302
    %v311 = vpack.c.b16 %v303, %v303
    %v312 = vpack.c.b16 %v304, %v304
    %v313 = vpack.c.b16 %v305, %v305
    %vm318 = vcmask 195584
    %v320 = vsel %vm318, %v256, 0
    %v323 = vsel %vm318, %v257, 0
    %v326 = vsel %vm318, %v258, 0
    %v329 = vsel %vm318, %v259, 0
    %v332 = vsel %vm318, %v260, 0
    %v335 = vsel %vm318, %v261, 0
    %v338 = vsel %vm318, %v262, 0
    %v341 = vsel %vm318, %v263, 0
    %v344 = vsel %vm318, %v264, 0
    %v347 = vsel %vm318, %v265, 0
    %v350 = vsel %vm318, %v266, 0
    %v353 = vsel %vm318, %v267, 0
    %v356 = vsel %vm318, %v268, 0
    %v359 = vsel %vm318, %v269, 0
    %v362 = vsel %vm318, %v270, 0
    %v365 = vsel %vm318, %v271, 0
    %v368 = vsel %vm318, %v272, 0
    %v371 = vsel %vm318, %v273, 0
    %v374 = vsel %vm318, %v274, 0
    %v377 = vsel %vm318, %v275, 0
    %v380 = vsel %vm318, %v276, 0
    %v383 = vsel %vm318, %v277, 0
    %v386 = vsel %vm318, %v278, 0
    %v389 = vsel %vm318, %v279, 0
    %v392 = vsel %vm318, %v280, 0
    %v395 = vsel %vm318, %v281, 0
    %v398 = vsel %vm318, %v282, 0
    %v401 = vsel %vm318, %v283, 0
    %v404 = vsel %vm318, %v284, 0
    %v407 = vsel %vm318, %v285, 0
    %v410 = vsel %vm318, %v286, 0
    %v413 = vsel %vm318, %v287, 0
    %vm415 = vcmask 1043456
    %v417 = vsel %vm415, %v310, 0
    %v420 = vsel %vm415, %v311, 0
    %v423 = vsel %vm415, %v312, 0
    %v426 = vsel %vm415, %v313, 0
    %428 = vmatpush.bf16.msra.mxu0 0
    %429 = vmatpush.bf16.msra.mxu0 0
    %430 = vmatpush.bf16.msra.mxu0 0
    %431 = vmatpush.bf16.msra.mxu0 0
    %432 = vmatpush.bf16.msra.mxu0 0
    %433 = vmatpush.bf16.msra.mxu0 0
    %434 = vmatpush.bf16.msra.mxu0 %v417
    %435 = vmatpush.bf16.msra.mxu0 %v306
    %436 = vmatmul.bf16.gmra.mxu0 %v320
    %v437 = vpop.f32.mrf.mxu0
    %v438 = vadd.f32 %v120, %v437
    %v439 = vpop.f32.mrf.mxu0
    %v440 = vadd.f32 %v120, %v439
    %441 = vmatmul.bf16.gmra.mxu0 %v323
    %v442 = vpop.f32.mrf.mxu0
    %v443 = vadd.f32 %v120, %v442
    %v444 = vpop.f32.mrf.mxu0
    %v445 = vadd.f32 %v120, %v444
    %446 = vmatmul.bf16.gmra.mxu0 %v326
    %v447 = vpop.f32.mrf.mxu0
    %v448 = vadd.f32 %v120, %v447
    %v449 = vpop.f32.mrf.mxu0
    %v450 = vadd.f32 %v120, %v449
    %451 = vmatmul.bf16.gmra.mxu0 %v329
    %v452 = vpop.f32.mrf.mxu0
    %v453 = vadd.f32 %v120, %v452
    %v454 = vpop.f32.mrf.mxu0
    %v455 = vadd.f32 %v120, %v454
    %456 = vmatmul.bf16.gmra.mxu0 %v332
    %v457 = vpop.f32.mrf.mxu0
    %v458 = vadd.f32 %v120, %v457
    %v459 = vpop.f32.mrf.mxu0
    %v460 = vadd.f32 %v120, %v459
    %461 = vmatmul.bf16.gmra.mxu0 %v335
    %v462 = vpop.f32.mrf.mxu0
    %v463 = vadd.f32 %v120, %v462
    %v464 = vpop.f32.mrf.mxu0
    %v465 = vadd.f32 %v120, %v464
    %466 = vmatmul.bf16.gmra.mxu0 %v338
    %v467 = vpop.f32.mrf.mxu0
    %v468 = vadd.f32 %v120, %v467
    %v469 = vpop.f32.mrf.mxu0
    %v470 = vadd.f32 %v120, %v469
    %471 = vmatmul.bf16.gmra.mxu0 %v341
    %v472 = vpop.f32.mrf.mxu0
    %v473 = vadd.f32 %v120, %v472
    %v474 = vpop.f32.mrf.mxu0
    %v475 = vadd.f32 %v120, %v474
    %476 = vmatmul.bf16.gmra.mxu0 %v344
    %v477 = vpop.f32.mrf.mxu0
    %v478 = vadd.f32 %v120, %v477
    %v479 = vpop.f32.mrf.mxu0
    %v480 = vadd.f32 %v120, %v479
    %481 = vmatmul.bf16.gmra.mxu0 %v347
    %v482 = vpop.f32.mrf.mxu0
    %v483 = vadd.f32 %v120, %v482
    %v484 = vpop.f32.mrf.mxu0
    %v485 = vadd.f32 %v120, %v484
    %486 = vmatmul.bf16.gmra.mxu0 %v350
    %v487 = vpop.f32.mrf.mxu0
    %v488 = vadd.f32 %v120, %v487
    %v489 = vpop.f32.mrf.mxu0
    %v490 = vadd.f32 %v120, %v489
    %491 = vmatmul.bf16.gmra.mxu0 %v353
    %v492 = vpop.f32.mrf.mxu0
    %v493 = vadd.f32 %v120, %v492
    %v494 = vpop.f32.mrf.mxu0
    %v495 = vadd.f32 %v120, %v494
    %496 = vmatmul.bf16.gmra.mxu0 %v356
    %v497 = vpop.f32.mrf.mxu0
    %v498 = vadd.f32 %v120, %v497
    %v499 = vpop.f32.mrf.mxu0
    %v500 = vadd.f32 %v120, %v499
    %501 = vmatmul.bf16.gmra.mxu0 %v359
    %v502 = vpop.f32.mrf.mxu0
    %v503 = vadd.f32 %v120, %v502
    %v504 = vpop.f32.mrf.mxu0
    %v505 = vadd.f32 %v120, %v504
    %506 = vmatmul.bf16.gmra.mxu0 %v362
    %v507 = vpop.f32.mrf.mxu0
    %v508 = vadd.f32 %v120, %v507
    %v509 = vpop.f32.mrf.mxu0
    %v510 = vadd.f32 %v120, %v509
    %511 = vmatmul.bf16.gmra.mxu0 %v365
    %v512 = vpop.f32.mrf.mxu0
    %v513 = vadd.f32 %v120, %v512
    %v514 = vpop.f32.mrf.mxu0
    %v515 = vadd.f32 %v120, %v514
    %516 = vmatmul.bf16.gmra.mxu0 %v368
    %v517 = vpop.f32.mrf.mxu0
    %v518 = vadd.f32 %v120, %v517
    %v519 = vpop.f32.mrf.mxu0
    %v520 = vadd.f32 %v120, %v519
    %521 = vmatmul.bf16.gmra.mxu0 %v371
    %v522 = vpop.f32.mrf.mxu0
    %v523 = vadd.f32 %v120, %v522
    %v524 = vpop.f32.mrf.mxu0
    %v525 = vadd.f32 %v120, %v524
    %526 = vmatmul.bf16.gmra.mxu0 %v374
    %v527 = vpop.f32.mrf.mxu0
    %v528 = vadd.f32 %v120, %v527
    %v529 = vpop.f32.mrf.mxu0
    %v530 = vadd.f32 %v120, %v529
    %531 = vmatmul.bf16.gmra.mxu0 %v377
    %v532 = vpop.f32.mrf.mxu0
    %v533 = vadd.f32 %v120, %v532
    %v534 = vpop.f32.mrf.mxu0
    %v535 = vadd.f32 %v120, %v534
    %536 = vmatmul.bf16.gmra.mxu0 %v380
    %v537 = vpop.f32.mrf.mxu0
    %v538 = vadd.f32 %v120, %v537
    %v539 = vpop.f32.mrf.mxu0
    %v540 = vadd.f32 %v120, %v539
    %541 = vmatmul.bf16.gmra.mxu0 %v383
    %v542 = vpop.f32.mrf.mxu0
    %v543 = vadd.f32 %v120, %v542
    %v544 = vpop.f32.mrf.mxu0
    %v545 = vadd.f32 %v120, %v544
    %546 = vmatmul.bf16.gmra.mxu0 %v386
    %v547 = vpop.f32.mrf.mxu0
    %v548 = vadd.f32 %v120, %v547
    %v549 = vpop.f32.mrf.mxu0
    %v550 = vadd.f32 %v120, %v549
    %551 = vmatmul.bf16.gmra.mxu0 %v389
    %v552 = vpop.f32.mrf.mxu0
    %v553 = vadd.f32 %v120, %v552
    %v554 = vpop.f32.mrf.mxu0
    %v555 = vadd.f32 %v120, %v554
    %556 = vmatmul.bf16.gmra.mxu0 %v392
    %v557 = vpop.f32.mrf.mxu0
    %v558 = vadd.f32 %v120, %v557
    %v559 = vpop.f32.mrf.mxu0
    %v560 = vadd.f32 %v120, %v559
    %561 = vmatmul.bf16.gmra.mxu0 %v395
    %v562 = vpop.f32.mrf.mxu0
    %v563 = vadd.f32 %v120, %v562
    %v564 = vpop.f32.mrf.mxu0
    %v565 = vadd.f32 %v120, %v564
    %566 = vmatmul.bf16.gmra.mxu0 %v398
    %v567 = vpop.f32.mrf.mxu0
    %v568 = vadd.f32 %v120, %v567
    %v569 = vpop.f32.mrf.mxu0
    %v570 = vadd.f32 %v120, %v569
    %571 = vmatmul.bf16.gmra.mxu0 %v401
    %v572 = vpop.f32.mrf.mxu0
    %v573 = vadd.f32 %v120, %v572
    %v574 = vpop.f32.mrf.mxu0
    %v575 = vadd.f32 %v120, %v574
    %576 = vmatmul.bf16.gmra.mxu0 %v404
    %v577 = vpop.f32.mrf.mxu0
    %v578 = vadd.f32 %v120, %v577
    %v579 = vpop.f32.mrf.mxu0
    %v580 = vadd.f32 %v120, %v579
    %581 = vmatmul.bf16.gmra.mxu0 %v407
    %v582 = vpop.f32.mrf.mxu0
    %v583 = vadd.f32 %v120, %v582
    %v584 = vpop.f32.mrf.mxu0
    %v585 = vadd.f32 %v120, %v584
    %586 = vmatmul.bf16.gmra.mxu0 %v410
    %v587 = vpop.f32.mrf.mxu0
    %v588 = vadd.f32 %v120, %v587
    %v589 = vpop.f32.mrf.mxu0
    %v590 = vadd.f32 %v120, %v589
    %591 = vmatmul.bf16.gmra.mxu0 %v413
    %v592 = vpop.f32.mrf.mxu0
    %v593 = vadd.f32 %v120, %v592
    %v594 = vpop.f32.mrf.mxu0
    %v595 = vadd.f32 %v120, %v594
    %596 = vdwg.mxu0
    %597 = vmatpush.bf16.msra.mxu0 0
    %598 = vmatpush.bf16.msra.mxu0 0
    %599 = vmatpush.bf16.msra.mxu0 0
    %600 = vmatpush.bf16.msra.mxu0 0
    %601 = vmatpush.bf16.msra.mxu0 0
    %602 = vmatpush.bf16.msra.mxu0 0
    %603 = vmatpush.bf16.msra.mxu0 %v420
    %604 = vmatpush.bf16.msra.mxu0 %v307
    %605 = vmatmul.bf16.gmra.mxu0 %v320
    %v606 = vpop.f32.mrf.mxu0
    %v607 = vadd.f32 %v121, %v606
    %v608 = vpop.f32.mrf.mxu0
    %v609 = vadd.f32 %v121, %v608
    %610 = vmatmul.bf16.gmra.mxu0 %v323
    %v611 = vpop.f32.mrf.mxu0
    %v612 = vadd.f32 %v121, %v611
    %v613 = vpop.f32.mrf.mxu0
    %v614 = vadd.f32 %v121, %v613
    %615 = vmatmul.bf16.gmra.mxu0 %v326
    %v616 = vpop.f32.mrf.mxu0
    %v617 = vadd.f32 %v121, %v616
    %v618 = vpop.f32.mrf.mxu0
    %v619 = vadd.f32 %v121, %v618
    %620 = vmatmul.bf16.gmra.mxu0 %v329
    %v621 = vpop.f32.mrf.mxu0
    %v622 = vadd.f32 %v121, %v621
    %v623 = vpop.f32.mrf.mxu0
    %v624 = vadd.f32 %v121, %v623
    %625 = vmatmul.bf16.gmra.mxu0 %v332
    %v626 = vpop.f32.mrf.mxu0
    %v627 = vadd.f32 %v121, %v626
    %v628 = vpop.f32.mrf.mxu0
    %v629 = vadd.f32 %v121, %v628
    %630 = vmatmul.bf16.gmra.mxu0 %v335
    %v631 = vpop.f32.mrf.mxu0
    %v632 = vadd.f32 %v121, %v631
    %v633 = vpop.f32.mrf.mxu0
    %v634 = vadd.f32 %v121, %v633
    %635 = vmatmul.bf16.gmra.mxu0 %v338
    %v636 = vpop.f32.mrf.mxu0
    %v637 = vadd.f32 %v121, %v636
    %v638 = vpop.f32.mrf.mxu0
    %v639 = vadd.f32 %v121, %v638
    %640 = vmatmul.bf16.gmra.mxu0 %v341
    %v641 = vpop.f32.mrf.mxu0
    %v642 = vadd.f32 %v121, %v641
    %v643 = vpop.f32.mrf.mxu0
    %v644 = vadd.f32 %v121, %v643
    %645 = vmatmul.bf16.gmra.mxu0 %v344
    %v646 = vpop.f32.mrf.mxu0
    %v647 = vadd.f32 %v121, %v646
    %v648 = vpop.f32.mrf.mxu0
    %v649 = vadd.f32 %v121, %v648
    %650 = vmatmul.bf16.gmra.mxu0 %v347
    %v651 = vpop.f32.mrf.mxu0
    %v652 = vadd.f32 %v121, %v651
    %v653 = vpop.f32.mrf.mxu0
    %v654 = vadd.f32 %v121, %v653
    %655 = vmatmul.bf16.gmra.mxu0 %v350
    %v656 = vpop.f32.mrf.mxu0
    %v657 = vadd.f32 %v121, %v656
    %v658 = vpop.f32.mrf.mxu0
    %v659 = vadd.f32 %v121, %v658
    %660 = vmatmul.bf16.gmra.mxu0 %v353
    %v661 = vpop.f32.mrf.mxu0
    %v662 = vadd.f32 %v121, %v661
    %v663 = vpop.f32.mrf.mxu0
    %v664 = vadd.f32 %v121, %v663
    %665 = vmatmul.bf16.gmra.mxu0 %v356
    %v666 = vpop.f32.mrf.mxu0
    %v667 = vadd.f32 %v121, %v666
    %v668 = vpop.f32.mrf.mxu0
    %v669 = vadd.f32 %v121, %v668
    %670 = vmatmul.bf16.gmra.mxu0 %v359
    %v671 = vpop.f32.mrf.mxu0
    %v672 = vadd.f32 %v121, %v671
    %v673 = vpop.f32.mrf.mxu0
    %v674 = vadd.f32 %v121, %v673
    %675 = vmatmul.bf16.gmra.mxu0 %v362
    %v676 = vpop.f32.mrf.mxu0
    %v677 = vadd.f32 %v121, %v676
    %v678 = vpop.f32.mrf.mxu0
    %v679 = vadd.f32 %v121, %v678
    %680 = vmatmul.bf16.gmra.mxu0 %v365
    %v681 = vpop.f32.mrf.mxu0
    %v682 = vadd.f32 %v121, %v681
    %v683 = vpop.f32.mrf.mxu0
    %v684 = vadd.f32 %v121, %v683
    %685 = vmatmul.bf16.gmra.mxu0 %v368
    %v686 = vpop.f32.mrf.mxu0
    %v687 = vadd.f32 %v121, %v686
    %v688 = vpop.f32.mrf.mxu0
    %v689 = vadd.f32 %v121, %v688
    %690 = vmatmul.bf16.gmra.mxu0 %v371
    %v691 = vpop.f32.mrf.mxu0
    %v692 = vadd.f32 %v121, %v691
    %v693 = vpop.f32.mrf.mxu0
    %v694 = vadd.f32 %v121, %v693
    %695 = vmatmul.bf16.gmra.mxu0 %v374
    %v696 = vpop.f32.mrf.mxu0
    %v697 = vadd.f32 %v121, %v696
    %v698 = vpop.f32.mrf.mxu0
    %v699 = vadd.f32 %v121, %v698
    %700 = vmatmul.bf16.gmra.mxu0 %v377
    %v701 = vpop.f32.mrf.mxu0
    %v702 = vadd.f32 %v121, %v701
    %v703 = vpop.f32.mrf.mxu0
    %v704 = vadd.f32 %v121, %v703
    %705 = vmatmul.bf16.gmra.mxu0 %v380
    %v706 = vpop.f32.mrf.mxu0
    %v707 = vadd.f32 %v121, %v706
    %v708 = vpop.f32.mrf.mxu0
    %v709 = vadd.f32 %v121, %v708
    %710 = vmatmul.bf16.gmra.mxu0 %v383
    %v711 = vpop.f32.mrf.mxu0
    %v712 = vadd.f32 %v121, %v711
    %v713 = vpop.f32.mrf.mxu0
    %v714 = vadd.f32 %v121, %v713
    %715 = vmatmul.bf16.gmra.mxu0 %v386
    %v716 = vpop.f32.mrf.mxu0
    %v717 = vadd.f32 %v121, %v716
    %v718 = vpop.f32.mrf.mxu0
    %v719 = vadd.f32 %v121, %v718
    %720 = vmatmul.bf16.gmra.mxu0 %v389
    %v721 = vpop.f32.mrf.mxu0
    %v722 = vadd.f32 %v121, %v721
    %v723 = vpop.f32.mrf.mxu0
    %v724 = vadd.f32 %v121, %v723
    %725 = vmatmul.bf16.gmra.mxu0 %v392
    %v726 = vpop.f32.mrf.mxu0
    %v727 = vadd.f32 %v121, %v726
    %v728 = vpop.f32.mrf.mxu0
    %v729 = vadd.f32 %v121, %v728
    %730 = vmatmul.bf16.gmra.mxu0 %v395
    %v731 = vpop.f32.mrf.mxu0
    %v732 = vadd.f32 %v121, %v731
    %v733 = vpop.f32.mrf.mxu0
    %v734 = vadd.f32 %v121, %v733
    %735 = vmatmul.bf16.gmra.mxu0 %v398
    %v736 = vpop.f32.mrf.mxu0
    %v737 = vadd.f32 %v121, %v736
    %v738 = vpop.f32.mrf.mxu0
    %v739 = vadd.f32 %v121, %v738
    %740 = vmatmul.bf16.gmra.mxu0 %v401
    %v741 = vpop.f32.mrf.mxu0
    %v742 = vadd.f32 %v121, %v741
    %v743 = vpop.f32.mrf.mxu0
    %v744 = vadd.f32 %v121, %v743
    %745 = vmatmul.bf16.gmra.mxu0 %v404
    %v746 = vpop.f32.mrf.mxu0
    %v747 = vadd.f32 %v121, %v746
    %v748 = vpop.f32.mrf.mxu0
    %v749 = vadd.f32 %v121, %v748
    %750 = vmatmul.bf16.gmra.mxu0 %v407
    %v751 = vpop.f32.mrf.mxu0
    %v752 = vadd.f32 %v121, %v751
    %v753 = vpop.f32.mrf.mxu0
    %v754 = vadd.f32 %v121, %v753
    %755 = vmatmul.bf16.gmra.mxu0 %v410
    %v756 = vpop.f32.mrf.mxu0
    %v757 = vadd.f32 %v121, %v756
    %v758 = vpop.f32.mrf.mxu0
    %v759 = vadd.f32 %v121, %v758
    %760 = vmatmul.bf16.gmra.mxu0 %v413
    %v761 = vpop.f32.mrf.mxu0
    %v762 = vadd.f32 %v121, %v761
    %v763 = vpop.f32.mrf.mxu0
    %v764 = vadd.f32 %v121, %v763
    %765 = vdwg.mxu0
    %766 = vmatpush.bf16.msra.mxu0 0
    %767 = vmatpush.bf16.msra.mxu0 0
    %768 = vmatpush.bf16.msra.mxu0 0
    %769 = vmatpush.bf16.msra.mxu0 0
    %770 = vmatpush.bf16.msra.mxu0 0
    %771 = vmatpush.bf16.msra.mxu0 0
    %772 = vmatpush.bf16.msra.mxu0 %v423
    %773 = vmatpush.bf16.msra.mxu0 %v308
    %774 = vmatmul.bf16.gmra.mxu0 %v320
    %v775 = vpop.f32.mrf.mxu0
    %v776 = vadd.f32 %v122, %v775
    %v777 = vpop.f32.mrf.mxu0
    %v778 = vadd.f32 %v122, %v777
    %779 = vmatmul.bf16.gmra.mxu0 %v323
    %v780 = vpop.f32.mrf.mxu0
    %v781 = vadd.f32 %v122, %v780
    %v782 = vpop.f32.mrf.mxu0
    %v783 = vadd.f32 %v122, %v782
    %784 = vmatmul.bf16.gmra.mxu0 %v326
    %v785 = vpop.f32.mrf.mxu0
    %v786 = vadd.f32 %v122, %v785
    %v787 = vpop.f32.mrf.mxu0
    %v788 = vadd.f32 %v122, %v787
    %789 = vmatmul.bf16.gmra.mxu0 %v329
    %v790 = vpop.f32.mrf.mxu0
    %v791 = vadd.f32 %v122, %v790
    %v792 = vpop.f32.mrf.mxu0
    %v793 = vadd.f32 %v122, %v792
    %794 = vmatmul.bf16.gmra.mxu0 %v332
    %v795 = vpop.f32.mrf.mxu0
    %v796 = vadd.f32 %v122, %v795
    %v797 = vpop.f32.mrf.mxu0
    %v798 = vadd.f32 %v122, %v797
    %799 = vmatmul.bf16.gmra.mxu0 %v335
    %v800 = vpop.f32.mrf.mxu0
    %v801 = vadd.f32 %v122, %v800
    %v802 = vpop.f32.mrf.mxu0
    %v803 = vadd.f32 %v122, %v802
    %804 = vmatmul.bf16.gmra.mxu0 %v338
    %v805 = vpop.f32.mrf.mxu0
    %v806 = vadd.f32 %v122, %v805
    %v807 = vpop.f32.mrf.mxu0
    %v808 = vadd.f32 %v122, %v807
    %809 = vmatmul.bf16.gmra.mxu0 %v341
    %v810 = vpop.f32.mrf.mxu0
    %v811 = vadd.f32 %v122, %v810
    %v812 = vpop.f32.mrf.mxu0
    %v813 = vadd.f32 %v122, %v812
    %814 = vmatmul.bf16.gmra.mxu0 %v344
    %v815 = vpop.f32.mrf.mxu0
    %v816 = vadd.f32 %v122, %v815
    %v817 = vpop.f32.mrf.mxu0
    %v818 = vadd.f32 %v122, %v817
    %819 = vmatmul.bf16.gmra.mxu0 %v347
    %v820 = vpop.f32.mrf.mxu0
    %v821 = vadd.f32 %v122, %v820
    %v822 = vpop.f32.mrf.mxu0
    %v823 = vadd.f32 %v122, %v822
    %824 = vmatmul.bf16.gmra.mxu0 %v350
    %v825 = vpop.f32.mrf.mxu0
    %v826 = vadd.f32 %v122, %v825
    %v827 = vpop.f32.mrf.mxu0
    %v828 = vadd.f32 %v122, %v827
    %829 = vmatmul.bf16.gmra.mxu0 %v353
    %v830 = vpop.f32.mrf.mxu0
    %v831 = vadd.f32 %v122, %v830
    %v832 = vpop.f32.mrf.mxu0
    %v833 = vadd.f32 %v122, %v832
    %834 = vmatmul.bf16.gmra.mxu0 %v356
    %v835 = vpop.f32.mrf.mxu0
    %v836 = vadd.f32 %v122, %v835
    %v837 = vpop.f32.mrf.mxu0
    %v838 = vadd.f32 %v122, %v837
    %839 = vmatmul.bf16.gmra.mxu0 %v359
    %v840 = vpop.f32.mrf.mxu0
    %v841 = vadd.f32 %v122, %v840
    %v842 = vpop.f32.mrf.mxu0
    %v843 = vadd.f32 %v122, %v842
    %844 = vmatmul.bf16.gmra.mxu0 %v362
    %v845 = vpop.f32.mrf.mxu0
    %v846 = vadd.f32 %v122, %v845
    %v847 = vpop.f32.mrf.mxu0
    %v848 = vadd.f32 %v122, %v847
    %849 = vmatmul.bf16.gmra.mxu0 %v365
    %v850 = vpop.f32.mrf.mxu0
    %v851 = vadd.f32 %v122, %v850
    %v852 = vpop.f32.mrf.mxu0
    %v853 = vadd.f32 %v122, %v852
    %854 = vmatmul.bf16.gmra.mxu0 %v368
    %v855 = vpop.f32.mrf.mxu0
    %v856 = vadd.f32 %v122, %v855
    %v857 = vpop.f32.mrf.mxu0
    %v858 = vadd.f32 %v122, %v857
    %859 = vmatmul.bf16.gmra.mxu0 %v371
    %v860 = vpop.f32.mrf.mxu0
    %v861 = vadd.f32 %v122, %v860
    %v862 = vpop.f32.mrf.mxu0
    %v863 = vadd.f32 %v122, %v862
    %864 = vmatmul.bf16.gmra.mxu0 %v374
    %v865 = vpop.f32.mrf.mxu0
    %v866 = vadd.f32 %v122, %v865
    %v867 = vpop.f32.mrf.mxu0
    %v868 = vadd.f32 %v122, %v867
    %869 = vmatmul.bf16.gmra.mxu0 %v377
    %v870 = vpop.f32.mrf.mxu0
    %v871 = vadd.f32 %v122, %v870
    %v872 = vpop.f32.mrf.mxu0
    %v873 = vadd.f32 %v122, %v872
    %874 = vmatmul.bf16.gmra.mxu0 %v380
    %v875 = vpop.f32.mrf.mxu0
    %v876 = vadd.f32 %v122, %v875
    %v877 = vpop.f32.mrf.mxu0
    %v878 = vadd.f32 %v122, %v877
    %879 = vmatmul.bf16.gmra.mxu0 %v383
    %v880 = vpop.f32.mrf.mxu0
    %v881 = vadd.f32 %v122, %v880
    %v882 = vpop.f32.mrf.mxu0
    %v883 = vadd.f32 %v122, %v882
    %884 = vmatmul.bf16.gmra.mxu0 %v386
    %v885 = vpop.f32.mrf.mxu0
    %v886 = vadd.f32 %v122, %v885
    %v887 = vpop.f32.mrf.mxu0
    %v888 = vadd.f32 %v122, %v887
    %889 = vmatmul.bf16.gmra.mxu0 %v389
    %v890 = vpop.f32.mrf.mxu0
    %v891 = vadd.f32 %v122, %v890
    %v892 = vpop.f32.mrf.mxu0
    %v893 = vadd.f32 %v122, %v892
    %894 = vmatmul.bf16.gmra.mxu0 %v392
    %v895 = vpop.f32.mrf.mxu0
    %v896 = vadd.f32 %v122, %v895
    %v897 = vpop.f32.mrf.mxu0
    %v898 = vadd.f32 %v122, %v897
    %899 = vmatmul.bf16.gmra.mxu0 %v395
    %v900 = vpop.f32.mrf.mxu0
    %v901 = vadd.f32 %v122, %v900
    %v902 = vpop.f32.mrf.mxu0
    %v903 = vadd.f32 %v122, %v902
    %904 = vmatmul.bf16.gmra.mxu0 %v398
    %v905 = vpop.f32.mrf.mxu0
    %v906 = vadd.f32 %v122, %v905
    %v907 = vpop.f32.mrf.mxu0
    %v908 = vadd.f32 %v122, %v907
    %909 = vmatmul.bf16.gmra.mxu0 %v401
    %v910 = vpop.f32.mrf.mxu0
    %v911 = vadd.f32 %v122, %v910
    %v912 = vpop.f32.mrf.mxu0
    %v913 = vadd.f32 %v122, %v912
    %914 = vmatmul.bf16.gmra.mxu0 %v404
    %v915 = vpop.f32.mrf.mxu0
    %v916 = vadd.f32 %v122, %v915
    %v917 = vpop.f32.mrf.mxu0
    %v918 = vadd.f32 %v122, %v917
    %919 = vmatmul.bf16.gmra.mxu0 %v407
    %v920 = vpop.f32.mrf.mxu0
    %v921 = vadd.f32 %v122, %v920
    %v922 = vpop.f32.mrf.mxu0
    %v923 = vadd.f32 %v122, %v922
    %924 = vmatmul.bf16.gmra.mxu0 %v410
    %v925 = vpop.f32.mrf.mxu0
    %v926 = vadd.f32 %v122, %v925
    %v927 = vpop.f32.mrf.mxu0
    %v928 = vadd.f32 %v122, %v927
    %929 = vmatmul.bf16.gmra.mxu0 %v413
    %v930 = vpop.f32.mrf.mxu0
    %v931 = vadd.f32 %v122, %v930
    %v932 = vpop.f32.mrf.mxu0
    %v933 = vadd.f32 %v122, %v932
    %934 = vdwg.mxu0
    %935 = vmatpush.bf16.msra.mxu0 0
    %936 = vmatpush.bf16.msra.mxu0 0
    %937 = vmatpush.bf16.msra.mxu0 0
    %938 = vmatpush.bf16.msra.mxu0 0
    %939 = vmatpush.bf16.msra.mxu0 0
    %940 = vmatpush.bf16.msra.mxu0 0
    %941 = vmatpush.bf16.msra.mxu0 %v426
    %942 = vmatpush.bf16.msra.mxu0 %v309
    %943 = vmatmul.bf16.gmra.mxu0 %v320
    %v944 = vpop.f32.mrf.mxu0
    %v945 = vadd.f32 %v123, %v944
    %v946 = vpop.f32.mrf.mxu0
    %v947 = vadd.f32 %v123, %v946
    %948 = vmatmul.bf16.gmra.mxu0 %v323
    %v949 = vpop.f32.mrf.mxu0
    %v950 = vadd.f32 %v123, %v949
    %v951 = vpop.f32.mrf.mxu0
    %v952 = vadd.f32 %v123, %v951
    %953 = vmatmul.bf16.gmra.mxu0 %v326
    %v954 = vpop.f32.mrf.mxu0
    %v955 = vadd.f32 %v123, %v954
    %v956 = vpop.f32.mrf.mxu0
    %v957 = vadd.f32 %v123, %v956
    %958 = vmatmul.bf16.gmra.mxu0 %v329
    %v959 = vpop.f32.mrf.mxu0
    %v960 = vadd.f32 %v123, %v959
    %v961 = vpop.f32.mrf.mxu0
    %v962 = vadd.f32 %v123, %v961
    %963 = vmatmul.bf16.gmra.mxu0 %v332
    %v964 = vpop.f32.mrf.mxu0
    %v965 = vadd.f32 %v123, %v964
    %v966 = vpop.f32.mrf.mxu0
    %v967 = vadd.f32 %v123, %v966
    %968 = vmatmul.bf16.gmra.mxu0 %v335
    %v969 = vpop.f32.mrf.mxu0
    %v970 = vadd.f32 %v123, %v969
    %v971 = vpop.f32.mrf.mxu0
    %v972 = vadd.f32 %v123, %v971
    %973 = vmatmul.bf16.gmra.mxu0 %v338
    %v974 = vpop.f32.mrf.mxu0
    %v975 = vadd.f32 %v123, %v974
    %v976 = vpop.f32.mrf.mxu0
    %v977 = vadd.f32 %v123, %v976
    %978 = vmatmul.bf16.gmra.mxu0 %v341
    %v979 = vpop.f32.mrf.mxu0
    %v980 = vadd.f32 %v123, %v979
    %v981 = vpop.f32.mrf.mxu0
    %v982 = vadd.f32 %v123, %v981
    %983 = vmatmul.bf16.gmra.mxu0 %v344
    %v984 = vpop.f32.mrf.mxu0
    %v985 = vadd.f32 %v123, %v984
    %v986 = vpop.f32.mrf.mxu0
    %v987 = vadd.f32 %v123, %v986
    %988 = vmatmul.bf16.gmra.mxu0 %v347
    %v989 = vpop.f32.mrf.mxu0
    %v990 = vadd.f32 %v123, %v989
    %v991 = vpop.f32.mrf.mxu0
    %v992 = vadd.f32 %v123, %v991
    %993 = vmatmul.bf16.gmra.mxu0 %v350
    %v994 = vpop.f32.mrf.mxu0
    %v995 = vadd.f32 %v123, %v994
    %v996 = vpop.f32.mrf.mxu0
    %v997 = vadd.f32 %v123, %v996
    %998 = vmatmul.bf16.gmra.mxu0 %v353
    %v999 = vpop.f32.mrf.mxu0
    %v1000 = vadd.f32 %v123, %v999
    %v1001 = vpop.f32.mrf.mxu0
    %v1002 = vadd.f32 %v123, %v1001
    %1003 = vmatmul.bf16.gmra.mxu0 %v356
    %v1004 = vpop.f32.mrf.mxu0
    %v1005 = vadd.f32 %v123, %v1004
    %v1006 = vpop.f32.mrf.mxu0
    %v1007 = vadd.f32 %v123, %v1006
    %1008 = vmatmul.bf16.gmra.mxu0 %v359
    %v1009 = vpop.f32.mrf.mxu0
    %v1010 = vadd.f32 %v123, %v1009
    %v1011 = vpop.f32.mrf.mxu0
    %v1012 = vadd.f32 %v123, %v1011
    %1013 = vmatmul.bf16.gmra.mxu0 %v362
    %v1014 = vpop.f32.mrf.mxu0
    %v1015 = vadd.f32 %v123, %v1014
    %v1016 = vpop.f32.mrf.mxu0
    %v1017 = vadd.f32 %v123, %v1016
    %1018 = vmatmul.bf16.gmra.mxu0 %v365
    %v1019 = vpop.f32.mrf.mxu0
    %v1020 = vadd.f32 %v123, %v1019
    %v1021 = vpop.f32.mrf.mxu0
    %v1022 = vadd.f32 %v123, %v1021
    %1023 = vmatmul.bf16.gmra.mxu0 %v368
    %v1024 = vpop.f32.mrf.mxu0
    %v1025 = vadd.f32 %v123, %v1024
    %v1026 = vpop.f32.mrf.mxu0
    %v1027 = vadd.f32 %v123, %v1026
    %1028 = vmatmul.bf16.gmra.mxu0 %v371
    %v1029 = vpop.f32.mrf.mxu0
    %v1030 = vadd.f32 %v123, %v1029
    %v1031 = vpop.f32.mrf.mxu0
    %v1032 = vadd.f32 %v123, %v1031
    %1033 = vmatmul.bf16.gmra.mxu0 %v374
    %v1034 = vpop.f32.mrf.mxu0
    %v1035 = vadd.f32 %v123, %v1034
    %v1036 = vpop.f32.mrf.mxu0
    %v1037 = vadd.f32 %v123, %v1036
    %1038 = vmatmul.bf16.gmra.mxu0 %v377
    %v1039 = vpop.f32.mrf.mxu0
    %v1040 = vadd.f32 %v123, %v1039
    %v1041 = vpop.f32.mrf.mxu0
    %v1042 = vadd.f32 %v123, %v1041
    %1043 = vmatmul.bf16.gmra.mxu0 %v380
    %v1044 = vpop.f32.mrf.mxu0
    %v1045 = vadd.f32 %v123, %v1044
    %v1046 = vpop.f32.mrf.mxu0
    %v1047 = vadd.f32 %v123, %v1046
    %1048 = vmatmul.bf16.gmra.mxu0 %v383
    %v1049 = vpop.f32.mrf.mxu0
    %v1050 = vadd.f32 %v123, %v1049
    %v1051 = vpop.f32.mrf.mxu0
    %v1052 = vadd.f32 %v123, %v1051
    %1053 = vmatmul.bf16.gmra.mxu0 %v386
    %v1054 = vpop.f32.mrf.mxu0
    %v1055 = vadd.f32 %v123, %v1054
    %v1056 = vpop.f32.mrf.mxu0
    %v1057 = vadd.f32 %v123, %v1056
    %1058 = vmatmul.bf16.gmra.mxu0 %v389
    %v1059 = vpop.f32.mrf.mxu0
    %v1060 = vadd.f32 %v123, %v1059
    %v1061 = vpop.f32.mrf.mxu0
    %v1062 = vadd.f32 %v123, %v1061
    %1063 = vmatmul.bf16.gmra.mxu0 %v392
    %v1064 = vpop.f32.mrf.mxu0
    %v1065 = vadd.f32 %v123, %v1064
    %v1066 = vpop.f32.mrf.mxu0
    %v1067 = vadd.f32 %v123, %v1066
    %1068 = vmatmul.bf16.gmra.mxu0 %v395
    %v1069 = vpop.f32.mrf.mxu0
    %v1070 = vadd.f32 %v123, %v1069
    %v1071 = vpop.f32.mrf.mxu0
    %v1072 = vadd.f32 %v123, %v1071
    %1073 = vmatmul.bf16.gmra.mxu0 %v398
    %v1074 = vpop.f32.mrf.mxu0
    %v1075 = vadd.f32 %v123, %v1074
    %v1076 = vpop.f32.mrf.mxu0
    %v1077 = vadd.f32 %v123, %v1076
    %1078 = vmatmul.bf16.gmra.mxu0 %v401
    %v1079 = vpop.f32.mrf.mxu0
    %v1080 = vadd.f32 %v123, %v1079
    %v1081 = vpop.f32.mrf.mxu0
    %v1082 = vadd.f32 %v123, %v1081
    %1083 = vmatmul.bf16.gmra.mxu0 %v404
    %v1084 = vpop.f32.mrf.mxu0
    %v1085 = vadd.f32 %v123, %v1084
    %v1086 = vpop.f32.mrf.mxu0
    %v1087 = vadd.f32 %v123, %v1086
    %1088 = vmatmul.bf16.gmra.mxu0 %v407
    %v1089 = vpop.f32.mrf.mxu0
    %v1090 = vadd.f32 %v123, %v1089
    %v1091 = vpop.f32.mrf.mxu0
    %v1092 = vadd.f32 %v123, %v1091
    %1093 = vmatmul.bf16.gmra.mxu0 %v410
    %v1094 = vpop.f32.mrf.mxu0
    %v1095 = vadd.f32 %v123, %v1094
    %v1096 = vpop.f32.mrf.mxu0
    %v1097 = vadd.f32 %v123, %v1096
    %1098 = vmatmul.bf16.gmra.mxu0 %v413
    %v1099 = vpop.f32.mrf.mxu0
    %v1100 = vadd.f32 %v123, %v1099
    %v1101 = vpop.f32.mrf.mxu0
    %v1102 = vadd.f32 %v123, %v1101
    %1103 = vdwg.mxu0
    %v1104 = vmax.f32 %v438, 0.0
    %v1105 = vmax.f32 %v607, 0.0
    %v1106 = vmax.f32 %v776, 0.0
    %v1107 = vmax.f32 %v945, 0.0
    %v1108 = vmax.f32 %v440, 0.0
    %v1109 = vmax.f32 %v609, 0.0
    %v1110 = vmax.f32 %v778, 0.0
    %v1111 = vmax.f32 %v947, 0.0
    %v1112 = vmax.f32 %v443, 0.0
    %v1113 = vmax.f32 %v612, 0.0
    %v1114 = vmax.f32 %v781, 0.0
    %v1115 = vmax.f32 %v950, 0.0
    %v1116 = vmax.f32 %v445, 0.0
    %v1117 = vmax.f32 %v614, 0.0
    %v1118 = vmax.f32 %v783, 0.0
    %v1119 = vmax.f32 %v952, 0.0
    %v1120 = vmax.f32 %v448, 0.0
    %v1121 = vmax.f32 %v617, 0.0
    %v1122 = vmax.f32 %v786, 0.0
    %v1123 = vmax.f32 %v955, 0.0
    %v1124 = vmax.f32 %v450, 0.0
    %v1125 = vmax.f32 %v619, 0.0
    %v1126 = vmax.f32 %v788, 0.0
    %v1127 = vmax.f32 %v957, 0.0
    %v1128 = vmax.f32 %v453, 0.0
    %v1129 = vmax.f32 %v622, 0.0
    %v1130 = vmax.f32 %v791, 0.0
    %v1131 = vmax.f32 %v960, 0.0
    %v1132 = vmax.f32 %v455, 0.0
    %v1133 = vmax.f32 %v624, 0.0
    %v1134 = vmax.f32 %v793, 0.0
    %v1135 = vmax.f32 %v962, 0.0
    %v1136 = vmax.f32 %v458, 0.0
    %v1137 = vmax.f32 %v627, 0.0
    %v1138 = vmax.f32 %v796, 0.0
    %v1139 = vmax.f32 %v965, 0.0
    %v1140 = vmax.f32 %v460, 0.0
    %v1141 = vmax.f32 %v629, 0.0
    %v1142 = vmax.f32 %v798, 0.0
    %v1143 = vmax.f32 %v967, 0.0
    %v1144 = vmax.f32 %v463, 0.0
    %v1145 = vmax.f32 %v632, 0.0
    %v1146 = vmax.f32 %v801, 0.0
    %v1147 = vmax.f32 %v970, 0.0
    %v1148 = vmax.f32 %v465, 0.0
    %v1149 = vmax.f32 %v634, 0.0
    %v1150 = vmax.f32 %v803, 0.0
    %v1151 = vmax.f32 %v972, 0.0
    %v1152 = vmax.f32 %v468, 0.0
    %v1153 = vmax.f32 %v637, 0.0
    %v1154 = vmax.f32 %v806, 0.0
    %v1155 = vmax.f32 %v975, 0.0
    %v1156 = vmax.f32 %v470, 0.0
    %v1157 = vmax.f32 %v639, 0.0
    %v1158 = vmax.f32 %v808, 0.0
    %v1159 = vmax.f32 %v977, 0.0
    %v1160 = vmax.f32 %v473, 0.0
    %v1161 = vmax.f32 %v642, 0.0
    %v1162 = vmax.f32 %v811, 0.0
    %v1163 = vmax.f32 %v980, 0.0
    %v1164 = vmax.f32 %v475, 0.0
    %v1165 = vmax.f32 %v644, 0.0
    %v1166 = vmax.f32 %v813, 0.0
    %v1167 = vmax.f32 %v982, 0.0
    %v1168 = vmax.f32 %v478, 0.0
    %v1169 = vmax.f32 %v647, 0.0
    %v1170 = vmax.f32 %v816, 0.0
    %v1171 = vmax.f32 %v985, 0.0
    %v1172 = vmax.f32 %v480, 0.0
    %v1173 = vmax.f32 %v649, 0.0
    %v1174 = vmax.f32 %v818, 0.0
    %v1175 = vmax.f32 %v987, 0.0
    %v1176 = vmax.f32 %v483, 0.0
    %v1177 = vmax.f32 %v652, 0.0
    %v1178 = vmax.f32 %v821, 0.0
    %v1179 = vmax.f32 %v990, 0.0
    %v1180 = vmax.f32 %v485, 0.0
    %v1181 = vmax.f32 %v654, 0.0
    %v1182 = vmax.f32 %v823, 0.0
    %v1183 = vmax.f32 %v992, 0.0
    %v1184 = vmax.f32 %v488, 0.0
    %v1185 = vmax.f32 %v657, 0.0
    %v1186 = vmax.f32 %v826, 0.0
    %v1187 = vmax.f32 %v995, 0.0
    %v1188 = vmax.f32 %v490, 0.0
    %v1189 = vmax.f32 %v659, 0.0
    %v1190 = vmax.f32 %v828, 0.0
    %v1191 = vmax.f32 %v997, 0.0
    %v1192 = vmax.f32 %v493, 0.0
    %v1193 = vmax.f32 %v662, 0.0
    %v1194 = vmax.f32 %v831, 0.0
    %v1195 = vmax.f32 %v1000, 0.0
    %v1196 = vmax.f32 %v495, 0.0
    %v1197 = vmax.f32 %v664, 0.0
    %v1198 = vmax.f32 %v833, 0.0
    %v1199 = vmax.f32 %v1002, 0.0
    %v1200 = vmax.f32 %v498, 0.0
    %v1201 = vmax.f32 %v667, 0.0
    %v1202 = vmax.f32 %v836, 0.0
    %v1203 = vmax.f32 %v1005, 0.0
    %v1204 = vmax.f32 %v500, 0.0
    %v1205 = vmax.f32 %v669, 0.0
    %v1206 = vmax.f32 %v838, 0.0
    %v1207 = vmax.f32 %v1007, 0.0
    %v1208 = vmax.f32 %v503, 0.0
    %v1209 = vmax.f32 %v672, 0.0
    %v1210 = vmax.f32 %v841, 0.0
    %v1211 = vmax.f32 %v1010, 0.0
    %v1212 = vmax.f32 %v505, 0.0
    %v1213 = vmax.f32 %v674, 0.0
    %v1214 = vmax.f32 %v843, 0.0
    %v1215 = vmax.f32 %v1012, 0.0
    %v1216 = vmax.f32 %v508, 0.0
    %v1217 = vmax.f32 %v677, 0.0
    %v1218 = vmax.f32 %v846, 0.0
    %v1219 = vmax.f32 %v1015, 0.0
    %v1220 = vmax.f32 %v510, 0.0
    %v1221 = vmax.f32 %v679, 0.0
    %v1222 = vmax.f32 %v848, 0.0
    %v1223 = vmax.f32 %v1017, 0.0
    %v1224 = vmax.f32 %v513, 0.0
    %v1225 = vmax.f32 %v682, 0.0
    %v1226 = vmax.f32 %v851, 0.0
    %v1227 = vmax.f32 %v1020, 0.0
    %v1228 = vmax.f32 %v515, 0.0
    %v1229 = vmax.f32 %v684, 0.0
    %v1230 = vmax.f32 %v853, 0.0
    %v1231 = vmax.f32 %v1022, 0.0
    %v1232 = vmax.f32 %v518, 0.0
    %v1233 = vmax.f32 %v687, 0.0
    %v1234 = vmax.f32 %v856, 0.0
    %v1235 = vmax.f32 %v1025, 0.0
    %v1236 = vmax.f32 %v520, 0.0
    %v1237 = vmax.f32 %v689, 0.0
    %v1238 = vmax.f32 %v858, 0.0
    %v1239 = vmax.f32 %v1027, 0.0
    %v1240 = vmax.f32 %v523, 0.0
    %v1241 = vmax.f32 %v692, 0.0
    %v1242 = vmax.f32 %v861, 0.0
    %v1243 = vmax.f32 %v1030, 0.0
    %v1244 = vmax.f32 %v525, 0.0
    %v1245 = vmax.f32 %v694, 0.0
    %v1246 = vmax.f32 %v863, 0.0
    %v1247 = vmax.f32 %v1032, 0.0
    %v1248 = vmax.f32 %v528, 0.0
    %v1249 = vmax.f32 %v697, 0.0
    %v1250 = vmax.f32 %v866, 0.0
    %v1251 = vmax.f32 %v1035, 0.0
    %v1252 = vmax.f32 %v530, 0.0
    %v1253 = vmax.f32 %v699, 0.0
    %v1254 = vmax.f32 %v868, 0.0
    %v1255 = vmax.f32 %v1037, 0.0
    %v1256 = vmax.f32 %v533, 0.0
    %v1257 = vmax.f32 %v702, 0.0
    %v1258 = vmax.f32 %v871, 0.0
    %v1259 = vmax.f32 %v1040, 0.0
    %v1260 = vmax.f32 %v535, 0.0
    %v1261 = vmax.f32 %v704, 0.0
    %v1262 = vmax.f32 %v873, 0.0
    %v1263 = vmax.f32 %v1042, 0.0
    %v1264 = vmax.f32 %v538, 0.0
    %v1265 = vmax.f32 %v707, 0.0
    %v1266 = vmax.f32 %v876, 0.0
    %v1267 = vmax.f32 %v1045, 0.0
    %v1268 = vmax.f32 %v540, 0.0
    %v1269 = vmax.f32 %v709, 0.0
    %v1270 = vmax.f32 %v878, 0.0
    %v1271 = vmax.f32 %v1047, 0.0
    %v1272 = vmax.f32 %v543, 0.0
    %v1273 = vmax.f32 %v712, 0.0
    %v1274 = vmax.f32 %v881, 0.0
    %v1275 = vmax.f32 %v1050, 0.0
    %v1276 = vmax.f32 %v545, 0.0
    %v1277 = vmax.f32 %v714, 0.0
    %v1278 = vmax.f32 %v883, 0.0
    %v1279 = vmax.f32 %v1052, 0.0
    %v1280 = vmax.f32 %v548, 0.0
    %v1281 = vmax.f32 %v717, 0.0
    %v1282 = vmax.f32 %v886, 0.0
    %v1283 = vmax.f32 %v1055, 0.0
    %v1284 = vmax.f32 %v550, 0.0
    %v1285 = vmax.f32 %v719, 0.0
    %v1286 = vmax.f32 %v888, 0.0
    %v1287 = vmax.f32 %v1057, 0.0
    %v1288 = vmax.f32 %v553, 0.0
    %v1289 = vmax.f32 %v722, 0.0
    %v1290 = vmax.f32 %v891, 0.0
    %v1291 = vmax.f32 %v1060, 0.0
    %v1292 = vmax.f32 %v555, 0.0
    %v1293 = vmax.f32 %v724, 0.0
    %v1294 = vmax.f32 %v893, 0.0
    %v1295 = vmax.f32 %v1062, 0.0
    %v1296 = vmax.f32 %v558, 0.0
    %v1297 = vmax.f32 %v727, 0.0
    %v1298 = vmax.f32 %v896, 0.0
    %v1299 = vmax.f32 %v1065, 0.0
    %v1300 = vmax.f32 %v560, 0.0
    %v1301 = vmax.f32 %v729, 0.0
    %v1302 = vmax.f32 %v898, 0.0
    %v1303 = vmax.f32 %v1067, 0.0
    %v1304 = vmax.f32 %v563, 0.0
    %v1305 = vmax.f32 %v732, 0.0
    %v1306 = vmax.f32 %v901, 0.0
    %v1307 = vmax.f32 %v1070, 0.0
    %v1308 = vmax.f32 %v565, 0.0
    %v1309 = vmax.f32 %v734, 0.0
    %v1310 = vmax.f32 %v903, 0.0
    %v1311 = vmax.f32 %v1072, 0.0
    %v1312 = vmax.f32 %v568, 0.0
    %v1313 = vmax.f32 %v737, 0.0
    %v1314 = vmax.f32 %v906, 0.0
    %v1315 = vmax.f32 %v1075, 0.0
    %v1316 = vmax.f32 %v570, 0.0
    %v1317 = vmax.f32 %v739, 0.0
    %v1318 = vmax.f32 %v908, 0.0
    %v1319 = vmax.f32 %v1077, 0.0
    %v1320 = vmax.f32 %v573, 0.0
    %v1321 = vmax.f32 %v742, 0.0
    %v1322 = vmax.f32 %v911, 0.0
    %v1323 = vmax.f32 %v1080, 0.0
    %v1324 = vmax.f32 %v575, 0.0
    %v1325 = vmax.f32 %v744, 0.0
    %v1326 = vmax.f32 %v913, 0.0
    %v1327 = vmax.f32 %v1082, 0.0
    %v1328 = vmax.f32 %v578, 0.0
    %v1329 = vmax.f32 %v747, 0.0
    %v1330 = vmax.f32 %v916, 0.0
    %v1331 = vmax.f32 %v1085, 0.0
    %v1332 = vmax.f32 %v580, 0.0
    %v1333 = vmax.f32 %v749, 0.0
    %v1334 = vmax.f32 %v918, 0.0
    %v1335 = vmax.f32 %v1087, 0.0
    %v1336 = vmax.f32 %v583, 0.0
    %v1337 = vmax.f32 %v752, 0.0
    %v1338 = vmax.f32 %v921, 0.0
    %v1339 = vmax.f32 %v1090, 0.0
    %v1340 = vmax.f32 %v585, 0.0
    %v1341 = vmax.f32 %v754, 0.0
    %v1342 = vmax.f32 %v923, 0.0
    %v1343 = vmax.f32 %v1092, 0.0
    %v1344 = vmax.f32 %v588, 0.0
    %v1345 = vmax.f32 %v757, 0.0
    %v1346 = vmax.f32 %v926, 0.0
    %v1347 = vmax.f32 %v1095, 0.0
    %v1348 = vmax.f32 %v590, 0.0
    %v1349 = vmax.f32 %v759, 0.0
    %v1350 = vmax.f32 %v928, 0.0
    %v1351 = vmax.f32 %v1097, 0.0
    %v1352 = vmax.f32 %v593, 0.0
    %v1353 = vmax.f32 %v762, 0.0
    %v1354 = vmax.f32 %v931, 0.0
    %v1355 = vmax.f32 %v1100, 0.0
    %v1356 = vmax.f32 %v595, 0.0
    %v1357 = vmax.f32 %v764, 0.0
    %v1358 = vmax.f32 %v933, 0.0
    %v1359 = vmax.f32 %v1102, 0.0
    %v1360 = vpack.c.bf16 %v1108, %v1104
    %v1361 = vpack.c.bf16 %v1109, %v1105
    %v1362 = vpack.c.bf16 %v1110, %v1106
    %v1363 = vpack.c.bf16 %v1111, %v1107
    %v1364 = vpack.c.bf16 %v1116, %v1112
    %v1365 = vpack.c.bf16 %v1117, %v1113
    %v1366 = vpack.c.bf16 %v1118, %v1114
    %v1367 = vpack.c.bf16 %v1119, %v1115
    %v1368 = vpack.c.bf16 %v1124, %v1120
    %v1369 = vpack.c.bf16 %v1125, %v1121
    %v1370 = vpack.c.bf16 %v1126, %v1122
    %v1371 = vpack.c.bf16 %v1127, %v1123
    %v1372 = vpack.c.bf16 %v1132, %v1128
    %v1373 = vpack.c.bf16 %v1133, %v1129
    %v1374 = vpack.c.bf16 %v1134, %v1130
    %v1375 = vpack.c.bf16 %v1135, %v1131
    %v1376 = vpack.c.bf16 %v1140, %v1136
    %v1377 = vpack.c.bf16 %v1141, %v1137
    %v1378 = vpack.c.bf16 %v1142, %v1138
    %v1379 = vpack.c.bf16 %v1143, %v1139
    %v1380 = vpack.c.bf16 %v1148, %v1144
    %v1381 = vpack.c.bf16 %v1149, %v1145
    %v1382 = vpack.c.bf16 %v1150, %v1146
    %v1383 = vpack.c.bf16 %v1151, %v1147
    %v1384 = vpack.c.bf16 %v1156, %v1152
    %v1385 = vpack.c.bf16 %v1157, %v1153
    %v1386 = vpack.c.bf16 %v1158, %v1154
    %v1387 = vpack.c.bf16 %v1159, %v1155
    %v1388 = vpack.c.bf16 %v1164, %v1160
    %v1389 = vpack.c.bf16 %v1165, %v1161
    %v1390 = vpack.c.bf16 %v1166, %v1162
    %v1391 = vpack.c.bf16 %v1167, %v1163
    %v1392 = vpack.c.bf16 %v1172, %v1168
    %v1393 = vpack.c.bf16 %v1173, %v1169
    %v1394 = vpack.c.bf16 %v1174, %v1170
    %v1395 = vpack.c.bf16 %v1175, %v1171
    %v1396 = vpack.c.bf16 %v1180, %v1176
    %v1397 = vpack.c.bf16 %v1181, %v1177
    %v1398 = vpack.c.bf16 %v1182, %v1178
    %v1399 = vpack.c.bf16 %v1183, %v1179
    %v1400 = vpack.c.bf16 %v1188, %v1184
    %v1401 = vpack.c.bf16 %v1189, %v1185
    %v1402 = vpack.c.bf16 %v1190, %v1186
    %v1403 = vpack.c.bf16 %v1191, %v1187
    %v1404 = vpack.c.bf16 %v1196, %v1192
    %v1405 = vpack.c.bf16 %v1197, %v1193
    %v1406 = vpack.c.bf16 %v1198, %v1194
    %v1407 = vpack.c.bf16 %v1199, %v1195
    %v1408 = vpack.c.bf16 %v1204, %v1200
    %v1409 = vpack.c.bf16 %v1205, %v1201
    %v1410 = vpack.c.bf16 %v1206, %v1202
    %v1411 = vpack.c.bf16 %v1207, %v1203
    %v1412 = vpack.c.bf16 %v1212, %v1208
    %v1413 = vpack.c.bf16 %v1213, %v1209
    %v1414 = vpack.c.bf16 %v1214, %v1210
    %v1415 = vpack.c.bf16 %v1215, %v1211
    %v1416 = vpack.c.bf16 %v1220, %v1216
    %v1417 = vpack.c.bf16 %v1221, %v1217
    %v1418 = vpack.c.bf16 %v1222, %v1218
    %v1419 = vpack.c.bf16 %v1223, %v1219
    %v1420 = vpack.c.bf16 %v1228, %v1224
    %v1421 = vpack.c.bf16 %v1229, %v1225
    %v1422 = vpack.c.bf16 %v1230, %v1226
    %v1423 = vpack.c.bf16 %v1231, %v1227
    %v1424 = vpack.c.bf16 %v1236, %v1232
    %v1425 = vpack.c.bf16 %v1237, %v1233
    %v1426 = vpack.c.bf16 %v1238, %v1234
    %v1427 = vpack.c.bf16 %v1239, %v1235
    %v1428 = vpack.c.bf16 %v1244, %v1240
    %v1429 = vpack.c.bf16 %v1245, %v1241
    %v1430 = vpack.c.bf16 %v1246, %v1242
    %v1431 = vpack.c.bf16 %v1247, %v1243
    %v1432 = vpack.c.bf16 %v1252, %v1248
    %v1433 = vpack.c.bf16 %v1253, %v1249
    %v1434 = vpack.c.bf16 %v1254, %v1250
    %v1435 = vpack.c.bf16 %v1255, %v1251
    %v1436 = vpack.c.bf16 %v1260, %v1256
    %v1437 = vpack.c.bf16 %v1261, %v1257
    %v1438 = vpack.c.bf16 %v1262, %v1258
    %v1439 = vpack.c.bf16 %v1263, %v1259
    %v1440 = vpack.c.bf16 %v1268, %v1264
    %v1441 = vpack.c.bf16 %v1269, %v1265
    %v1442 = vpack.c.bf16 %v1270, %v1266
    %v1443 = vpack.c.bf16 %v1271, %v1267
    %v1444 = vpack.c.bf16 %v1276, %v1272
    %v1445 = vpack.c.bf16 %v1277, %v1273
    %v1446 = vpack.c.bf16 %v1278, %v1274
    %v1447 = vpack.c.bf16 %v1279, %v1275
    %v1448 = vpack.c.bf16 %v1284, %v1280
    %v1449 = vpack.c.bf16 %v1285, %v1281
    %v1450 = vpack.c.bf16 %v1286, %v1282
    %v1451 = vpack.c.bf16 %v1287, %v1283
    %v1452 = vpack.c.bf16 %v1292, %v1288
    %v1453 = vpack.c.bf16 %v1293, %v1289
    %v1454 = vpack.c.bf16 %v1294, %v1290
    %v1455 = vpack.c.bf16 %v1295, %v1291
    %v1456 = vpack.c.bf16 %v1300, %v1296
    %v1457 = vpack.c.bf16 %v1301, %v1297
    %v1458 = vpack.c.bf16 %v1302, %v1298
    %v1459 = vpack.c.bf16 %v1303, %v1299
    %v1460 = vpack.c.bf16 %v1308, %v1304
    %v1461 = vpack.c.bf16 %v1309, %v1305
    %v1462 = vpack.c.bf16 %v1310, %v1306
    %v1463 = vpack.c.bf16 %v1311, %v1307
    %v1464 = vpack.c.bf16 %v1316, %v1312
    %v1465 = vpack.c.bf16 %v1317, %v1313
    %v1466 = vpack.c.bf16 %v1318, %v1314
    %v1467 = vpack.c.bf16 %v1319, %v1315
    %v1468 = vpack.c.bf16 %v1324, %v1320
    %v1469 = vpack.c.bf16 %v1325, %v1321
    %v1470 = vpack.c.bf16 %v1326, %v1322
    %v1471 = vpack.c.bf16 %v1327, %v1323
    %v1472 = vpack.c.bf16 %v1332, %v1328
    %v1473 = vpack.c.bf16 %v1333, %v1329
    %v1474 = vpack.c.bf16 %v1334, %v1330
    %v1475 = vpack.c.bf16 %v1335, %v1331
    %v1476 = vpack.c.bf16 %v1340, %v1336
    %v1477 = vpack.c.bf16 %v1341, %v1337
    %v1478 = vpack.c.bf16 %v1342, %v1338
    %v1479 = vpack.c.bf16 %v1343, %v1339
    %v1480 = vpack.c.bf16 %v1348, %v1344
    %v1481 = vpack.c.bf16 %v1349, %v1345
    %v1482 = vpack.c.bf16 %v1350, %v1346
    %v1483 = vpack.c.bf16 %v1351, %v1347
    %v1484 = vpack.c.bf16 %v1356, %v1352
    %v1485 = vpack.c.bf16 %v1357, %v1353
    %v1486 = vpack.c.bf16 %v1358, %v1354
    %v1487 = vpack.c.bf16 %v1359, %v1355
    %v1488 = vld [vmem:[#allocation3] sm:$0xff]
    %v1489 = vld [vmem:[#allocation3 + $0x8] sm:$0xf]
    %v1490 = vld [vmem:[#allocation3 + $0xc] sm:$0xff]
    %v1491 = vld [vmem:[#allocation3 + $0x14] sm:$0xf]
    %v1492 = vld [vmem:[#allocation3 + $0x18] sm:$0xff]
    %v1493 = vld [vmem:[#allocation3 + $0x20] sm:$0xf]
    %v1494 = vld [vmem:[#allocation3 + $0x24] sm:$0xff]
    %v1495 = vld [vmem:[#allocation3 + $0x2c] sm:$0xf]
    %v1496 = vld [vmem:[#allocation3 + $0x30] sm:$0xff]
    %v1497 = vld [vmem:[#allocation3 + $0x38] sm:$0xf]
    %v1498 = vld [vmem:[#allocation3 + $0x3c] sm:$0xff]
    %v1499 = vld [vmem:[#allocation3 + $0x44] sm:$0xf]
    %v1500 = vld [vmem:[#allocation3 + $0x48] sm:$0xff]
    %v1501 = vld [vmem:[#allocation3 + $0x50] sm:$0xf]
    %v1502 = vld [vmem:[#allocation3 + $0x54] sm:$0xff]
    %v1503 = vld [vmem:[#allocation3 + $0x5c] sm:$0xf]
    %v1504 = vld [vmem:[#allocation3 + $0x60] sm:$0xff]
    %v1505 = vld [vmem:[#allocation3 + $0x68] sm:$0xf]
    %v1506 = vld [vmem:[#allocation3 + $0x6c] sm:$0xff]
    %v1507 = vld [vmem:[#allocation3 + $0x74] sm:$0xf]
    %v1508 = vld [vmem:[#allocation3 + $0x78] sm:$0xff]
    %v1509 = vld [vmem:[#allocation3 + $0x80] sm:$0xf]
    %v1510 = vld [vmem:[#allocation3 + $0x84] sm:$0xff]
    %v1511 = vld [vmem:[#allocation3 + $0x8c] sm:$0xf]
    %v1512 = vld [vmem:[#allocation3 + $0x90] sm:$0xff]
    %v1513 = vld [vmem:[#allocation3 + $0x98] sm:$0xf]
    %v1514 = vld [vmem:[#allocation3 + $0x9c] sm:$0xff]
    %v1515 = vld [vmem:[#allocation3 + $0xa4] sm:$0xf]
    %v1516 = vld [vmem:[#allocation3 + $0xa8] sm:$0xff]
    %v1517 = vld [vmem:[#allocation3 + $0xb0] sm:$0xf]
    %v1518 = vld [vmem:[#allocation3 + $0xb4] sm:$0xff]
    %v1519 = vld [vmem:[#allocation3 + $0xbc] sm:$0xf]
    %v1520 = vld [vmem:[#allocation3 + $0xc0] sm:$0xff]
    %v1521 = vld [vmem:[#allocation3 + $0xc8] sm:$0xf]
    %v1522 = vld [vmem:[#allocation3 + $0xcc] sm:$0xff]
    %v1523 = vld [vmem:[#allocation3 + $0xd4] sm:$0xf]
    %v1524 = vld [vmem:[#allocation3 + $0xd8] sm:$0xff]
    %v1525 = vld [vmem:[#allocation3 + $0xe0] sm:$0xf]
    %v1526 = vld [vmem:[#allocation3 + $0xe4] sm:$0xff]
    %v1527 = vld [vmem:[#allocation3 + $0xec] sm:$0xf]
    %v1528 = vld [vmem:[#allocation3 + $0xf0] sm:$0xff]
    %v1529 = vld [vmem:[#allocation3 + $0xf8] sm:$0xf]
    %v1530 = vld [vmem:[#allocation3 + $0xfc] sm:$0xff]
    %v1531 = vld [vmem:[#allocation3 + $0x104] sm:$0xf]
    %v1532 = vld [vmem:[#allocation3 + $0x108] sm:$0xff]
    %v1533 = vld [vmem:[#allocation3 + $0x110] sm:$0xf]
    %v1534 = vld [vmem:[#allocation3 + $0x114] sm:$0xff]
    %v1535 = vld [vmem:[#allocation3 + $0x11c] sm:$0xf]
    %v1536 = vld [vmem:[#allocation3 + $0x120] sm:$0xff]
    %v1537 = vld [vmem:[#allocation3 + $0x128] sm:$0xf]
    %v1538 = vld [vmem:[#allocation3 + $0x12c] sm:$0xff]
    %v1539 = vld [vmem:[#allocation3 + $0x134] sm:$0xf]
    %v1540 = vld [vmem:[#allocation3 + $0x138] sm:$0xff]
    %v1541 = vld [vmem:[#allocation3 + $0x140] sm:$0xf]
    %v1542 = vld [vmem:[#allocation3 + $0x144] sm:$0xff]
    %v1543 = vld [vmem:[#allocation3 + $0x14c] sm:$0xf]
    %v1544 = vld [vmem:[#allocation3 + $0x150] sm:$0xff]
    %v1545 = vld [vmem:[#allocation3 + $0x158] sm:$0xf]
    %v1546 = vld [vmem:[#allocation3 + $0x15c] sm:$0xff]
    %v1547 = vld [vmem:[#allocation3 + $0x164] sm:$0xf]
    %v1548 = vld [vmem:[#allocation3 + $0x168] sm:$0xff]
    %v1549 = vld [vmem:[#allocation3 + $0x170] sm:$0xf]
    %v1550 = vld [vmem:[#allocation3 + $0x174] sm:$0xff]
    %v1551 = vld [vmem:[#allocation3 + $0x17c] sm:$0xf]
    %v1552 = vld [vmem:[#allocation3 + $0x180] sm:$0xff]
    %v1553 = vld [vmem:[#allocation3 + $0x188] sm:$0xf]
    %v1554 = vld [vmem:[#allocation3 + $0x18c] sm:$0xff]
    %v1555 = vld [vmem:[#allocation3 + $0x194] sm:$0xf]
    %v1556 = vld [vmem:[#allocation3 + $0x198] sm:$0xff]
    %v1557 = vld [vmem:[#allocation3 + $0x1a0] sm:$0xf]
    %v1558 = vld [vmem:[#allocation3 + $0x1a4] sm:$0xff]
    %v1559 = vld [vmem:[#allocation3 + $0x1ac] sm:$0xf]
    %v1560 = vld [vmem:[#allocation3 + $0x1b0] sm:$0xff]
    %v1561 = vld [vmem:[#allocation3 + $0x1b8] sm:$0xf]
    %v1562 = vld [vmem:[#allocation3 + $0x1bc] sm:$0xff]
    %v1563 = vld [vmem:[#allocation3 + $0x1c4] sm:$0xf]
    %v1564 = vld [vmem:[#allocation3 + $0x1c8] sm:$0xff]
    %v1565 = vld [vmem:[#allocation3 + $0x1d0] sm:$0xf]
    %v1566 = vld [vmem:[#allocation3 + $0x1d4] sm:$0xff]
    %v1567 = vld [vmem:[#allocation3 + $0x1dc] sm:$0xf]
    %v1568 = vld [vmem:[#allocation3 + $0x1e0] sm:$0xff]
    %v1569 = vld [vmem:[#allocation3 + $0x1e8] sm:$0xf]
    %v1570 = vld [vmem:[#allocation3 + $0x1ec] sm:$0xff]
    %v1571 = vld [vmem:[#allocation3 + $0x1f4] sm:$0xf]
    %v1572 = vld [vmem:[#allocation3 + $0x1f8] sm:$0xff]
    %v1573 = vld [vmem:[#allocation3 + $0x200] sm:$0xf]
    %v1574 = vld [vmem:[#allocation3 + $0x204] sm:$0xff]
    %v1575 = vld [vmem:[#allocation3 + $0x20c] sm:$0xf]
    %v1576 = vld [vmem:[#allocation3 + $0x210] sm:$0xff]
    %v1577 = vld [vmem:[#allocation3 + $0x218] sm:$0xf]
    %v1578 = vld [vmem:[#allocation3 + $0x21c] sm:$0xff]
    %v1579 = vld [vmem:[#allocation3 + $0x224] sm:$0xf]
    %v1580 = vld [vmem:[#allocation3 + $0x228] sm:$0xff]
    %v1581 = vld [vmem:[#allocation3 + $0x230] sm:$0xf]
    %v1582 = vld [vmem:[#allocation3 + $0x234] sm:$0xff]
    %v1583 = vld [vmem:[#allocation3 + $0x23c] sm:$0xf]
    %v1584 = vld [vmem:[#allocation3 + $0x240] sm:$0xff]
    %v1585 = vld [vmem:[#allocation3 + $0x248] sm:$0xf]
    %v1586 = vld [vmem:[#allocation3 + $0x24c] sm:$0xff]
    %v1587 = vld [vmem:[#allocation3 + $0x254] sm:$0xf]
    %v1588 = vld [vmem:[#allocation3 + $0x258] sm:$0xff]
    %v1589 = vld [vmem:[#allocation3 + $0x260] sm:$0xf]
    %v1590 = vld [vmem:[#allocation3 + $0x264] sm:$0xff]
    %v1591 = vld [vmem:[#allocation3 + $0x26c] sm:$0xf]
    %v1592 = vld [vmem:[#allocation3 + $0x270] sm:$0xff]
    %v1593 = vld [vmem:[#allocation3 + $0x278] sm:$0xf]
    %v1594 = vld [vmem:[#allocation3 + $0x27c] sm:$0xff]
    %v1595 = vld [vmem:[#allocation3 + $0x284] sm:$0xf]
    %v1596 = vld [vmem:[#allocation3 + $0x288] sm:$0xff]
    %v1597 = vld [vmem:[#allocation3 + $0x290] sm:$0xf]
    %v1598 = vld [vmem:[#allocation3 + $0x294] sm:$0xff]
    %v1599 = vld [vmem:[#allocation3 + $0x29c] sm:$0xf]
    %v1600 = vld [vmem:[#allocation3 + $0x2a0] sm:$0xff]
    %v1601 = vld [vmem:[#allocation3 + $0x2a8] sm:$0xf]
    %v1602 = vld [vmem:[#allocation3 + $0x2ac] sm:$0xff]
    %v1603 = vld [vmem:[#allocation3 + $0x2b4] sm:$0xf]
    %v1604 = vld [vmem:[#allocation3 + $0x2b8] sm:$0xff]
    %v1605 = vld [vmem:[#allocation3 + $0x2c0] sm:$0xf]
    %v1606 = vld [vmem:[#allocation3 + $0x2c4] sm:$0xff]
    %v1607 = vld [vmem:[#allocation3 + $0x2cc] sm:$0xf]
    %v1608 = vld [vmem:[#allocation3 + $0x2d0] sm:$0xff]
    %v1609 = vld [vmem:[#allocation3 + $0x2d8] sm:$0xf]
    %v1610 = vld [vmem:[#allocation3 + $0x2dc] sm:$0xff]
    %v1611 = vld [vmem:[#allocation3 + $0x2e4] sm:$0xf]
    %v1612 = vld [vmem:[#allocation3 + $0x2e8] sm:$0xff]
    %v1613 = vld [vmem:[#allocation3 + $0x2f0] sm:$0xf]
    %v1614 = vld [vmem:[#allocation3 + $0x2f4] sm:$0xff]
    %v1615 = vld [vmem:[#allocation3 + $0x2fc] sm:$0xf]
    %v1616 = vld [vmem:[%s4] sm:$0xff]
    %v1617 = vld [vmem:[%s4 + $0x8] sm:$0xf]
    %v1618 = vld [vmem:[%s4 + $0xc] sm:$0xff]
    %v1619 = vld [vmem:[%s4 + $0x14] sm:$0xf]
    %v1620 = vld [vmem:[%s4 + $0x18] sm:$0xff]
    %v1621 = vld [vmem:[%s4 + $0x20] sm:$0xf]
    %v1628 = vunpack.c.l.b16 %v1616
    %v1629 = vunpack.c.h.b16 %v1616
    %v1630 = vunpack.c.l.b16 %v1617
    %v1631 = vunpack.c.l.b16 %v1618
    %v1632 = vunpack.c.h.b16 %v1618
    %v1633 = vunpack.c.l.b16 %v1619
    %v1634 = vunpack.c.l.b16 %v1620
    %v1635 = vunpack.c.h.b16 %v1620
    %v1636 = vunpack.c.l.b16 %v1621
    %v1637 = vpack.c.b16 %v1631, %v1628
    %v1638 = vpack.c.b16 %v1632, %v1629
    %v1639 = vpack.c.b16 %v1633, %v1630
    %v1640 = vpack.c.b16 %v1634, %v1634
    %v1641 = vpack.c.b16 %v1635, %v1635
    %v1642 = vpack.c.b16 %v1636, %v1636
    %v1647 = vsel %vm415, %v1640, 0
    %v1650 = vsel %vm415, %v1641, 0
    %v1653 = vsel %vm415, %v1642, 0
    %1655 = vmatpush.bf16.msra.mxu0 0
    %1656 = vmatpush.bf16.msra.mxu0 0
    %1657 = vmatpush.bf16.msra.mxu0 0
    %1658 = vmatpush.bf16.msra.mxu0 0
    %1659 = vmatpush.bf16.msra.mxu0 0
    %1660 = vmatpush.bf16.msra.mxu0 0
    %1661 = vmatpush.bf16.msra.mxu0 %v1647
    %1662 = vmatpush.bf16.msra.mxu0 %v1637
    %1663 = vmatmul.bf16.gmra.mxu0 %v320
    %v1664 = vpop.f32.mrf.mxu0
    %v1665 = vadd.f32 0.0, %v1664
    %v1666 = vpop.f32.mrf.mxu0
    %v1667 = vadd.f32 0.0, %v1666
    %1668 = vmatmul.bf16.gmra.mxu0 %v323
    %v1669 = vpop.f32.mrf.mxu0
    %v1670 = vadd.f32 0.0, %v1669
    %v1671 = vpop.f32.mrf.mxu0
    %v1672 = vadd.f32 0.0, %v1671
    %1673 = vmatmul.bf16.gmra.mxu0 %v326
    %v1674 = vpop.f32.mrf.mxu0
    %v1675 = vadd.f32 0.0, %v1674
    %v1676 = vpop.f32.mrf.mxu0
    %v1677 = vadd.f32 0.0, %v1676
    %1678 = vmatmul.bf16.gmra.mxu0 %v329
    %v1679 = vpop.f32.mrf.mxu0
    %v1680 = vadd.f32 0.0, %v1679
    %v1681 = vpop.f32.mrf.mxu0
    %v1682 = vadd.f32 0.0, %v1681
    %1683 = vmatmul.bf16.gmra.mxu0 %v332
    %v1684 = vpop.f32.mrf.mxu0
    %v1685 = vadd.f32 0.0, %v1684
    %v1686 = vpop.f32.mrf.mxu0
    %v1687 = vadd.f32 0.0, %v1686
    %1688 = vmatmul.bf16.gmra.mxu0 %v335
    %v1689 = vpop.f32.mrf.mxu0
    %v1690 = vadd.f32 0.0, %v1689
    %v1691 = vpop.f32.mrf.mxu0
    %v1692 = vadd.f32 0.0, %v1691
    %1693 = vmatmul.bf16.gmra.mxu0 %v338
    %v1694 = vpop.f32.mrf.mxu0
    %v1695 = vadd.f32 0.0, %v1694
    %v1696 = vpop.f32.mrf.mxu0
    %v1697 = vadd.f32 0.0, %v1696
    %1698 = vmatmul.bf16.gmra.mxu0 %v341
    %v1699 = vpop.f32.mrf.mxu0
    %v1700 = vadd.f32 0.0, %v1699
    %v1701 = vpop.f32.mrf.mxu0
    %v1702 = vadd.f32 0.0, %v1701
    %1703 = vmatmul.bf16.gmra.mxu0 %v344
    %v1704 = vpop.f32.mrf.mxu0
    %v1705 = vadd.f32 0.0, %v1704
    %v1706 = vpop.f32.mrf.mxu0
    %v1707 = vadd.f32 0.0, %v1706
    %1708 = vmatmul.bf16.gmra.mxu0 %v347
    %v1709 = vpop.f32.mrf.mxu0
    %v1710 = vadd.f32 0.0, %v1709
    %v1711 = vpop.f32.mrf.mxu0
    %v1712 = vadd.f32 0.0, %v1711
    %1713 = vmatmul.bf16.gmra.mxu0 %v350
    %v1714 = vpop.f32.mrf.mxu0
    %v1715 = vadd.f32 0.0, %v1714
    %v1716 = vpop.f32.mrf.mxu0
    %v1717 = vadd.f32 0.0, %v1716
    %1718 = vmatmul.bf16.gmra.mxu0 %v353
    %v1719 = vpop.f32.mrf.mxu0
    %v1720 = vadd.f32 0.0, %v1719
    %v1721 = vpop.f32.mrf.mxu0
    %v1722 = vadd.f32 0.0, %v1721
    %1723 = vmatmul.bf16.gmra.mxu0 %v356
    %v1724 = vpop.f32.mrf.mxu0
    %v1725 = vadd.f32 0.0, %v1724
    %v1726 = vpop.f32.mrf.mxu0
    %v1727 = vadd.f32 0.0, %v1726
    %1728 = vmatmul.bf16.gmra.mxu0 %v359
    %v1729 = vpop.f32.mrf.mxu0
    %v1730 = vadd.f32 0.0, %v1729
    %v1731 = vpop.f32.mrf.mxu0
    %v1732 = vadd.f32 0.0, %v1731
    %1733 = vmatmul.bf16.gmra.mxu0 %v362
    %v1734 = vpop.f32.mrf.mxu0
    %v1735 = vadd.f32 0.0, %v1734
    %v1736 = vpop.f32.mrf.mxu0
    %v1737 = vadd.f32 0.0, %v1736
    %1738 = vmatmul.bf16.gmra.mxu0 %v365
    %v1739 = vpop.f32.mrf.mxu0
    %v1740 = vadd.f32 0.0, %v1739
    %v1741 = vpop.f32.mrf.mxu0
    %v1742 = vadd.f32 0.0, %v1741
    %1743 = vmatmul.bf16.gmra.mxu0 %v368
    %v1744 = vpop.f32.mrf.mxu0
    %v1745 = vadd.f32 0.0, %v1744
    %v1746 = vpop.f32.mrf.mxu0
    %v1747 = vadd.f32 0.0, %v1746
    %1748 = vmatmul.bf16.gmra.mxu0 %v371
    %v1749 = vpop.f32.mrf.mxu0
    %v1750 = vadd.f32 0.0, %v1749
    %v1751 = vpop.f32.mrf.mxu0
    %v1752 = vadd.f32 0.0, %v1751
    %1753 = vmatmul.bf16.gmra.mxu0 %v374
    %v1754 = vpop.f32.mrf.mxu0
    %v1755 = vadd.f32 0.0, %v1754
    %v1756 = vpop.f32.mrf.mxu0
    %v1757 = vadd.f32 0.0, %v1756
    %1758 = vmatmul.bf16.gmra.mxu0 %v377
    %v1759 = vpop.f32.mrf.mxu0
    %v1760 = vadd.f32 0.0, %v1759
    %v1761 = vpop.f32.mrf.mxu0
    %v1762 = vadd.f32 0.0, %v1761
    %1763 = vmatmul.bf16.gmra.mxu0 %v380
    %v1764 = vpop.f32.mrf.mxu0
    %v1765 = vadd.f32 0.0, %v1764
    %v1766 = vpop.f32.mrf.mxu0
    %v1767 = vadd.f32 0.0, %v1766
    %1768 = vmatmul.bf16.gmra.mxu0 %v383
    %v1769 = vpop.f32.mrf.mxu0
    %v1770 = vadd.f32 0.0, %v1769
    %v1771 = vpop.f32.mrf.mxu0
    %v1772 = vadd.f32 0.0, %v1771
    %1773 = vmatmul.bf16.gmra.mxu0 %v386
    %v1774 = vpop.f32.mrf.mxu0
    %v1775 = vadd.f32 0.0, %v1774
    %v1776 = vpop.f32.mrf.mxu0
    %v1777 = vadd.f32 0.0, %v1776
    %1778 = vmatmul.bf16.gmra.mxu0 %v389
    %v1779 = vpop.f32.mrf.mxu0
    %v1780 = vadd.f32 0.0, %v1779
    %v1781 = vpop.f32.mrf.mxu0
    %v1782 = vadd.f32 0.0, %v1781
    %1783 = vmatmul.bf16.gmra.mxu0 %v392
    %v1784 = vpop.f32.mrf.mxu0
    %v1785 = vadd.f32 0.0, %v1784
    %v1786 = vpop.f32.mrf.mxu0
    %v1787 = vadd.f32 0.0, %v1786
    %1788 = vmatmul.bf16.gmra.mxu0 %v395
    %v1789 = vpop.f32.mrf.mxu0
    %v1790 = vadd.f32 0.0, %v1789
    %v1791 = vpop.f32.mrf.mxu0
    %v1792 = vadd.f32 0.0, %v1791
    %1793 = vmatmul.bf16.gmra.mxu0 %v398
    %v1794 = vpop.f32.mrf.mxu0
    %v1795 = vadd.f32 0.0, %v1794
    %v1796 = vpop.f32.mrf.mxu0
    %v1797 = vadd.f32 0.0, %v1796
    %1798 = vmatmul.bf16.gmra.mxu0 %v401
    %v1799 = vpop.f32.mrf.mxu0
    %v1800 = vadd.f32 0.0, %v1799
    %v1801 = vpop.f32.mrf.mxu0
    %v1802 = vadd.f32 0.0, %v1801
    %1803 = vmatmul.bf16.gmra.mxu0 %v404
    %v1804 = vpop.f32.mrf.mxu0
    %v1805 = vadd.f32 0.0, %v1804
    %v1806 = vpop.f32.mrf.mxu0
    %v1807 = vadd.f32 0.0, %v1806
    %1808 = vmatmul.bf16.gmra.mxu0 %v407
    %v1809 = vpop.f32.mrf.mxu0
    %v1810 = vadd.f32 0.0, %v1809
    %v1811 = vpop.f32.mrf.mxu0
    %v1812 = vadd.f32 0.0, %v1811
    %1813 = vmatmul.bf16.gmra.mxu0 %v410
    %v1814 = vpop.f32.mrf.mxu0
    %v1815 = vadd.f32 0.0, %v1814
    %v1816 = vpop.f32.mrf.mxu0
    %v1817 = vadd.f32 0.0, %v1816
    %1818 = vmatmul.bf16.gmra.mxu0 %v413
    %v1819 = vpop.f32.mrf.mxu0
    %v1820 = vadd.f32 0.0, %v1819
    %v1821 = vpop.f32.mrf.mxu0
    %v1822 = vadd.f32 0.0, %v1821
    %1823 = vdwg.mxu0
    %1824 = vmatpush.bf16.msra.mxu0 0
    %1825 = vmatpush.bf16.msra.mxu0 0
    %1826 = vmatpush.bf16.msra.mxu0 0
    %1827 = vmatpush.bf16.msra.mxu0 0
    %1828 = vmatpush.bf16.msra.mxu0 0
    %1829 = vmatpush.bf16.msra.mxu0 0
    %1830 = vmatpush.bf16.msra.mxu0 %v1650
    %1831 = vmatpush.bf16.msra.mxu0 %v1638
    %1832 = vmatmul.bf16.gmra.mxu0 %v320
    %v1833 = vpop.f32.mrf.mxu0
    %v1834 = vadd.f32 0.0, %v1833
    %v1835 = vpop.f32.mrf.mxu0
    %v1836 = vadd.f32 0.0, %v1835
    %1837 = vmatmul.bf16.gmra.mxu0 %v323
    %v1838 = vpop.f32.mrf.mxu0
    %v1839 = vadd.f32 0.0, %v1838
    %v1840 = vpop.f32.mrf.mxu0
    %v1841 = vadd.f32 0.0, %v1840
    %1842 = vmatmul.bf16.gmra.mxu0 %v326
    %v1843 = vpop.f32.mrf.mxu0
    %v1844 = vadd.f32 0.0, %v1843
    %v1845 = vpop.f32.mrf.mxu0
    %v1846 = vadd.f32 0.0, %v1845
    %1847 = vmatmul.bf16.gmra.mxu0 %v329
    %v1848 = vpop.f32.mrf.mxu0
    %v1849 = vadd.f32 0.0, %v1848
    %v1850 = vpop.f32.mrf.mxu0
    %v1851 = vadd.f32 0.0, %v1850
    %1852 = vmatmul.bf16.gmra.mxu0 %v332
    %v1853 = vpop.f32.mrf.mxu0
    %v1854 = vadd.f32 0.0, %v1853
    %v1855 = vpop.f32.mrf.mxu0
    %v1856 = vadd.f32 0.0, %v1855
    %1857 = vmatmul.bf16.gmra.mxu0 %v335
    %v1858 = vpop.f32.mrf.mxu0
    %v1859 = vadd.f32 0.0, %v1858
    %v1860 = vpop.f32.mrf.mxu0
    %v1861 = vadd.f32 0.0, %v1860
    %1862 = vmatmul.bf16.gmra.mxu0 %v338
    %v1863 = vpop.f32.mrf.mxu0
    %v1864 = vadd.f32 0.0, %v1863
    %v1865 = vpop.f32.mrf.mxu0
    %v1866 = vadd.f32 0.0, %v1865
    %1867 = vmatmul.bf16.gmra.mxu0 %v341
    %v1868 = vpop.f32.mrf.mxu0
    %v1869 = vadd.f32 0.0, %v1868
    %v1870 = vpop.f32.mrf.mxu0
    %v1871 = vadd.f32 0.0, %v1870
    %1872 = vmatmul.bf16.gmra.mxu0 %v344
    %v1873 = vpop.f32.mrf.mxu0
    %v1874 = vadd.f32 0.0, %v1873
    %v1875 = vpop.f32.mrf.mxu0
    %v1876 = vadd.f32 0.0, %v1875
    %1877 = vmatmul.bf16.gmra.mxu0 %v347
    %v1878 = vpop.f32.mrf.mxu0
    %v1879 = vadd.f32 0.0, %v1878
    %v1880 = vpop.f32.mrf.mxu0
    %v1881 = vadd.f32 0.0, %v1880
    %1882 = vmatmul.bf16.gmra.mxu0 %v350
    %v1883 = vpop.f32.mrf.mxu0
    %v1884 = vadd.f32 0.0, %v1883
    %v1885 = vpop.f32.mrf.mxu0
    %v1886 = vadd.f32 0.0, %v1885
    %1887 = vmatmul.bf16.gmra.mxu0 %v353
    %v1888 = vpop.f32.mrf.mxu0
    %v1889 = vadd.f32 0.0, %v1888
    %v1890 = vpop.f32.mrf.mxu0
    %v1891 = vadd.f32 0.0, %v1890
    %1892 = vmatmul.bf16.gmra.mxu0 %v356
    %v1893 = vpop.f32.mrf.mxu0
    %v1894 = vadd.f32 0.0, %v1893
    %v1895 = vpop.f32.mrf.mxu0
    %v1896 = vadd.f32 0.0, %v1895
    %1897 = vmatmul.bf16.gmra.mxu0 %v359
    %v1898 = vpop.f32.mrf.mxu0
    %v1899 = vadd.f32 0.0, %v1898
    %v1900 = vpop.f32.mrf.mxu0
    %v1901 = vadd.f32 0.0, %v1900
    %1902 = vmatmul.bf16.gmra.mxu0 %v362
    %v1903 = vpop.f32.mrf.mxu0
    %v1904 = vadd.f32 0.0, %v1903
    %v1905 = vpop.f32.mrf.mxu0
    %v1906 = vadd.f32 0.0, %v1905
    %1907 = vmatmul.bf16.gmra.mxu0 %v365
    %v1908 = vpop.f32.mrf.mxu0
    %v1909 = vadd.f32 0.0, %v1908
    %v1910 = vpop.f32.mrf.mxu0
    %v1911 = vadd.f32 0.0, %v1910
    %1912 = vmatmul.bf16.gmra.mxu0 %v368
    %v1913 = vpop.f32.mrf.mxu0
    %v1914 = vadd.f32 0.0, %v1913
    %v1915 = vpop.f32.mrf.mxu0
    %v1916 = vadd.f32 0.0, %v1915
    %1917 = vmatmul.bf16.gmra.mxu0 %v371
    %v1918 = vpop.f32.mrf.mxu0
    %v1919 = vadd.f32 0.0, %v1918
    %v1920 = vpop.f32.mrf.mxu0
    %v1921 = vadd.f32 0.0, %v1920
    %1922 = vmatmul.bf16.gmra.mxu0 %v374
    %v1923 = vpop.f32.mrf.mxu0
    %v1924 = vadd.f32 0.0, %v1923
    %v1925 = vpop.f32.mrf.mxu0
    %v1926 = vadd.f32 0.0, %v1925
    %1927 = vmatmul.bf16.gmra.mxu0 %v377
    %v1928 = vpop.f32.mrf.mxu0
    %v1929 = vadd.f32 0.0, %v1928
    %v1930 = vpop.f32.mrf.mxu0
    %v1931 = vadd.f32 0.0, %v1930
    %1932 = vmatmul.bf16.gmra.mxu0 %v380
    %v1933 = vpop.f32.mrf.mxu0
    %v1934 = vadd.f32 0.0, %v1933
    %v1935 = vpop.f32.mrf.mxu0
    %v1936 = vadd.f32 0.0, %v1935
    %1937 = vmatmul.bf16.gmra.mxu0 %v383
    %v1938 = vpop.f32.mrf.mxu0
    %v1939 = vadd.f32 0.0, %v1938
    %v1940 = vpop.f32.mrf.mxu0
    %v1941 = vadd.f32 0.0, %v1940
    %1942 = vmatmul.bf16.gmra.mxu0 %v386
    %v1943 = vpop.f32.mrf.mxu0
    %v1944 = vadd.f32 0.0, %v1943
    %v1945 = vpop.f32.mrf.mxu0
    %v1946 = vadd.f32 0.0, %v1945
    %1947 = vmatmul.bf16.gmra.mxu0 %v389
    %v1948 = vpop.f32.mrf.mxu0
    %v1949 = vadd.f32 0.0, %v1948
    %v1950 = vpop.f32.mrf.mxu0
    %v1951 = vadd.f32 0.0, %v1950
    %1952 = vmatmul.bf16.gmra.mxu0 %v392
    %v1953 = vpop.f32.mrf.mxu0
    %v1954 = vadd.f32 0.0, %v1953
    %v1955 = vpop.f32.mrf.mxu0
    %v1956 = vadd.f32 0.0, %v1955
    %1957 = vmatmul.bf16.gmra.mxu0 %v395
    %v1958 = vpop.f32.mrf.mxu0
    %v1959 = vadd.f32 0.0, %v1958
    %v1960 = vpop.f32.mrf.mxu0
    %v1961 = vadd.f32 0.0, %v1960
    %1962 = vmatmul.bf16.gmra.mxu0 %v398
    %v1963 = vpop.f32.mrf.mxu0
    %v1964 = vadd.f32 0.0, %v1963
    %v1965 = vpop.f32.mrf.mxu0
    %v1966 = vadd.f32 0.0, %v1965
    %1967 = vmatmul.bf16.gmra.mxu0 %v401
    %v1968 = vpop.f32.mrf.mxu0
    %v1969 = vadd.f32 0.0, %v1968
    %v1970 = vpop.f32.mrf.mxu0
    %v1971 = vadd.f32 0.0, %v1970
    %1972 = vmatmul.bf16.gmra.mxu0 %v404
    %v1973 = vpop.f32.mrf.mxu0
    %v1974 = vadd.f32 0.0, %v1973
    %v1975 = vpop.f32.mrf.mxu0
    %v1976 = vadd.f32 0.0, %v1975
    %1977 = vmatmul.bf16.gmra.mxu0 %v407
    %v1978 = vpop.f32.mrf.mxu0
    %v1979 = vadd.f32 0.0, %v1978
    %v1980 = vpop.f32.mrf.mxu0
    %v1981 = vadd.f32 0.0, %v1980
    %1982 = vmatmul.bf16.gmra.mxu0 %v410
    %v1983 = vpop.f32.mrf.mxu0
    %v1984 = vadd.f32 0.0, %v1983
    %v1985 = vpop.f32.mrf.mxu0
    %v1986 = vadd.f32 0.0, %v1985
    %1987 = vmatmul.bf16.gmra.mxu0 %v413
    %v1988 = vpop.f32.mrf.mxu0
    %v1989 = vadd.f32 0.0, %v1988
    %v1990 = vpop.f32.mrf.mxu0
    %v1991 = vadd.f32 0.0, %v1990
    %1992 = vdwg.mxu0
    %1993 = vmatpush.bf16.msra.mxu0 0
    %1994 = vmatpush.bf16.msra.mxu0 0
    %1995 = vmatpush.bf16.msra.mxu0 0
    %1996 = vmatpush.bf16.msra.mxu0 0
    %1997 = vmatpush.bf16.msra.mxu0 0
    %1998 = vmatpush.bf16.msra.mxu0 0
    %1999 = vmatpush.bf16.msra.mxu0 %v1653
    %2000 = vmatpush.bf16.msra.mxu0 %v1639
    %2001 = vmatmul.bf16.gmra.mxu0 %v320
    %v2002 = vpop.f32.mrf.mxu0
    %v2003 = vadd.f32 0.0, %v2002
    %v2004 = vpop.f32.mrf.mxu0
    %v2005 = vadd.f32 0.0, %v2004
    %2006 = vmatmul.bf16.gmra.mxu0 %v323
    %v2007 = vpop.f32.mrf.mxu0
    %v2008 = vadd.f32 0.0, %v2007
    %v2009 = vpop.f32.mrf.mxu0
    %v2010 = vadd.f32 0.0, %v2009
    %2011 = vmatmul.bf16.gmra.mxu0 %v326
    %v2012 = vpop.f32.mrf.mxu0
    %v2013 = vadd.f32 0.0, %v2012
    %v2014 = vpop.f32.mrf.mxu0
    %v2015 = vadd.f32 0.0, %v2014
    %2016 = vmatmul.bf16.gmra.mxu0 %v329
    %v2017 = vpop.f32.mrf.mxu0
    %v2018 = vadd.f32 0.0, %v2017
    %v2019 = vpop.f32.mrf.mxu0
    %v2020 = vadd.f32 0.0, %v2019
    %2021 = vmatmul.bf16.gmra.mxu0 %v332
    %v2022 = vpop.f32.mrf.mxu0
    %v2023 = vadd.f32 0.0, %v2022
    %v2024 = vpop.f32.mrf.mxu0
    %v2025 = vadd.f32 0.0, %v2024
    %2026 = vmatmul.bf16.gmra.mxu0 %v335
    %v2027 = vpop.f32.mrf.mxu0
    %v2028 = vadd.f32 0.0, %v2027
    %v2029 = vpop.f32.mrf.mxu0
    %v2030 = vadd.f32 0.0, %v2029
    %2031 = vmatmul.bf16.gmra.mxu0 %v338
    %v2032 = vpop.f32.mrf.mxu0
    %v2033 = vadd.f32 0.0, %v2032
    %v2034 = vpop.f32.mrf.mxu0
    %v2035 = vadd.f32 0.0, %v2034
    %2036 = vmatmul.bf16.gmra.mxu0 %v341
    %v2037 = vpop.f32.mrf.mxu0
    %v2038 = vadd.f32 0.0, %v2037
    %v2039 = vpop.f32.mrf.mxu0
    %v2040 = vadd.f32 0.0, %v2039
    %2041 = vmatmul.bf16.gmra.mxu0 %v344
    %v2042 = vpop.f32.mrf.mxu0
    %v2043 = vadd.f32 0.0, %v2042
    %v2044 = vpop.f32.mrf.mxu0
    %v2045 = vadd.f32 0.0, %v2044
    %2046 = vmatmul.bf16.gmra.mxu0 %v347
    %v2047 = vpop.f32.mrf.mxu0
    %v2048 = vadd.f32 0.0, %v2047
    %v2049 = vpop.f32.mrf.mxu0
    %v2050 = vadd.f32 0.0, %v2049
    %2051 = vmatmul.bf16.gmra.mxu0 %v350
    %v2052 = vpop.f32.mrf.mxu0
    %v2053 = vadd.f32 0.0, %v2052
    %v2054 = vpop.f32.mrf.mxu0
    %v2055 = vadd.f32 0.0, %v2054
    %2056 = vmatmul.bf16.gmra.mxu0 %v353
    %v2057 = vpop.f32.mrf.mxu0
    %v2058 = vadd.f32 0.0, %v2057
    %v2059 = vpop.f32.mrf.mxu0
    %v2060 = vadd.f32 0.0, %v2059
    %2061 = vmatmul.bf16.gmra.mxu0 %v356
    %v2062 = vpop.f32.mrf.mxu0
    %v2063 = vadd.f32 0.0, %v2062
    %v2064 = vpop.f32.mrf.mxu0
    %v2065 = vadd.f32 0.0, %v2064
    %2066 = vmatmul.bf16.gmra.mxu0 %v359
    %v2067 = vpop.f32.mrf.mxu0
    %v2068 = vadd.f32 0.0, %v2067
    %v2069 = vpop.f32.mrf.mxu0
    %v2070 = vadd.f32 0.0, %v2069
    %2071 = vmatmul.bf16.gmra.mxu0 %v362
    %v2072 = vpop.f32.mrf.mxu0
    %v2073 = vadd.f32 0.0, %v2072
    %v2074 = vpop.f32.mrf.mxu0
    %v2075 = vadd.f32 0.0, %v2074
    %2076 = vmatmul.bf16.gmra.mxu0 %v365
    %v2077 = vpop.f32.mrf.mxu0
    %v2078 = vadd.f32 0.0, %v2077
    %v2079 = vpop.f32.mrf.mxu0
    %v2080 = vadd.f32 0.0, %v2079
    %2081 = vmatmul.bf16.gmra.mxu0 %v368
    %v2082 = vpop.f32.mrf.mxu0
    %v2083 = vadd.f32 0.0, %v2082
    %v2084 = vpop.f32.mrf.mxu0
    %v2085 = vadd.f32 0.0, %v2084
    %2086 = vmatmul.bf16.gmra.mxu0 %v371
    %v2087 = vpop.f32.mrf.mxu0
    %v2088 = vadd.f32 0.0, %v2087
    %v2089 = vpop.f32.mrf.mxu0
    %v2090 = vadd.f32 0.0, %v2089
    %2091 = vmatmul.bf16.gmra.mxu0 %v374
    %v2092 = vpop.f32.mrf.mxu0
    %v2093 = vadd.f32 0.0, %v2092
    %v2094 = vpop.f32.mrf.mxu0
    %v2095 = vadd.f32 0.0, %v2094
    %2096 = vmatmul.bf16.gmra.mxu0 %v377
    %v2097 = vpop.f32.mrf.mxu0
    %v2098 = vadd.f32 0.0, %v2097
    %v2099 = vpop.f32.mrf.mxu0
    %v2100 = vadd.f32 0.0, %v2099
    %2101 = vmatmul.bf16.gmra.mxu0 %v380
    %v2102 = vpop.f32.mrf.mxu0
    %v2103 = vadd.f32 0.0, %v2102
    %v2104 = vpop.f32.mrf.mxu0
    %v2105 = vadd.f32 0.0, %v2104
    %2106 = vmatmul.bf16.gmra.mxu0 %v383
    %v2107 = vpop.f32.mrf.mxu0
    %v2108 = vadd.f32 0.0, %v2107
    %v2109 = vpop.f32.mrf.mxu0
    %v2110 = vadd.f32 0.0, %v2109
    %2111 = vmatmul.bf16.gmra.mxu0 %v386
    %v2112 = vpop.f32.mrf.mxu0
    %v2113 = vadd.f32 0.0, %v2112
    %v2114 = vpop.f32.mrf.mxu0
    %v2115 = vadd.f32 0.0, %v2114
    %2116 = vmatmul.bf16.gmra.mxu0 %v389
    %v2117 = vpop.f32.mrf.mxu0
    %v2118 = vadd.f32 0.0, %v2117
    %v2119 = vpop.f32.mrf.mxu0
    %v2120 = vadd.f32 0.0, %v2119
    %2121 = vmatmul.bf16.gmra.mxu0 %v392
    %v2122 = vpop.f32.mrf.mxu0
    %v2123 = vadd.f32 0.0, %v2122
    %v2124 = vpop.f32.mrf.mxu0
    %v2125 = vadd.f32 0.0, %v2124
    %2126 = vmatmul.bf16.gmra.mxu0 %v395
    %v2127 = vpop.f32.mrf.mxu0
    %v2128 = vadd.f32 0.0, %v2127
    %v2129 = vpop.f32.mrf.mxu0
    %v2130 = vadd.f32 0.0, %v2129
    %2131 = vmatmul.bf16.gmra.mxu0 %v398
    %v2132 = vpop.f32.mrf.mxu0
    %v2133 = vadd.f32 0.0, %v2132
    %v2134 = vpop.f32.mrf.mxu0
    %v2135 = vadd.f32 0.0, %v2134
    %2136 = vmatmul.bf16.gmra.mxu0 %v401
    %v2137 = vpop.f32.mrf.mxu0
    %v2138 = vadd.f32 0.0, %v2137
    %v2139 = vpop.f32.mrf.mxu0
    %v2140 = vadd.f32 0.0, %v2139
    %2141 = vmatmul.bf16.gmra.mxu0 %v404
    %v2142 = vpop.f32.mrf.mxu0
    %v2143 = vadd.f32 0.0, %v2142
    %v2144 = vpop.f32.mrf.mxu0
    %v2145 = vadd.f32 0.0, %v2144
    %2146 = vmatmul.bf16.gmra.mxu0 %v407
    %v2147 = vpop.f32.mrf.mxu0
    %v2148 = vadd.f32 0.0, %v2147
    %v2149 = vpop.f32.mrf.mxu0
    %v2150 = vadd.f32 0.0, %v2149
    %2151 = vmatmul.bf16.gmra.mxu0 %v410
    %v2152 = vpop.f32.mrf.mxu0
    %v2153 = vadd.f32 0.0, %v2152
    %v2154 = vpop.f32.mrf.mxu0
    %v2155 = vadd.f32 0.0, %v2154
    %2156 = vmatmul.bf16.gmra.mxu0 %v413
    %v2157 = vpop.f32.mrf.mxu0
    %v2158 = vadd.f32 0.0, %v2157
    %v2159 = vpop.f32.mrf.mxu0
    %v2160 = vadd.f32 0.0, %v2159
    %2161 = vdwg.mxu0
    %v2290 = vunpack.c.l.b16 %v1488
    %v2291 = vunpack.c.h.b16 %v1488
    %v2292 = vunpack.c.l.b16 %v1489
    %v2293 = vunpack.c.l.b16 %v1490
    %v2294 = vunpack.c.h.b16 %v1490
    %v2295 = vunpack.c.l.b16 %v1491
    %v2296 = vunpack.c.l.b16 %v1492
    %v2297 = vunpack.c.h.b16 %v1492
    %v2298 = vunpack.c.l.b16 %v1493
    %v2299 = vunpack.c.l.b16 %v1494
    %v2300 = vunpack.c.h.b16 %v1494
    %v2301 = vunpack.c.l.b16 %v1495
    %v2302 = vunpack.c.l.b16 %v1496
    %v2303 = vunpack.c.h.b16 %v1496
    %v2304 = vunpack.c.l.b16 %v1497
    %v2305 = vunpack.c.l.b16 %v1498
    %v2306 = vunpack.c.h.b16 %v1498
    %v2307 = vunpack.c.l.b16 %v1499
    %v2308 = vunpack.c.l.b16 %v1500
    %v2309 = vunpack.c.h.b16 %v1500
    %v2310 = vunpack.c.l.b16 %v1501
    %v2311 = vunpack.c.l.b16 %v1502
    %v2312 = vunpack.c.h.b16 %v1502
    %v2313 = vunpack.c.l.b16 %v1503
    %v2314 = vunpack.c.l.b16 %v1504
    %v2315 = vunpack.c.h.b16 %v1504
    %v2316 = vunpack.c.l.b16 %v1505
    %v2317 = vunpack.c.l.b16 %v1506
    %v2318 = vunpack.c.h.b16 %v1506
    %v2319 = vunpack.c.l.b16 %v1507
    %v2320 = vunpack.c.l.b16 %v1508
    %v2321 = vunpack.c.h.b16 %v1508
    %v2322 = vunpack.c.l.b16 %v1509
    %v2323 = vunpack.c.l.b16 %v1510
    %v2324 = vunpack.c.h.b16 %v1510
    %v2325 = vunpack.c.l.b16 %v1511
    %v2326 = vunpack.c.l.b16 %v1512
    %v2327 = vunpack.c.h.b16 %v1512
    %v2328 = vunpack.c.l.b16 %v1513
    %v2329 = vunpack.c.l.b16 %v1514
    %v2330 = vunpack.c.h.b16 %v1514
    %v2331 = vunpack.c.l.b16 %v1515
    %v2332 = vunpack.c.l.b16 %v1516
    %v2333 = vunpack.c.h.b16 %v1516
    %v2334 = vunpack.c.l.b16 %v1517
    %v2335 = vunpack.c.l.b16 %v1518
    %v2336 = vunpack.c.h.b16 %v1518
    %v2337 = vunpack.c.l.b16 %v1519
    %v2338 = vunpack.c.l.b16 %v1520
    %v2339 = vunpack.c.h.b16 %v1520
    %v2340 = vunpack.c.l.b16 %v1521
    %v2341 = vunpack.c.l.b16 %v1522
    %v2342 = vunpack.c.h.b16 %v1522
    %v2343 = vunpack.c.l.b16 %v1523
    %v2344 = vunpack.c.l.b16 %v1524
    %v2345 = vunpack.c.h.b16 %v1524
    %v2346 = vunpack.c.l.b16 %v1525
    %v2347 = vunpack.c.l.b16 %v1526
    %v2348 = vunpack.c.h.b16 %v1526
    %v2349 = vunpack.c.l.b16 %v1527
    %v2350 = vunpack.c.l.b16 %v1528
    %v2351 = vunpack.c.h.b16 %v1528
    %v2352 = vunpack.c.l.b16 %v1529
    %v2353 = vunpack.c.l.b16 %v1530
    %v2354 = vunpack.c.h.b16 %v1530
    %v2355 = vunpack.c.l.b16 %v1531
    %v2356 = vunpack.c.l.b16 %v1532
    %v2357 = vunpack.c.h.b16 %v1532
    %v2358 = vunpack.c.l.b16 %v1533
    %v2359 = vunpack.c.l.b16 %v1534
    %v2360 = vunpack.c.h.b16 %v1534
    %v2361 = vunpack.c.l.b16 %v1535
    %v2362 = vunpack.c.l.b16 %v1536
    %v2363 = vunpack.c.h.b16 %v1536
    %v2364 = vunpack.c.l.b16 %v1537
    %v2365 = vunpack.c.l.b16 %v1538
    %v2366 = vunpack.c.h.b16 %v1538
    %v2367 = vunpack.c.l.b16 %v1539
    %v2368 = vunpack.c.l.b16 %v1540
    %v2369 = vunpack.c.h.b16 %v1540
    %v2370 = vunpack.c.l.b16 %v1541
    %v2371 = vunpack.c.l.b16 %v1542
    %v2372 = vunpack.c.h.b16 %v1542
    %v2373 = vunpack.c.l.b16 %v1543
    %v2374 = vunpack.c.l.b16 %v1544
    %v2375 = vunpack.c.h.b16 %v1544
    %v2376 = vunpack.c.l.b16 %v1545
    %v2377 = vunpack.c.l.b16 %v1546
    %v2378 = vunpack.c.h.b16 %v1546
    %v2379 = vunpack.c.l.b16 %v1547
    %v2380 = vunpack.c.l.b16 %v1548
    %v2381 = vunpack.c.h.b16 %v1548
    %v2382 = vunpack.c.l.b16 %v1549
    %v2383 = vunpack.c.l.b16 %v1550
    %v2384 = vunpack.c.h.b16 %v1550
    %v2385 = vunpack.c.l.b16 %v1551
    %v2386 = vunpack.c.l.b16 %v1552
    %v2387 = vunpack.c.h.b16 %v1552
    %v2388 = vunpack.c.l.b16 %v1553
    %v2389 = vunpack.c.l.b16 %v1554
    %v2390 = vunpack.c.h.b16 %v1554
    %v2391 = vunpack.c.l.b16 %v1555
    %v2392 = vunpack.c.l.b16 %v1556
    %v2393 = vunpack.c.h.b16 %v1556
    %v2394 = vunpack.c.l.b16 %v1557
    %v2395 = vunpack.c.l.b16 %v1558
    %v2396 = vunpack.c.h.b16 %v1558
    %v2397 = vunpack.c.l.b16 %v1559
    %v2398 = vunpack.c.l.b16 %v1560
    %v2399 = vunpack.c.h.b16 %v1560
    %v2400 = vunpack.c.l.b16 %v1561
    %v2401 = vunpack.c.l.b16 %v1562
    %v2402 = vunpack.c.h.b16 %v1562
    %v2403 = vunpack.c.l.b16 %v1563
    %v2404 = vunpack.c.l.b16 %v1564
    %v2405 = vunpack.c.h.b16 %v1564
    %v2406 = vunpack.c.l.b16 %v1565
    %v2407 = vunpack.c.l.b16 %v1566
    %v2408 = vunpack.c.h.b16 %v1566
    %v2409 = vunpack.c.l.b16 %v1567
    %v2410 = vunpack.c.l.b16 %v1568
    %v2411 = vunpack.c.h.b16 %v1568
    %v2412 = vunpack.c.l.b16 %v1569
    %v2413 = vunpack.c.l.b16 %v1570
    %v2414 = vunpack.c.h.b16 %v1570
    %v2415 = vunpack.c.l.b16 %v1571
    %v2416 = vunpack.c.l.b16 %v1572
    %v2417 = vunpack.c.h.b16 %v1572
    %v2418 = vunpack.c.l.b16 %v1573
    %v2419 = vunpack.c.l.b16 %v1574
    %v2420 = vunpack.c.h.b16 %v1574
    %v2421 = vunpack.c.l.b16 %v1575
    %v2422 = vunpack.c.l.b16 %v1576
    %v2423 = vunpack.c.h.b16 %v1576
    %v2424 = vunpack.c.l.b16 %v1577
    %v2425 = vunpack.c.l.b16 %v1578
    %v2426 = vunpack.c.h.b16 %v1578
    %v2427 = vunpack.c.l.b16 %v1579
    %v2428 = vunpack.c.l.b16 %v1580
    %v2429 = vunpack.c.h.b16 %v1580
    %v2430 = vunpack.c.l.b16 %v1581
    %v2431 = vunpack.c.l.b16 %v1582
    %v2432 = vunpack.c.h.b16 %v1582
    %v2433 = vunpack.c.l.b16 %v1583
    %v2434 = vunpack.c.l.b16 %v1584
    %v2435 = vunpack.c.h.b16 %v1584
    %v2436 = vunpack.c.l.b16 %v1585
    %v2437 = vunpack.c.l.b16 %v1586
    %v2438 = vunpack.c.h.b16 %v1586
    %v2439 = vunpack.c.l.b16 %v1587
    %v2440 = vunpack.c.l.b16 %v1588
    %v2441 = vunpack.c.h.b16 %v1588
    %v2442 = vunpack.c.l.b16 %v1589
    %v2443 = vunpack.c.l.b16 %v1590
    %v2444 = vunpack.c.h.b16 %v1590
    %v2445 = vunpack.c.l.b16 %v1591
    %v2446 = vunpack.c.l.b16 %v1592
    %v2447 = vunpack.c.h.b16 %v1592
    %v2448 = vunpack.c.l.b16 %v1593
    %v2449 = vunpack.c.l.b16 %v1594
    %v2450 = vunpack.c.h.b16 %v1594
    %v2451 = vunpack.c.l.b16 %v1595
    %v2452 = vunpack.c.l.b16 %v1596
    %v2453 = vunpack.c.h.b16 %v1596
    %v2454 = vunpack.c.l.b16 %v1597
    %v2455 = vunpack.c.l.b16 %v1598
    %v2456 = vunpack.c.h.b16 %v1598
    %v2457 = vunpack.c.l.b16 %v1599
    %v2458 = vunpack.c.l.b16 %v1600
    %v2459 = vunpack.c.h.b16 %v1600
    %v2460 = vunpack.c.l.b16 %v1601
    %v2461 = vunpack.c.l.b16 %v1602
    %v2462 = vunpack.c.h.b16 %v1602
    %v2463 = vunpack.c.l.b16 %v1603
    %v2464 = vunpack.c.l.b16 %v1604
    %v2465 = vunpack.c.h.b16 %v1604
    %v2466 = vunpack.c.l.b16 %v1605
    %v2467 = vunpack.c.l.b16 %v1606
    %v2468 = vunpack.c.h.b16 %v1606
    %v2469 = vunpack.c.l.b16 %v1607
    %v2470 = vunpack.c.l.b16 %v1608
    %v2471 = vunpack.c.h.b16 %v1608
    %v2472 = vunpack.c.l.b16 %v1609
    %v2473 = vunpack.c.l.b16 %v1610
    %v2474 = vunpack.c.h.b16 %v1610
    %v2475 = vunpack.c.l.b16 %v1611
    %v2476 = vunpack.c.l.b16 %v1612
    %v2477 = vunpack.c.h.b16 %v1612
    %v2478 = vunpack.c.l.b16 %v1613
    %v2479 = vunpack.c.l.b16 %v1614
    %v2480 = vunpack.c.h.b16 %v1614
    %v2481 = vunpack.c.l.b16 %v1615
    %v2482 = vpack.c.b16 %v2293, %v2290
    %v2483 = vpack.c.b16 %v2294, %v2291
    %v2484 = vpack.c.b16 %v2295, %v2292
    %v2485 = vpack.c.b16 %v2299, %v2296
    %v2486 = vpack.c.b16 %v2300, %v2297
    %v2487 = vpack.c.b16 %v2301, %v2298
    %v2488 = vpack.c.b16 %v2305, %v2302
    %v2489 = vpack.c.b16 %v2306, %v2303
    %v2490 = vpack.c.b16 %v2307, %v2304
    %v2491 = vpack.c.b16 %v2311, %v2308
    %v2492 = vpack.c.b16 %v2312, %v2309
    %v2493 = vpack.c.b16 %v2313, %v2310
    %v2494 = vpack.c.b16 %v2317, %v2314
    %v2495 = vpack.c.b16 %v2318, %v2315
    %v2496 = vpack.c.b16 %v2319, %v2316
    %v2497 = vpack.c.b16 %v2323, %v2320
    %v2498 = vpack.c.b16 %v2324, %v2321
    %v2499 = vpack.c.b16 %v2325, %v2322
    %v2500 = vpack.c.b16 %v2329, %v2326
    %v2501 = vpack.c.b16 %v2330, %v2327
    %v2502 = vpack.c.b16 %v2331, %v2328
    %v2503 = vpack.c.b16 %v2335, %v2332
    %v2504 = vpack.c.b16 %v2336, %v2333
    %v2505 = vpack.c.b16 %v2337, %v2334
    %v2506 = vpack.c.b16 %v2341, %v2338
    %v2507 = vpack.c.b16 %v2342, %v2339
    %v2508 = vpack.c.b16 %v2343, %v2340
    %v2509 = vpack.c.b16 %v2347, %v2344
    %v2510 = vpack.c.b16 %v2348, %v2345
    %v2511 = vpack.c.b16 %v2349, %v2346
    %v2512 = vpack.c.b16 %v2353, %v2350
    %v2513 = vpack.c.b16 %v2354, %v2351
    %v2514 = vpack.c.b16 %v2355, %v2352
    %v2515 = vpack.c.b16 %v2359, %v2356
    %v2516 = vpack.c.b16 %v2360, %v2357
    %v2517 = vpack.c.b16 %v2361, %v2358
    %v2518 = vpack.c.b16 %v2365, %v2362
    %v2519 = vpack.c.b16 %v2366, %v2363
    %v2520 = vpack.c.b16 %v2367, %v2364
    %v2521 = vpack.c.b16 %v2371, %v2368
    %v2522 = vpack.c.b16 %v2372, %v2369
    %v2523 = vpack.c.b16 %v2373, %v2370
    %v2524 = vpack.c.b16 %v2377, %v2374
    %v2525 = vpack.c.b16 %v2378, %v2375
    %v2526 = vpack.c.b16 %v2379, %v2376
    %v2527 = vpack.c.b16 %v2383, %v2380
    %v2528 = vpack.c.b16 %v2384, %v2381
    %v2529 = vpack.c.b16 %v2385, %v2382
    %v2530 = vpack.c.b16 %v2389, %v2386
    %v2531 = vpack.c.b16 %v2390, %v2387
    %v2532 = vpack.c.b16 %v2391, %v2388
    %v2533 = vpack.c.b16 %v2395, %v2392
    %v2534 = vpack.c.b16 %v2396, %v2393
    %v2535 = vpack.c.b16 %v2397, %v2394
    %v2536 = vpack.c.b16 %v2401, %v2398
    %v2537 = vpack.c.b16 %v2402, %v2399
    %v2538 = vpack.c.b16 %v2403, %v2400
    %v2539 = vpack.c.b16 %v2407, %v2404
    %v2540 = vpack.c.b16 %v2408, %v2405
    %v2541 = vpack.c.b16 %v2409, %v2406
    %v2542 = vpack.c.b16 %v2413, %v2410
    %v2543 = vpack.c.b16 %v2414, %v2411
    %v2544 = vpack.c.b16 %v2415, %v2412
    %v2545 = vpack.c.b16 %v2419, %v2416
    %v2546 = vpack.c.b16 %v2420, %v2417
    %v2547 = vpack.c.b16 %v2421, %v2418
    %v2548 = vpack.c.b16 %v2425, %v2422
    %v2549 = vpack.c.b16 %v2426, %v2423
    %v2550 = vpack.c.b16 %v2427, %v2424
    %v2551 = vpack.c.b16 %v2431, %v2428
    %v2552 = vpack.c.b16 %v2432, %v2429
    %v2553 = vpack.c.b16 %v2433, %v2430
    %v2554 = vpack.c.b16 %v2437, %v2434
    %v2555 = vpack.c.b16 %v2438, %v2435
    %v2556 = vpack.c.b16 %v2439, %v2436
    %v2557 = vpack.c.b16 %v2443, %v2440
    %v2558 = vpack.c.b16 %v2444, %v2441
    %v2559 = vpack.c.b16 %v2445, %v2442
    %v2560 = vpack.c.b16 %v2449, %v2446
    %v2561 = vpack.c.b16 %v2450, %v2447
    %v2562 = vpack.c.b16 %v2451, %v2448
    %v2563 = vpack.c.b16 %v2455, %v2452
    %v2564 = vpack.c.b16 %v2456, %v2453
    %v2565 = vpack.c.b16 %v2457, %v2454
    %v2566 = vpack.c.b16 %v2461, %v2458
    %v2567 = vpack.c.b16 %v2462, %v2459
    %v2568 = vpack.c.b16 %v2463, %v2460
    %v2569 = vpack.c.b16 %v2467, %v2464
    %v2570 = vpack.c.b16 %v2468, %v2465
    %v2571 = vpack.c.b16 %v2469, %v2466
    %v2572 = vpack.c.b16 %v2473, %v2470
    %v2573 = vpack.c.b16 %v2474, %v2471
    %v2574 = vpack.c.b16 %v2475, %v2472
    %v2575 = vpack.c.b16 %v2479, %v2476
    %v2576 = vpack.c.b16 %v2480, %v2477
    %v2577 = vpack.c.b16 %v2481, %v2478
    %2674 = vmatpush.bf16.msra.mxu0 %v2503
    %2675 = vmatpush.bf16.msra.mxu0 %v2500
    %2676 = vmatpush.bf16.msra.mxu0 %v2497
    %2677 = vmatpush.bf16.msra.mxu0 %v2494
    %2678 = vmatpush.bf16.msra.mxu0 %v2491
    %2679 = vmatpush.bf16.msra.mxu0 %v2488
    %2680 = vmatpush.bf16.msra.mxu0 %v2485
    %2681 = vmatpush.bf16.msra.mxu0 %v2482
    %2682 = vmatmul.bf16.gmra.mxu0 %v1360
    %v2683 = vpop.f32.mrf.mxu0
    %v2684 = vadd.f32 %v1665, %v2683
    %v2685 = vpop.f32.mrf.mxu0
    %v2686 = vadd.f32 %v1667, %v2685
    %2687 = vmatmul.bf16.gmra.mxu0 %v1364
    %v2688 = vpop.f32.mrf.mxu0
    %v2689 = vadd.f32 %v1670, %v2688
    %v2690 = vpop.f32.mrf.mxu0
    %v2691 = vadd.f32 %v1672, %v2690
    %2692 = vmatmul.bf16.gmra.mxu0 %v1368
    %v2693 = vpop.f32.mrf.mxu0
    %v2694 = vadd.f32 %v1675, %v2693
    %v2695 = vpop.f32.mrf.mxu0
    %v2696 = vadd.f32 %v1677, %v2695
    %2697 = vmatmul.bf16.gmra.mxu0 %v1372
    %v2698 = vpop.f32.mrf.mxu0
    %v2699 = vadd.f32 %v1680, %v2698
    %v2700 = vpop.f32.mrf.mxu0
    %v2701 = vadd.f32 %v1682, %v2700
    %2702 = vmatmul.bf16.gmra.mxu0 %v1376
    %v2703 = vpop.f32.mrf.mxu0
    %v2704 = vadd.f32 %v1685, %v2703
    %v2705 = vpop.f32.mrf.mxu0
    %v2706 = vadd.f32 %v1687, %v2705
    %2707 = vmatmul.bf16.gmra.mxu0 %v1380
    %v2708 = vpop.f32.mrf.mxu0
    %v2709 = vadd.f32 %v1690, %v2708
    %v2710 = vpop.f32.mrf.mxu0
    %v2711 = vadd.f32 %v1692, %v2710
    %2712 = vmatmul.bf16.gmra.mxu0 %v1384
    %v2713 = vpop.f32.mrf.mxu0
    %v2714 = vadd.f32 %v1695, %v2713
    %v2715 = vpop.f32.mrf.mxu0
    %v2716 = vadd.f32 %v1697, %v2715
    %2717 = vmatmul.bf16.gmra.mxu0 %v1388
    %v2718 = vpop.f32.mrf.mxu0
    %v2719 = vadd.f32 %v1700, %v2718
    %v2720 = vpop.f32.mrf.mxu0
    %v2721 = vadd.f32 %v1702, %v2720
    %2722 = vmatmul.bf16.gmra.mxu0 %v1392
    %v2723 = vpop.f32.mrf.mxu0
    %v2724 = vadd.f32 %v1705, %v2723
    %v2725 = vpop.f32.mrf.mxu0
    %v2726 = vadd.f32 %v1707, %v2725
    %2727 = vmatmul.bf16.gmra.mxu0 %v1396
    %v2728 = vpop.f32.mrf.mxu0
    %v2729 = vadd.f32 %v1710, %v2728
    %v2730 = vpop.f32.mrf.mxu0
    %v2731 = vadd.f32 %v1712, %v2730
    %2732 = vmatmul.bf16.gmra.mxu0 %v1400
    %v2733 = vpop.f32.mrf.mxu0
    %v2734 = vadd.f32 %v1715, %v2733
    %v2735 = vpop.f32.mrf.mxu0
    %v2736 = vadd.f32 %v1717, %v2735
    %2737 = vmatmul.bf16.gmra.mxu0 %v1404
    %v2738 = vpop.f32.mrf.mxu0
    %v2739 = vadd.f32 %v1720, %v2738
    %v2740 = vpop.f32.mrf.mxu0
    %v2741 = vadd.f32 %v1722, %v2740
    %2742 = vmatmul.bf16.gmra.mxu0 %v1408
    %v2743 = vpop.f32.mrf.mxu0
    %v2744 = vadd.f32 %v1725, %v2743
    %v2745 = vpop.f32.mrf.mxu0
    %v2746 = vadd.f32 %v1727, %v2745
    %2747 = vmatmul.bf16.gmra.mxu0 %v1412
    %v2748 = vpop.f32.mrf.mxu0
    %v2749 = vadd.f32 %v1730, %v2748
    %v2750 = vpop.f32.mrf.mxu0
    %v2751 = vadd.f32 %v1732, %v2750
    %2752 = vmatmul.bf16.gmra.mxu0 %v1416
    %v2753 = vpop.f32.mrf.mxu0
    %v2754 = vadd.f32 %v1735, %v2753
    %v2755 = vpop.f32.mrf.mxu0
    %v2756 = vadd.f32 %v1737, %v2755
    %2757 = vmatmul.bf16.gmra.mxu0 %v1420
    %v2758 = vpop.f32.mrf.mxu0
    %v2759 = vadd.f32 %v1740, %v2758
    %v2760 = vpop.f32.mrf.mxu0
    %v2761 = vadd.f32 %v1742, %v2760
    %2762 = vmatmul.bf16.gmra.mxu0 %v1424
    %v2763 = vpop.f32.mrf.mxu0
    %v2764 = vadd.f32 %v1745, %v2763
    %v2765 = vpop.f32.mrf.mxu0
    %v2766 = vadd.f32 %v1747, %v2765
    %2767 = vmatmul.bf16.gmra.mxu0 %v1428
    %v2768 = vpop.f32.mrf.mxu0
    %v2769 = vadd.f32 %v1750, %v2768
    %v2770 = vpop.f32.mrf.mxu0
    %v2771 = vadd.f32 %v1752, %v2770
    %2772 = vmatmul.bf16.gmra.mxu0 %v1432
    %v2773 = vpop.f32.mrf.mxu0
    %v2774 = vadd.f32 %v1755, %v2773
    %v2775 = vpop.f32.mrf.mxu0
    %v2776 = vadd.f32 %v1757, %v2775
    %2777 = vmatmul.bf16.gmra.mxu0 %v1436
    %v2778 = vpop.f32.mrf.mxu0
    %v2779 = vadd.f32 %v1760, %v2778
    %v2780 = vpop.f32.mrf.mxu0
    %v2781 = vadd.f32 %v1762, %v2780
    %2782 = vmatmul.bf16.gmra.mxu0 %v1440
    %v2783 = vpop.f32.mrf.mxu0
    %v2784 = vadd.f32 %v1765, %v2783
    %v2785 = vpop.f32.mrf.mxu0
    %v2786 = vadd.f32 %v1767, %v2785
    %2787 = vmatmul.bf16.gmra.mxu0 %v1444
    %v2788 = vpop.f32.mrf.mxu0
    %v2789 = vadd.f32 %v1770, %v2788
    %v2790 = vpop.f32.mrf.mxu0
    %v2791 = vadd.f32 %v1772, %v2790
    %2792 = vmatmul.bf16.gmra.mxu0 %v1448
    %v2793 = vpop.f32.mrf.mxu0
    %v2794 = vadd.f32 %v1775, %v2793
    %v2795 = vpop.f32.mrf.mxu0
    %v2796 = vadd.f32 %v1777, %v2795
    %2797 = vmatmul.bf16.gmra.mxu0 %v1452
    %v2798 = vpop.f32.mrf.mxu0
    %v2799 = vadd.f32 %v1780, %v2798
    %v2800 = vpop.f32.mrf.mxu0
    %v2801 = vadd.f32 %v1782, %v2800
    %2802 = vmatmul.bf16.gmra.mxu0 %v1456
    %v2803 = vpop.f32.mrf.mxu0
    %v2804 = vadd.f32 %v1785, %v2803
    %v2805 = vpop.f32.mrf.mxu0
    %v2806 = vadd.f32 %v1787, %v2805
    %2807 = vmatmul.bf16.gmra.mxu0 %v1460
    %v2808 = vpop.f32.mrf.mxu0
    %v2809 = vadd.f32 %v1790, %v2808
    %v2810 = vpop.f32.mrf.mxu0
    %v2811 = vadd.f32 %v1792, %v2810
    %2812 = vmatmul.bf16.gmra.mxu0 %v1464
    %v2813 = vpop.f32.mrf.mxu0
    %v2814 = vadd.f32 %v1795, %v2813
    %v2815 = vpop.f32.mrf.mxu0
    %v2816 = vadd.f32 %v1797, %v2815
    %2817 = vmatmul.bf16.gmra.mxu0 %v1468
    %v2818 = vpop.f32.mrf.mxu0
    %v2819 = vadd.f32 %v1800, %v2818
    %v2820 = vpop.f32.mrf.mxu0
    %v2821 = vadd.f32 %v1802, %v2820
    %2822 = vmatmul.bf16.gmra.mxu0 %v1472
    %v2823 = vpop.f32.mrf.mxu0
    %v2824 = vadd.f32 %v1805, %v2823
    %v2825 = vpop.f32.mrf.mxu0
    %v2826 = vadd.f32 %v1807, %v2825
    %2827 = vmatmul.bf16.gmra.mxu0 %v1476
    %v2828 = vpop.f32.mrf.mxu0
    %v2829 = vadd.f32 %v1810, %v2828
    %v2830 = vpop.f32.mrf.mxu0
    %v2831 = vadd.f32 %v1812, %v2830
    %2832 = vmatmul.bf16.gmra.mxu0 %v1480
    %v2833 = vpop.f32.mrf.mxu0
    %v2834 = vadd.f32 %v1815, %v2833
    %v2835 = vpop.f32.mrf.mxu0
    %v2836 = vadd.f32 %v1817, %v2835
    %2837 = vmatmul.bf16.gmra.mxu0 %v1484
    %v2838 = vpop.f32.mrf.mxu0
    %v2839 = vadd.f32 %v1820, %v2838
    %v2840 = vpop.f32.mrf.mxu0
    %v2841 = vadd.f32 %v1822, %v2840
    %2842 = vdwg.mxu0
    %2843 = vmatpush.bf16.msra.mxu0 %v2527
    %2844 = vmatpush.bf16.msra.mxu0 %v2524
    %2845 = vmatpush.bf16.msra.mxu0 %v2521
    %2846 = vmatpush.bf16.msra.mxu0 %v2518
    %2847 = vmatpush.bf16.msra.mxu0 %v2515
    %2848 = vmatpush.bf16.msra.mxu0 %v2512
    %2849 = vmatpush.bf16.msra.mxu0 %v2509
    %2850 = vmatpush.bf16.msra.mxu0 %v2506
    %2851 = vmatmul.bf16.gmra.mxu0 %v1361
    %v2852 = vpop.f32.mrf.mxu0
    %v2853 = vadd.f32 %v2684, %v2852
    %v2854 = vpop.f32.mrf.mxu0
    %v2855 = vadd.f32 %v2686, %v2854
    %2856 = vmatmul.bf16.gmra.mxu0 %v1365
    %v2857 = vpop.f32.mrf.mxu0
    %v2858 = vadd.f32 %v2689, %v2857
    %v2859 = vpop.f32.mrf.mxu0
    %v2860 = vadd.f32 %v2691, %v2859
    %2861 = vmatmul.bf16.gmra.mxu0 %v1369
    %v2862 = vpop.f32.mrf.mxu0
    %v2863 = vadd.f32 %v2694, %v2862
    %v2864 = vpop.f32.mrf.mxu0
    %v2865 = vadd.f32 %v2696, %v2864
    %2866 = vmatmul.bf16.gmra.mxu0 %v1373
    %v2867 = vpop.f32.mrf.mxu0
    %v2868 = vadd.f32 %v2699, %v2867
    %v2869 = vpop.f32.mrf.mxu0
    %v2870 = vadd.f32 %v2701, %v2869
    %2871 = vmatmul.bf16.gmra.mxu0 %v1377
    %v2872 = vpop.f32.mrf.mxu0
    %v2873 = vadd.f32 %v2704, %v2872
    %v2874 = vpop.f32.mrf.mxu0
    %v2875 = vadd.f32 %v2706, %v2874
    %2876 = vmatmul.bf16.gmra.mxu0 %v1381
    %v2877 = vpop.f32.mrf.mxu0
    %v2878 = vadd.f32 %v2709, %v2877
    %v2879 = vpop.f32.mrf.mxu0
    %v2880 = vadd.f32 %v2711, %v2879
    %2881 = vmatmul.bf16.gmra.mxu0 %v1385
    %v2882 = vpop.f32.mrf.mxu0
    %v2883 = vadd.f32 %v2714, %v2882
    %v2884 = vpop.f32.mrf.mxu0
    %v2885 = vadd.f32 %v2716, %v2884
    %2886 = vmatmul.bf16.gmra.mxu0 %v1389
    %v2887 = vpop.f32.mrf.mxu0
    %v2888 = vadd.f32 %v2719, %v2887
    %v2889 = vpop.f32.mrf.mxu0
    %v2890 = vadd.f32 %v2721, %v2889
    %2891 = vmatmul.bf16.gmra.mxu0 %v1393
    %v2892 = vpop.f32.mrf.mxu0
    %v2893 = vadd.f32 %v2724, %v2892
    %v2894 = vpop.f32.mrf.mxu0
    %v2895 = vadd.f32 %v2726, %v2894
    %2896 = vmatmul.bf16.gmra.mxu0 %v1397
    %v2897 = vpop.f32.mrf.mxu0
    %v2898 = vadd.f32 %v2729, %v2897
    %v2899 = vpop.f32.mrf.mxu0
    %v2900 = vadd.f32 %v2731, %v2899
    %2901 = vmatmul.bf16.gmra.mxu0 %v1401
    %v2902 = vpop.f32.mrf.mxu0
    %v2903 = vadd.f32 %v2734, %v2902
    %v2904 = vpop.f32.mrf.mxu0
    %v2905 = vadd.f32 %v2736, %v2904
    %2906 = vmatmul.bf16.gmra.mxu0 %v1405
    %v2907 = vpop.f32.mrf.mxu0
    %v2908 = vadd.f32 %v2739, %v2907
    %v2909 = vpop.f32.mrf.mxu0
    %v2910 = vadd.f32 %v2741, %v2909
    %2911 = vmatmul.bf16.gmra.mxu0 %v1409
    %v2912 = vpop.f32.mrf.mxu0
    %v2913 = vadd.f32 %v2744, %v2912
    %v2914 = vpop.f32.mrf.mxu0
    %v2915 = vadd.f32 %v2746, %v2914
    %2916 = vmatmul.bf16.gmra.mxu0 %v1413
    %v2917 = vpop.f32.mrf.mxu0
    %v2918 = vadd.f32 %v2749, %v2917
    %v2919 = vpop.f32.mrf.mxu0
    %v2920 = vadd.f32 %v2751, %v2919
    %2921 = vmatmul.bf16.gmra.mxu0 %v1417
    %v2922 = vpop.f32.mrf.mxu0
    %v2923 = vadd.f32 %v2754, %v2922
    %v2924 = vpop.f32.mrf.mxu0
    %v2925 = vadd.f32 %v2756, %v2924
    %2926 = vmatmul.bf16.gmra.mxu0 %v1421
    %v2927 = vpop.f32.mrf.mxu0
    %v2928 = vadd.f32 %v2759, %v2927
    %v2929 = vpop.f32.mrf.mxu0
    %v2930 = vadd.f32 %v2761, %v2929
    %2931 = vmatmul.bf16.gmra.mxu0 %v1425
    %v2932 = vpop.f32.mrf.mxu0
    %v2933 = vadd.f32 %v2764, %v2932
    %v2934 = vpop.f32.mrf.mxu0
    %v2935 = vadd.f32 %v2766, %v2934
    %2936 = vmatmul.bf16.gmra.mxu0 %v1429
    %v2937 = vpop.f32.mrf.mxu0
    %v2938 = vadd.f32 %v2769, %v2937
    %v2939 = vpop.f32.mrf.mxu0
    %v2940 = vadd.f32 %v2771, %v2939
    %2941 = vmatmul.bf16.gmra.mxu0 %v1433
    %v2942 = vpop.f32.mrf.mxu0
    %v2943 = vadd.f32 %v2774, %v2942
    %v2944 = vpop.f32.mrf.mxu0
    %v2945 = vadd.f32 %v2776, %v2944
    %2946 = vmatmul.bf16.gmra.mxu0 %v1437
    %v2947 = vpop.f32.mrf.mxu0
    %v2948 = vadd.f32 %v2779, %v2947
    %v2949 = vpop.f32.mrf.mxu0
    %v2950 = vadd.f32 %v2781, %v2949
    %2951 = vmatmul.bf16.gmra.mxu0 %v1441
    %v2952 = vpop.f32.mrf.mxu0
    %v2953 = vadd.f32 %v2784, %v2952
    %v2954 = vpop.f32.mrf.mxu0
    %v2955 = vadd.f32 %v2786, %v2954
    %2956 = vmatmul.bf16.gmra.mxu0 %v1445
    %v2957 = vpop.f32.mrf.mxu0
    %v2958 = vadd.f32 %v2789, %v2957
    %v2959 = vpop.f32.mrf.mxu0
    %v2960 = vadd.f32 %v2791, %v2959
    %2961 = vmatmul.bf16.gmra.mxu0 %v1449
    %v2962 = vpop.f32.mrf.mxu0
    %v2963 = vadd.f32 %v2794, %v2962
    %v2964 = vpop.f32.mrf.mxu0
    %v2965 = vadd.f32 %v2796, %v2964
    %2966 = vmatmul.bf16.gmra.mxu0 %v1453
    %v2967 = vpop.f32.mrf.mxu0
    %v2968 = vadd.f32 %v2799, %v2967
    %v2969 = vpop.f32.mrf.mxu0
    %v2970 = vadd.f32 %v2801, %v2969
    %2971 = vmatmul.bf16.gmra.mxu0 %v1457
    %v2972 = vpop.f32.mrf.mxu0
    %v2973 = vadd.f32 %v2804, %v2972
    %v2974 = vpop.f32.mrf.mxu0
    %v2975 = vadd.f32 %v2806, %v2974
    %2976 = vmatmul.bf16.gmra.mxu0 %v1461
    %v2977 = vpop.f32.mrf.mxu0
    %v2978 = vadd.f32 %v2809, %v2977
    %v2979 = vpop.f32.mrf.mxu0
    %v2980 = vadd.f32 %v2811, %v2979
    %2981 = vmatmul.bf16.gmra.mxu0 %v1465
    %v2982 = vpop.f32.mrf.mxu0
    %v2983 = vadd.f32 %v2814, %v2982
    %v2984 = vpop.f32.mrf.mxu0
    %v2985 = vadd.f32 %v2816, %v2984
    %2986 = vmatmul.bf16.gmra.mxu0 %v1469
    %v2987 = vpop.f32.mrf.mxu0
    %v2988 = vadd.f32 %v2819, %v2987
    %v2989 = vpop.f32.mrf.mxu0
    %v2990 = vadd.f32 %v2821, %v2989
    %2991 = vmatmul.bf16.gmra.mxu0 %v1473
    %v2992 = vpop.f32.mrf.mxu0
    %v2993 = vadd.f32 %v2824, %v2992
    %v2994 = vpop.f32.mrf.mxu0
    %v2995 = vadd.f32 %v2826, %v2994
    %2996 = vmatmul.bf16.gmra.mxu0 %v1477
    %v2997 = vpop.f32.mrf.mxu0
    %v2998 = vadd.f32 %v2829, %v2997
    %v2999 = vpop.f32.mrf.mxu0
    %v3000 = vadd.f32 %v2831, %v2999
    %3001 = vmatmul.bf16.gmra.mxu0 %v1481
    %v3002 = vpop.f32.mrf.mxu0
    %v3003 = vadd.f32 %v2834, %v3002
    %v3004 = vpop.f32.mrf.mxu0
    %v3005 = vadd.f32 %v2836, %v3004
    %3006 = vmatmul.bf16.gmra.mxu0 %v1485
    %v3007 = vpop.f32.mrf.mxu0
    %v3008 = vadd.f32 %v2839, %v3007
    %v3009 = vpop.f32.mrf.mxu0
    %v3010 = vadd.f32 %v2841, %v3009
    %3011 = vdwg.mxu0
    %3012 = vmatpush.bf16.msra.mxu0 %v2551
    %3013 = vmatpush.bf16.msra.mxu0 %v2548
    %3014 = vmatpush.bf16.msra.mxu0 %v2545
    %3015 = vmatpush.bf16.msra.mxu0 %v2542
    %3016 = vmatpush.bf16.msra.mxu0 %v2539
    %3017 = vmatpush.bf16.msra.mxu0 %v2536
    %3018 = vmatpush.bf16.msra.mxu0 %v2533
    %3019 = vmatpush.bf16.msra.mxu0 %v2530
    %3020 = vmatmul.bf16.gmra.mxu0 %v1362
    %v3021 = vpop.f32.mrf.mxu0
    %v3022 = vadd.f32 %v2853, %v3021
    %v3023 = vpop.f32.mrf.mxu0
    %v3024 = vadd.f32 %v2855, %v3023
    %3025 = vmatmul.bf16.gmra.mxu0 %v1366
    %v3026 = vpop.f32.mrf.mxu0
    %v3027 = vadd.f32 %v2858, %v3026
    %v3028 = vpop.f32.mrf.mxu0
    %v3029 = vadd.f32 %v2860, %v3028
    %3030 = vmatmul.bf16.gmra.mxu0 %v1370
    %v3031 = vpop.f32.mrf.mxu0
    %v3032 = vadd.f32 %v2863, %v3031
    %v3033 = vpop.f32.mrf.mxu0
    %v3034 = vadd.f32 %v2865, %v3033
    %3035 = vmatmul.bf16.gmra.mxu0 %v1374
    %v3036 = vpop.f32.mrf.mxu0
    %v3037 = vadd.f32 %v2868, %v3036
    %v3038 = vpop.f32.mrf.mxu0
    %v3039 = vadd.f32 %v2870, %v3038
    %3040 = vmatmul.bf16.gmra.mxu0 %v1378
    %v3041 = vpop.f32.mrf.mxu0
    %v3042 = vadd.f32 %v2873, %v3041
    %v3043 = vpop.f32.mrf.mxu0
    %v3044 = vadd.f32 %v2875, %v3043
    %3045 = vmatmul.bf16.gmra.mxu0 %v1382
    %v3046 = vpop.f32.mrf.mxu0
    %v3047 = vadd.f32 %v2878, %v3046
    %v3048 = vpop.f32.mrf.mxu0
    %v3049 = vadd.f32 %v2880, %v3048
    %3050 = vmatmul.bf16.gmra.mxu0 %v1386
    %v3051 = vpop.f32.mrf.mxu0
    %v3052 = vadd.f32 %v2883, %v3051
    %v3053 = vpop.f32.mrf.mxu0
    %v3054 = vadd.f32 %v2885, %v3053
    %3055 = vmatmul.bf16.gmra.mxu0 %v1390
    %v3056 = vpop.f32.mrf.mxu0
    %v3057 = vadd.f32 %v2888, %v3056
    %v3058 = vpop.f32.mrf.mxu0
    %v3059 = vadd.f32 %v2890, %v3058
    %3060 = vmatmul.bf16.gmra.mxu0 %v1394
    %v3061 = vpop.f32.mrf.mxu0
    %v3062 = vadd.f32 %v2893, %v3061
    %v3063 = vpop.f32.mrf.mxu0
    %v3064 = vadd.f32 %v2895, %v3063
    %3065 = vmatmul.bf16.gmra.mxu0 %v1398
    %v3066 = vpop.f32.mrf.mxu0
    %v3067 = vadd.f32 %v2898, %v3066
    %v3068 = vpop.f32.mrf.mxu0
    %v3069 = vadd.f32 %v2900, %v3068
    %3070 = vmatmul.bf16.gmra.mxu0 %v1402
    %v3071 = vpop.f32.mrf.mxu0
    %v3072 = vadd.f32 %v2903, %v3071
    %v3073 = vpop.f32.mrf.mxu0
    %v3074 = vadd.f32 %v2905, %v3073
    %3075 = vmatmul.bf16.gmra.mxu0 %v1406
    %v3076 = vpop.f32.mrf.mxu0
    %v3077 = vadd.f32 %v2908, %v3076
    %v3078 = vpop.f32.mrf.mxu0
    %v3079 = vadd.f32 %v2910, %v3078
    %3080 = vmatmul.bf16.gmra.mxu0 %v1410
    %v3081 = vpop.f32.mrf.mxu0
    %v3082 = vadd.f32 %v2913, %v3081
    %v3083 = vpop.f32.mrf.mxu0
    %v3084 = vadd.f32 %v2915, %v3083
    %3085 = vmatmul.bf16.gmra.mxu0 %v1414
    %v3086 = vpop.f32.mrf.mxu0
    %v3087 = vadd.f32 %v2918, %v3086
    %v3088 = vpop.f32.mrf.mxu0
    %v3089 = vadd.f32 %v2920, %v3088
    %3090 = vmatmul.bf16.gmra.mxu0 %v1418
    %v3091 = vpop.f32.mrf.mxu0
    %v3092 = vadd.f32 %v2923, %v3091
    %v3093 = vpop.f32.mrf.mxu0
    %v3094 = vadd.f32 %v2925, %v3093
    %3095 = vmatmul.bf16.gmra.mxu0 %v1422
    %v3096 = vpop.f32.mrf.mxu0
    %v3097 = vadd.f32 %v2928, %v3096
    %v3098 = vpop.f32.mrf.mxu0
    %v3099 = vadd.f32 %v2930, %v3098
    %3100 = vmatmul.bf16.gmra.mxu0 %v1426
    %v3101 = vpop.f32.mrf.mxu0
    %v3102 = vadd.f32 %v2933, %v3101
    %v3103 = vpop.f32.mrf.mxu0
    %v3104 = vadd.f32 %v2935, %v3103
    %3105 = vmatmul.bf16.gmra.mxu0 %v1430
    %v3106 = vpop.f32.mrf.mxu0
    %v3107 = vadd.f32 %v2938, %v3106
    %v3108 = vpop.f32.mrf.mxu0
    %v3109 = vadd.f32 %v2940, %v3108
    %3110 = vmatmul.bf16.gmra.mxu0 %v1434
    %v3111 = vpop.f32.mrf.mxu0
    %v3112 = vadd.f32 %v2943, %v3111
    %v3113 = vpop.f32.mrf.mxu0
    %v3114 = vadd.f32 %v2945, %v3113
    %3115 = vmatmul.bf16.gmra.mxu0 %v1438
    %v3116 = vpop.f32.mrf.mxu0
    %v3117 = vadd.f32 %v2948, %v3116
    %v3118 = vpop.f32.mrf.mxu0
    %v3119 = vadd.f32 %v2950, %v3118
    %3120 = vmatmul.bf16.gmra.mxu0 %v1442
    %v3121 = vpop.f32.mrf.mxu0
    %v3122 = vadd.f32 %v2953, %v3121
    %v3123 = vpop.f32.mrf.mxu0
    %v3124 = vadd.f32 %v2955, %v3123
    %3125 = vmatmul.bf16.gmra.mxu0 %v1446
    %v3126 = vpop.f32.mrf.mxu0
    %v3127 = vadd.f32 %v2958, %v3126
    %v3128 = vpop.f32.mrf.mxu0
    %v3129 = vadd.f32 %v2960, %v3128
    %3130 = vmatmul.bf16.gmra.mxu0 %v1450
    %v3131 = vpop.f32.mrf.mxu0
    %v3132 = vadd.f32 %v2963, %v3131
    %v3133 = vpop.f32.mrf.mxu0
    %v3134 = vadd.f32 %v2965, %v3133
    %3135 = vmatmul.bf16.gmra.mxu0 %v1454
    %v3136 = vpop.f32.mrf.mxu0
    %v3137 = vadd.f32 %v2968, %v3136
    %v3138 = vpop.f32.mrf.mxu0
    %v3139 = vadd.f32 %v2970, %v3138
    %3140 = vmatmul.bf16.gmra.mxu0 %v1458
    %v3141 = vpop.f32.mrf.mxu0
    %v3142 = vadd.f32 %v2973, %v3141
    %v3143 = vpop.f32.mrf.mxu0
    %v3144 = vadd.f32 %v2975, %v3143
    %3145 = vmatmul.bf16.gmra.mxu0 %v1462
    %v3146 = vpop.f32.mrf.mxu0
    %v3147 = vadd.f32 %v2978, %v3146
    %v3148 = vpop.f32.mrf.mxu0
    %v3149 = vadd.f32 %v2980, %v3148
    %3150 = vmatmul.bf16.gmra.mxu0 %v1466
    %v3151 = vpop.f32.mrf.mxu0
    %v3152 = vadd.f32 %v2983, %v3151
    %v3153 = vpop.f32.mrf.mxu0
    %v3154 = vadd.f32 %v2985, %v3153
    %3155 = vmatmul.bf16.gmra.mxu0 %v1470
    %v3156 = vpop.f32.mrf.mxu0
    %v3157 = vadd.f32 %v2988, %v3156
    %v3158 = vpop.f32.mrf.mxu0
    %v3159 = vadd.f32 %v2990, %v3158
    %3160 = vmatmul.bf16.gmra.mxu0 %v1474
    %v3161 = vpop.f32.mrf.mxu0
    %v3162 = vadd.f32 %v2993, %v3161
    %v3163 = vpop.f32.mrf.mxu0
    %v3164 = vadd.f32 %v2995, %v3163
    %3165 = vmatmul.bf16.gmra.mxu0 %v1478
    %v3166 = vpop.f32.mrf.mxu0
    %v3167 = vadd.f32 %v2998, %v3166
    %v3168 = vpop.f32.mrf.mxu0
    %v3169 = vadd.f32 %v3000, %v3168
    %3170 = vmatmul.bf16.gmra.mxu0 %v1482
    %v3171 = vpop.f32.mrf.mxu0
    %v3172 = vadd.f32 %v3003, %v3171
    %v3173 = vpop.f32.mrf.mxu0
    %v3174 = vadd.f32 %v3005, %v3173
    %3175 = vmatmul.bf16.gmra.mxu0 %v1486
    %v3176 = vpop.f32.mrf.mxu0
    %v3177 = vadd.f32 %v3008, %v3176
    %v3178 = vpop.f32.mrf.mxu0
    %v3179 = vadd.f32 %v3010, %v3178
    %3180 = vdwg.mxu0
    %3181 = vmatpush.bf16.msra.mxu0 %v2575
    %3182 = vmatpush.bf16.msra.mxu0 %v2572
    %3183 = vmatpush.bf16.msra.mxu0 %v2569
    %3184 = vmatpush.bf16.msra.mxu0 %v2566
    %3185 = vmatpush.bf16.msra.mxu0 %v2563
    %3186 = vmatpush.bf16.msra.mxu0 %v2560
    %3187 = vmatpush.bf16.msra.mxu0 %v2557
    %3188 = vmatpush.bf16.msra.mxu0 %v2554
    %3189 = vmatmul.bf16.gmra.mxu0 %v1363
    %v3190 = vpop.f32.mrf.mxu0
    %v3191 = vadd.f32 %v3022, %v3190
    %v3192 = vpop.f32.mrf.mxu0
    %v3193 = vadd.f32 %v3024, %v3192
    %3194 = vmatmul.bf16.gmra.mxu0 %v1367
    %v3195 = vpop.f32.mrf.mxu0
    %v3196 = vadd.f32 %v3027, %v3195
    %v3197 = vpop.f32.mrf.mxu0
    %v3198 = vadd.f32 %v3029, %v3197
    %3199 = vmatmul.bf16.gmra.mxu0 %v1371
    %v3200 = vpop.f32.mrf.mxu0
    %v3201 = vadd.f32 %v3032, %v3200
    %v3202 = vpop.f32.mrf.mxu0
    %v3203 = vadd.f32 %v3034, %v3202
    %3204 = vmatmul.bf16.gmra.mxu0 %v1375
    %v3205 = vpop.f32.mrf.mxu0
    %v3206 = vadd.f32 %v3037, %v3205
    %v3207 = vpop.f32.mrf.mxu0
    %v3208 = vadd.f32 %v3039, %v3207
    %3209 = vmatmul.bf16.gmra.mxu0 %v1379
    %v3210 = vpop.f32.mrf.mxu0
    %v3211 = vadd.f32 %v3042, %v3210
    %v3212 = vpop.f32.mrf.mxu0
    %v3213 = vadd.f32 %v3044, %v3212
    %3214 = vmatmul.bf16.gmra.mxu0 %v1383
    %v3215 = vpop.f32.mrf.mxu0
    %v3216 = vadd.f32 %v3047, %v3215
    %v3217 = vpop.f32.mrf.mxu0
    %v3218 = vadd.f32 %v3049, %v3217
    %3219 = vmatmul.bf16.gmra.mxu0 %v1387
    %v3220 = vpop.f32.mrf.mxu0
    %v3221 = vadd.f32 %v3052, %v3220
    %v3222 = vpop.f32.mrf.mxu0
    %v3223 = vadd.f32 %v3054, %v3222
    %3224 = vmatmul.bf16.gmra.mxu0 %v1391
    %v3225 = vpop.f32.mrf.mxu0
    %v3226 = vadd.f32 %v3057, %v3225
    %v3227 = vpop.f32.mrf.mxu0
    %v3228 = vadd.f32 %v3059, %v3227
    %3229 = vmatmul.bf16.gmra.mxu0 %v1395
    %v3230 = vpop.f32.mrf.mxu0
    %v3231 = vadd.f32 %v3062, %v3230
    %v3232 = vpop.f32.mrf.mxu0
    %v3233 = vadd.f32 %v3064, %v3232
    %3234 = vmatmul.bf16.gmra.mxu0 %v1399
    %v3235 = vpop.f32.mrf.mxu0
    %v3236 = vadd.f32 %v3067, %v3235
    %v3237 = vpop.f32.mrf.mxu0
    %v3238 = vadd.f32 %v3069, %v3237
    %3239 = vmatmul.bf16.gmra.mxu0 %v1403
    %v3240 = vpop.f32.mrf.mxu0
    %v3241 = vadd.f32 %v3072, %v3240
    %v3242 = vpop.f32.mrf.mxu0
    %v3243 = vadd.f32 %v3074, %v3242
    %3244 = vmatmul.bf16.gmra.mxu0 %v1407
    %v3245 = vpop.f32.mrf.mxu0
    %v3246 = vadd.f32 %v3077, %v3245
    %v3247 = vpop.f32.mrf.mxu0
    %v3248 = vadd.f32 %v3079, %v3247
    %3249 = vmatmul.bf16.gmra.mxu0 %v1411
    %v3250 = vpop.f32.mrf.mxu0
    %v3251 = vadd.f32 %v3082, %v3250
    %v3252 = vpop.f32.mrf.mxu0
    %v3253 = vadd.f32 %v3084, %v3252
    %3254 = vmatmul.bf16.gmra.mxu0 %v1415
    %v3255 = vpop.f32.mrf.mxu0
    %v3256 = vadd.f32 %v3087, %v3255
    %v3257 = vpop.f32.mrf.mxu0
    %v3258 = vadd.f32 %v3089, %v3257
    %3259 = vmatmul.bf16.gmra.mxu0 %v1419
    %v3260 = vpop.f32.mrf.mxu0
    %v3261 = vadd.f32 %v3092, %v3260
    %v3262 = vpop.f32.mrf.mxu0
    %v3263 = vadd.f32 %v3094, %v3262
    %3264 = vmatmul.bf16.gmra.mxu0 %v1423
    %v3265 = vpop.f32.mrf.mxu0
    %v3266 = vadd.f32 %v3097, %v3265
    %v3267 = vpop.f32.mrf.mxu0
    %v3268 = vadd.f32 %v3099, %v3267
    %3269 = vmatmul.bf16.gmra.mxu0 %v1427
    %v3270 = vpop.f32.mrf.mxu0
    %v3271 = vadd.f32 %v3102, %v3270
    %v3272 = vpop.f32.mrf.mxu0
    %v3273 = vadd.f32 %v3104, %v3272
    %3274 = vmatmul.bf16.gmra.mxu0 %v1431
    %v3275 = vpop.f32.mrf.mxu0
    %v3276 = vadd.f32 %v3107, %v3275
    %v3277 = vpop.f32.mrf.mxu0
    %v3278 = vadd.f32 %v3109, %v3277
    %3279 = vmatmul.bf16.gmra.mxu0 %v1435
    %v3280 = vpop.f32.mrf.mxu0
    %v3281 = vadd.f32 %v3112, %v3280
    %v3282 = vpop.f32.mrf.mxu0
    %v3283 = vadd.f32 %v3114, %v3282
    %3284 = vmatmul.bf16.gmra.mxu0 %v1439
    %v3285 = vpop.f32.mrf.mxu0
    %v3286 = vadd.f32 %v3117, %v3285
    %v3287 = vpop.f32.mrf.mxu0
    %v3288 = vadd.f32 %v3119, %v3287
    %3289 = vmatmul.bf16.gmra.mxu0 %v1443
    %v3290 = vpop.f32.mrf.mxu0
    %v3291 = vadd.f32 %v3122, %v3290
    %v3292 = vpop.f32.mrf.mxu0
    %v3293 = vadd.f32 %v3124, %v3292
    %3294 = vmatmul.bf16.gmra.mxu0 %v1447
    %v3295 = vpop.f32.mrf.mxu0
    %v3296 = vadd.f32 %v3127, %v3295
    %v3297 = vpop.f32.mrf.mxu0
    %v3298 = vadd.f32 %v3129, %v3297
    %3299 = vmatmul.bf16.gmra.mxu0 %v1451
    %v3300 = vpop.f32.mrf.mxu0
    %v3301 = vadd.f32 %v3132, %v3300
    %v3302 = vpop.f32.mrf.mxu0
    %v3303 = vadd.f32 %v3134, %v3302
    %3304 = vmatmul.bf16.gmra.mxu0 %v1455
    %v3305 = vpop.f32.mrf.mxu0
    %v3306 = vadd.f32 %v3137, %v3305
    %v3307 = vpop.f32.mrf.mxu0
    %v3308 = vadd.f32 %v3139, %v3307
    %3309 = vmatmul.bf16.gmra.mxu0 %v1459
    %v3310 = vpop.f32.mrf.mxu0
    %v3311 = vadd.f32 %v3142, %v3310
    %v3312 = vpop.f32.mrf.mxu0
    %v3313 = vadd.f32 %v3144, %v3312
    %3314 = vmatmul.bf16.gmra.mxu0 %v1463
    %v3315 = vpop.f32.mrf.mxu0
    %v3316 = vadd.f32 %v3147, %v3315
    %v3317 = vpop.f32.mrf.mxu0
    %v3318 = vadd.f32 %v3149, %v3317
    %3319 = vmatmul.bf16.gmra.mxu0 %v1467
    %v3320 = vpop.f32.mrf.mxu0
    %v3321 = vadd.f32 %v3152, %v3320
    %v3322 = vpop.f32.mrf.mxu0
    %v3323 = vadd.f32 %v3154, %v3322
    %3324 = vmatmul.bf16.gmra.mxu0 %v1471
    %v3325 = vpop.f32.mrf.mxu0
    %v3326 = vadd.f32 %v3157, %v3325
    %v3327 = vpop.f32.mrf.mxu0
    %v3328 = vadd.f32 %v3159, %v3327
    %3329 = vmatmul.bf16.gmra.mxu0 %v1475
    %v3330 = vpop.f32.mrf.mxu0
    %v3331 = vadd.f32 %v3162, %v3330
    %v3332 = vpop.f32.mrf.mxu0
    %v3333 = vadd.f32 %v3164, %v3332
    %3334 = vmatmul.bf16.gmra.mxu0 %v1479
    %v3335 = vpop.f32.mrf.mxu0
    %v3336 = vadd.f32 %v3167, %v3335
    %v3337 = vpop.f32.mrf.mxu0
    %v3338 = vadd.f32 %v3169, %v3337
    %3339 = vmatmul.bf16.gmra.mxu0 %v1483
    %v3340 = vpop.f32.mrf.mxu0
    %v3341 = vadd.f32 %v3172, %v3340
    %v3342 = vpop.f32.mrf.mxu0
    %v3343 = vadd.f32 %v3174, %v3342
    %3344 = vmatmul.bf16.gmra.mxu0 %v1487
    %v3345 = vpop.f32.mrf.mxu0
    %v3346 = vadd.f32 %v3177, %v3345
    %v3347 = vpop.f32.mrf.mxu0
    %v3348 = vadd.f32 %v3179, %v3347
    %3349 = vdwg.mxu0
    %3350 = vmatpush.bf16.msra.mxu0 %v2504
    %3351 = vmatpush.bf16.msra.mxu0 %v2501
    %3352 = vmatpush.bf16.msra.mxu0 %v2498
    %3353 = vmatpush.bf16.msra.mxu0 %v2495
    %3354 = vmatpush.bf16.msra.mxu0 %v2492
    %3355 = vmatpush.bf16.msra.mxu0 %v2489
    %3356 = vmatpush.bf16.msra.mxu0 %v2486
    %3357 = vmatpush.bf16.msra.mxu0 %v2483
    %3358 = vmatmul.bf16.gmra.mxu0 %v1360
    %v3359 = vpop.f32.mrf.mxu0
    %v3360 = vadd.f32 %v1834, %v3359
    %v3361 = vpop.f32.mrf.mxu0
    %v3362 = vadd.f32 %v1836, %v3361
    %3363 = vmatmul.bf16.gmra.mxu0 %v1364
    %v3364 = vpop.f32.mrf.mxu0
    %v3365 = vadd.f32 %v1839, %v3364
    %v3366 = vpop.f32.mrf.mxu0
    %v3367 = vadd.f32 %v1841, %v3366
    %3368 = vmatmul.bf16.gmra.mxu0 %v1368
    %v3369 = vpop.f32.mrf.mxu0
    %v3370 = vadd.f32 %v1844, %v3369
    %v3371 = vpop.f32.mrf.mxu0
    %v3372 = vadd.f32 %v1846, %v3371
    %3373 = vmatmul.bf16.gmra.mxu0 %v1372
    %v3374 = vpop.f32.mrf.mxu0
    %v3375 = vadd.f32 %v1849, %v3374
    %v3376 = vpop.f32.mrf.mxu0
    %v3377 = vadd.f32 %v1851, %v3376
    %3378 = vmatmul.bf16.gmra.mxu0 %v1376
    %v3379 = vpop.f32.mrf.mxu0
    %v3380 = vadd.f32 %v1854, %v3379
    %v3381 = vpop.f32.mrf.mxu0
    %v3382 = vadd.f32 %v1856, %v3381
    %3383 = vmatmul.bf16.gmra.mxu0 %v1380
    %v3384 = vpop.f32.mrf.mxu0
    %v3385 = vadd.f32 %v1859, %v3384
    %v3386 = vpop.f32.mrf.mxu0
    %v3387 = vadd.f32 %v1861, %v3386
    %3388 = vmatmul.bf16.gmra.mxu0 %v1384
    %v3389 = vpop.f32.mrf.mxu0
    %v3390 = vadd.f32 %v1864, %v3389
    %v3391 = vpop.f32.mrf.mxu0
    %v3392 = vadd.f32 %v1866, %v3391
    %3393 = vmatmul.bf16.gmra.mxu0 %v1388
    %v3394 = vpop.f32.mrf.mxu0
    %v3395 = vadd.f32 %v1869, %v3394
    %v3396 = vpop.f32.mrf.mxu0
    %v3397 = vadd.f32 %v1871, %v3396
    %3398 = vmatmul.bf16.gmra.mxu0 %v1392
    %v3399 = vpop.f32.mrf.mxu0
    %v3400 = vadd.f32 %v1874, %v3399
    %v3401 = vpop.f32.mrf.mxu0
    %v3402 = vadd.f32 %v1876, %v3401
    %3403 = vmatmul.bf16.gmra.mxu0 %v1396
    %v3404 = vpop.f32.mrf.mxu0
    %v3405 = vadd.f32 %v1879, %v3404
    %v3406 = vpop.f32.mrf.mxu0
    %v3407 = vadd.f32 %v1881, %v3406
    %3408 = vmatmul.bf16.gmra.mxu0 %v1400
    %v3409 = vpop.f32.mrf.mxu0
    %v3410 = vadd.f32 %v1884, %v3409
    %v3411 = vpop.f32.mrf.mxu0
    %v3412 = vadd.f32 %v1886, %v3411
    %3413 = vmatmul.bf16.gmra.mxu0 %v1404
    %v3414 = vpop.f32.mrf.mxu0
    %v3415 = vadd.f32 %v1889, %v3414
    %v3416 = vpop.f32.mrf.mxu0
    %v3417 = vadd.f32 %v1891, %v3416
    %3418 = vmatmul.bf16.gmra.mxu0 %v1408
    %v3419 = vpop.f32.mrf.mxu0
    %v3420 = vadd.f32 %v1894, %v3419
    %v3421 = vpop.f32.mrf.mxu0
    %v3422 = vadd.f32 %v1896, %v3421
    %3423 = vmatmul.bf16.gmra.mxu0 %v1412
    %v3424 = vpop.f32.mrf.mxu0
    %v3425 = vadd.f32 %v1899, %v3424
    %v3426 = vpop.f32.mrf.mxu0
    %v3427 = vadd.f32 %v1901, %v3426
    %3428 = vmatmul.bf16.gmra.mxu0 %v1416
    %v3429 = vpop.f32.mrf.mxu0
    %v3430 = vadd.f32 %v1904, %v3429
    %v3431 = vpop.f32.mrf.mxu0
    %v3432 = vadd.f32 %v1906, %v3431
    %3433 = vmatmul.bf16.gmra.mxu0 %v1420
    %v3434 = vpop.f32.mrf.mxu0
    %v3435 = vadd.f32 %v1909, %v3434
    %v3436 = vpop.f32.mrf.mxu0
    %v3437 = vadd.f32 %v1911, %v3436
    %3438 = vmatmul.bf16.gmra.mxu0 %v1424
    %v3439 = vpop.f32.mrf.mxu0
    %v3440 = vadd.f32 %v1914, %v3439
    %v3441 = vpop.f32.mrf.mxu0
    %v3442 = vadd.f32 %v1916, %v3441
    %3443 = vmatmul.bf16.gmra.mxu0 %v1428
    %v3444 = vpop.f32.mrf.mxu0
    %v3445 = vadd.f32 %v1919, %v3444
    %v3446 = vpop.f32.mrf.mxu0
    %v3447 = vadd.f32 %v1921, %v3446
    %3448 = vmatmul.bf16.gmra.mxu0 %v1432
    %v3449 = vpop.f32.mrf.mxu0
    %v3450 = vadd.f32 %v1924, %v3449
    %v3451 = vpop.f32.mrf.mxu0
    %v3452 = vadd.f32 %v1926, %v3451
    %3453 = vmatmul.bf16.gmra.mxu0 %v1436
    %v3454 = vpop.f32.mrf.mxu0
    %v3455 = vadd.f32 %v1929, %v3454
    %v3456 = vpop.f32.mrf.mxu0
    %v3457 = vadd.f32 %v1931, %v3456
    %3458 = vmatmul.bf16.gmra.mxu0 %v1440
    %v3459 = vpop.f32.mrf.mxu0
    %v3460 = vadd.f32 %v1934, %v3459
    %v3461 = vpop.f32.mrf.mxu0
    %v3462 = vadd.f32 %v1936, %v3461
    %3463 = vmatmul.bf16.gmra.mxu0 %v1444
    %v3464 = vpop.f32.mrf.mxu0
    %v3465 = vadd.f32 %v1939, %v3464
    %v3466 = vpop.f32.mrf.mxu0
    %v3467 = vadd.f32 %v1941, %v3466
    %3468 = vmatmul.bf16.gmra.mxu0 %v1448
    %v3469 = vpop.f32.mrf.mxu0
    %v3470 = vadd.f32 %v1944, %v3469
    %v3471 = vpop.f32.mrf.mxu0
    %v3472 = vadd.f32 %v1946, %v3471
    %3473 = vmatmul.bf16.gmra.mxu0 %v1452
    %v3474 = vpop.f32.mrf.mxu0
    %v3475 = vadd.f32 %v1949, %v3474
    %v3476 = vpop.f32.mrf.mxu0
    %v3477 = vadd.f32 %v1951, %v3476
    %3478 = vmatmul.bf16.gmra.mxu0 %v1456
    %v3479 = vpop.f32.mrf.mxu0
    %v3480 = vadd.f32 %v1954, %v3479
    %v3481 = vpop.f32.mrf.mxu0
    %v3482 = vadd.f32 %v1956, %v3481
    %3483 = vmatmul.bf16.gmra.mxu0 %v1460
    %v3484 = vpop.f32.mrf.mxu0
    %v3485 = vadd.f32 %v1959, %v3484
    %v3486 = vpop.f32.mrf.mxu0
    %v3487 = vadd.f32 %v1961, %v3486
    %3488 = vmatmul.bf16.gmra.mxu0 %v1464
    %v3489 = vpop.f32.mrf.mxu0
    %v3490 = vadd.f32 %v1964, %v3489
    %v3491 = vpop.f32.mrf.mxu0
    %v3492 = vadd.f32 %v1966, %v3491
    %3493 = vmatmul.bf16.gmra.mxu0 %v1468
    %v3494 = vpop.f32.mrf.mxu0
    %v3495 = vadd.f32 %v1969, %v3494
    %v3496 = vpop.f32.mrf.mxu0
    %v3497 = vadd.f32 %v1971, %v3496
    %3498 = vmatmul.bf16.gmra.mxu0 %v1472
    %v3499 = vpop.f32.mrf.mxu0
    %v3500 = vadd.f32 %v1974, %v3499
    %v3501 = vpop.f32.mrf.mxu0
    %v3502 = vadd.f32 %v1976, %v3501
    %3503 = vmatmul.bf16.gmra.mxu0 %v1476
    %v3504 = vpop.f32.mrf.mxu0
    %v3505 = vadd.f32 %v1979, %v3504
    %v3506 = vpop.f32.mrf.mxu0
    %v3507 = vadd.f32 %v1981, %v3506
    %3508 = vmatmul.bf16.gmra.mxu0 %v1480
    %v3509 = vpop.f32.mrf.mxu0
    %v3510 = vadd.f32 %v1984, %v3509
    %v3511 = vpop.f32.mrf.mxu0
    %v3512 = vadd.f32 %v1986, %v3511
    %3513 = vmatmul.bf16.gmra.mxu0 %v1484
    %v3514 = vpop.f32.mrf.mxu0
    %v3515 = vadd.f32 %v1989, %v3514
    %v3516 = vpop.f32.mrf.mxu0
    %v3517 = vadd.f32 %v1991, %v3516
    %3518 = vdwg.mxu0
    %3519 = vmatpush.bf16.msra.mxu0 %v2528
    %3520 = vmatpush.bf16.msra.mxu0 %v2525
    %3521 = vmatpush.bf16.msra.mxu0 %v2522
    %3522 = vmatpush.bf16.msra.mxu0 %v2519
    %3523 = vmatpush.bf16.msra.mxu0 %v2516
    %3524 = vmatpush.bf16.msra.mxu0 %v2513
    %3525 = vmatpush.bf16.msra.mxu0 %v2510
    %3526 = vmatpush.bf16.msra.mxu0 %v2507
    %3527 = vmatmul.bf16.gmra.mxu0 %v1361
    %v3528 = vpop.f32.mrf.mxu0
    %v3529 = vadd.f32 %v3360, %v3528
    %v3530 = vpop.f32.mrf.mxu0
    %v3531 = vadd.f32 %v3362, %v3530
    %3532 = vmatmul.bf16.gmra.mxu0 %v1365
    %v3533 = vpop.f32.mrf.mxu0
    %v3534 = vadd.f32 %v3365, %v3533
    %v3535 = vpop.f32.mrf.mxu0
    %v3536 = vadd.f32 %v3367, %v3535
    %3537 = vmatmul.bf16.gmra.mxu0 %v1369
    %v3538 = vpop.f32.mrf.mxu0
    %v3539 = vadd.f32 %v3370, %v3538
    %v3540 = vpop.f32.mrf.mxu0
    %v3541 = vadd.f32 %v3372, %v3540
    %3542 = vmatmul.bf16.gmra.mxu0 %v1373
    %v3543 = vpop.f32.mrf.mxu0
    %v3544 = vadd.f32 %v3375, %v3543
    %v3545 = vpop.f32.mrf.mxu0
    %v3546 = vadd.f32 %v3377, %v3545
    %3547 = vmatmul.bf16.gmra.mxu0 %v1377
    %v3548 = vpop.f32.mrf.mxu0
    %v3549 = vadd.f32 %v3380, %v3548
    %v3550 = vpop.f32.mrf.mxu0
    %v3551 = vadd.f32 %v3382, %v3550
    %3552 = vmatmul.bf16.gmra.mxu0 %v1381
    %v3553 = vpop.f32.mrf.mxu0
    %v3554 = vadd.f32 %v3385, %v3553
    %v3555 = vpop.f32.mrf.mxu0
    %v3556 = vadd.f32 %v3387, %v3555
    %3557 = vmatmul.bf16.gmra.mxu0 %v1385
    %v3558 = vpop.f32.mrf.mxu0
    %v3559 = vadd.f32 %v3390, %v3558
    %v3560 = vpop.f32.mrf.mxu0
    %v3561 = vadd.f32 %v3392, %v3560
    %3562 = vmatmul.bf16.gmra.mxu0 %v1389
    %v3563 = vpop.f32.mrf.mxu0
    %v3564 = vadd.f32 %v3395, %v3563
    %v3565 = vpop.f32.mrf.mxu0
    %v3566 = vadd.f32 %v3397, %v3565
    %3567 = vmatmul.bf16.gmra.mxu0 %v1393
    %v3568 = vpop.f32.mrf.mxu0
    %v3569 = vadd.f32 %v3400, %v3568
    %v3570 = vpop.f32.mrf.mxu0
    %v3571 = vadd.f32 %v3402, %v3570
    %3572 = vmatmul.bf16.gmra.mxu0 %v1397
    %v3573 = vpop.f32.mrf.mxu0
    %v3574 = vadd.f32 %v3405, %v3573
    %v3575 = vpop.f32.mrf.mxu0
    %v3576 = vadd.f32 %v3407, %v3575
    %3577 = vmatmul.bf16.gmra.mxu0 %v1401
    %v3578 = vpop.f32.mrf.mxu0
    %v3579 = vadd.f32 %v3410, %v3578
    %v3580 = vpop.f32.mrf.mxu0
    %v3581 = vadd.f32 %v3412, %v3580
    %3582 = vmatmul.bf16.gmra.mxu0 %v1405
    %v3583 = vpop.f32.mrf.mxu0
    %v3584 = vadd.f32 %v3415, %v3583
    %v3585 = vpop.f32.mrf.mxu0
    %v3586 = vadd.f32 %v3417, %v3585
    %3587 = vmatmul.bf16.gmra.mxu0 %v1409
    %v3588 = vpop.f32.mrf.mxu0
    %v3589 = vadd.f32 %v3420, %v3588
    %v3590 = vpop.f32.mrf.mxu0
    %v3591 = vadd.f32 %v3422, %v3590
    %3592 = vmatmul.bf16.gmra.mxu0 %v1413
    %v3593 = vpop.f32.mrf.mxu0
    %v3594 = vadd.f32 %v3425, %v3593
    %v3595 = vpop.f32.mrf.mxu0
    %v3596 = vadd.f32 %v3427, %v3595
    %3597 = vmatmul.bf16.gmra.mxu0 %v1417
    %v3598 = vpop.f32.mrf.mxu0
    %v3599 = vadd.f32 %v3430, %v3598
    %v3600 = vpop.f32.mrf.mxu0
    %v3601 = vadd.f32 %v3432, %v3600
    %3602 = vmatmul.bf16.gmra.mxu0 %v1421
    %v3603 = vpop.f32.mrf.mxu0
    %v3604 = vadd.f32 %v3435, %v3603
    %v3605 = vpop.f32.mrf.mxu0
    %v3606 = vadd.f32 %v3437, %v3605
    %3607 = vmatmul.bf16.gmra.mxu0 %v1425
    %v3608 = vpop.f32.mrf.mxu0
    %v3609 = vadd.f32 %v3440, %v3608
    %v3610 = vpop.f32.mrf.mxu0
    %v3611 = vadd.f32 %v3442, %v3610
    %3612 = vmatmul.bf16.gmra.mxu0 %v1429
    %v3613 = vpop.f32.mrf.mxu0
    %v3614 = vadd.f32 %v3445, %v3613
    %v3615 = vpop.f32.mrf.mxu0
    %v3616 = vadd.f32 %v3447, %v3615
    %3617 = vmatmul.bf16.gmra.mxu0 %v1433
    %v3618 = vpop.f32.mrf.mxu0
    %v3619 = vadd.f32 %v3450, %v3618
    %v3620 = vpop.f32.mrf.mxu0
    %v3621 = vadd.f32 %v3452, %v3620
    %3622 = vmatmul.bf16.gmra.mxu0 %v1437
    %v3623 = vpop.f32.mrf.mxu0
    %v3624 = vadd.f32 %v3455, %v3623
    %v3625 = vpop.f32.mrf.mxu0
    %v3626 = vadd.f32 %v3457, %v3625
    %3627 = vmatmul.bf16.gmra.mxu0 %v1441
    %v3628 = vpop.f32.mrf.mxu0
    %v3629 = vadd.f32 %v3460, %v3628
    %v3630 = vpop.f32.mrf.mxu0
    %v3631 = vadd.f32 %v3462, %v3630
    %3632 = vmatmul.bf16.gmra.mxu0 %v1445
    %v3633 = vpop.f32.mrf.mxu0
    %v3634 = vadd.f32 %v3465, %v3633
    %v3635 = vpop.f32.mrf.mxu0
    %v3636 = vadd.f32 %v3467, %v3635
    %3637 = vmatmul.bf16.gmra.mxu0 %v1449
    %v3638 = vpop.f32.mrf.mxu0
    %v3639 = vadd.f32 %v3470, %v3638
    %v3640 = vpop.f32.mrf.mxu0
    %v3641 = vadd.f32 %v3472, %v3640
    %3642 = vmatmul.bf16.gmra.mxu0 %v1453
    %v3643 = vpop.f32.mrf.mxu0
    %v3644 = vadd.f32 %v3475, %v3643
    %v3645 = vpop.f32.mrf.mxu0
    %v3646 = vadd.f32 %v3477, %v3645
    %3647 = vmatmul.bf16.gmra.mxu0 %v1457
    %v3648 = vpop.f32.mrf.mxu0
    %v3649 = vadd.f32 %v3480, %v3648
    %v3650 = vpop.f32.mrf.mxu0
    %v3651 = vadd.f32 %v3482, %v3650
    %3652 = vmatmul.bf16.gmra.mxu0 %v1461
    %v3653 = vpop.f32.mrf.mxu0
    %v3654 = vadd.f32 %v3485, %v3653
    %v3655 = vpop.f32.mrf.mxu0
    %v3656 = vadd.f32 %v3487, %v3655
    %3657 = vmatmul.bf16.gmra.mxu0 %v1465
    %v3658 = vpop.f32.mrf.mxu0
    %v3659 = vadd.f32 %v3490, %v3658
    %v3660 = vpop.f32.mrf.mxu0
    %v3661 = vadd.f32 %v3492, %v3660
    %3662 = vmatmul.bf16.gmra.mxu0 %v1469
    %v3663 = vpop.f32.mrf.mxu0
    %v3664 = vadd.f32 %v3495, %v3663
    %v3665 = vpop.f32.mrf.mxu0
    %v3666 = vadd.f32 %v3497, %v3665
    %3667 = vmatmul.bf16.gmra.mxu0 %v1473
    %v3668 = vpop.f32.mrf.mxu0
    %v3669 = vadd.f32 %v3500, %v3668
    %v3670 = vpop.f32.mrf.mxu0
    %v3671 = vadd.f32 %v3502, %v3670
    %3672 = vmatmul.bf16.gmra.mxu0 %v1477
    %v3673 = vpop.f32.mrf.mxu0
    %v3674 = vadd.f32 %v3505, %v3673
    %v3675 = vpop.f32.mrf.mxu0
    %v3676 = vadd.f32 %v3507, %v3675
    %3677 = vmatmul.bf16.gmra.mxu0 %v1481
    %v3678 = vpop.f32.mrf.mxu0
    %v3679 = vadd.f32 %v3510, %v3678
    %v3680 = vpop.f32.mrf.mxu0
    %v3681 = vadd.f32 %v3512, %v3680
    %3682 = vmatmul.bf16.gmra.mxu0 %v1485
    %v3683 = vpop.f32.mrf.mxu0
    %v3684 = vadd.f32 %v3515, %v3683
    %v3685 = vpop.f32.mrf.mxu0
    %v3686 = vadd.f32 %v3517, %v3685
    %3687 = vdwg.mxu0
    %3688 = vmatpush.bf16.msra.mxu0 %v2552
    %3689 = vmatpush.bf16.msra.mxu0 %v2549
    %3690 = vmatpush.bf16.msra.mxu0 %v2546
    %3691 = vmatpush.bf16.msra.mxu0 %v2543
    %3692 = vmatpush.bf16.msra.mxu0 %v2540
    %3693 = vmatpush.bf16.msra.mxu0 %v2537
    %3694 = vmatpush.bf16.msra.mxu0 %v2534
    %3695 = vmatpush.bf16.msra.mxu0 %v2531
    %3696 = vmatmul.bf16.gmra.mxu0 %v1362
    %v3697 = vpop.f32.mrf.mxu0
    %v3698 = vadd.f32 %v3529, %v3697
    %v3699 = vpop.f32.mrf.mxu0
    %v3700 = vadd.f32 %v3531, %v3699
    %3701 = vmatmul.bf16.gmra.mxu0 %v1366
    %v3702 = vpop.f32.mrf.mxu0
    %v3703 = vadd.f32 %v3534, %v3702
    %v3704 = vpop.f32.mrf.mxu0
    %v3705 = vadd.f32 %v3536, %v3704
    %3706 = vmatmul.bf16.gmra.mxu0 %v1370
    %v3707 = vpop.f32.mrf.mxu0
    %v3708 = vadd.f32 %v3539, %v3707
    %v3709 = vpop.f32.mrf.mxu0
    %v3710 = vadd.f32 %v3541, %v3709
    %3711 = vmatmul.bf16.gmra.mxu0 %v1374
    %v3712 = vpop.f32.mrf.mxu0
    %v3713 = vadd.f32 %v3544, %v3712
    %v3714 = vpop.f32.mrf.mxu0
    %v3715 = vadd.f32 %v3546, %v3714
    %3716 = vmatmul.bf16.gmra.mxu0 %v1378
    %v3717 = vpop.f32.mrf.mxu0
    %v3718 = vadd.f32 %v3549, %v3717
    %v3719 = vpop.f32.mrf.mxu0
    %v3720 = vadd.f32 %v3551, %v3719
    %3721 = vmatmul.bf16.gmra.mxu0 %v1382
    %v3722 = vpop.f32.mrf.mxu0
    %v3723 = vadd.f32 %v3554, %v3722
    %v3724 = vpop.f32.mrf.mxu0
    %v3725 = vadd.f32 %v3556, %v3724
    %3726 = vmatmul.bf16.gmra.mxu0 %v1386
    %v3727 = vpop.f32.mrf.mxu0
    %v3728 = vadd.f32 %v3559, %v3727
    %v3729 = vpop.f32.mrf.mxu0
    %v3730 = vadd.f32 %v3561, %v3729
    %3731 = vmatmul.bf16.gmra.mxu0 %v1390
    %v3732 = vpop.f32.mrf.mxu0
    %v3733 = vadd.f32 %v3564, %v3732
    %v3734 = vpop.f32.mrf.mxu0
    %v3735 = vadd.f32 %v3566, %v3734
    %3736 = vmatmul.bf16.gmra.mxu0 %v1394
    %v3737 = vpop.f32.mrf.mxu0
    %v3738 = vadd.f32 %v3569, %v3737
    %v3739 = vpop.f32.mrf.mxu0
    %v3740 = vadd.f32 %v3571, %v3739
    %3741 = vmatmul.bf16.gmra.mxu0 %v1398
    %v3742 = vpop.f32.mrf.mxu0
    %v3743 = vadd.f32 %v3574, %v3742
    %v3744 = vpop.f32.mrf.mxu0
    %v3745 = vadd.f32 %v3576, %v3744
    %3746 = vmatmul.bf16.gmra.mxu0 %v1402
    %v3747 = vpop.f32.mrf.mxu0
    %v3748 = vadd.f32 %v3579, %v3747
    %v3749 = vpop.f32.mrf.mxu0
    %v3750 = vadd.f32 %v3581, %v3749
    %3751 = vmatmul.bf16.gmra.mxu0 %v1406
    %v3752 = vpop.f32.mrf.mxu0
    %v3753 = vadd.f32 %v3584, %v3752
    %v3754 = vpop.f32.mrf.mxu0
    %v3755 = vadd.f32 %v3586, %v3754
    %3756 = vmatmul.bf16.gmra.mxu0 %v1410
    %v3757 = vpop.f32.mrf.mxu0
    %v3758 = vadd.f32 %v3589, %v3757
    %v3759 = vpop.f32.mrf.mxu0
    %v3760 = vadd.f32 %v3591, %v3759
    %3761 = vmatmul.bf16.gmra.mxu0 %v1414
    %v3762 = vpop.f32.mrf.mxu0
    %v3763 = vadd.f32 %v3594, %v3762
    %v3764 = vpop.f32.mrf.mxu0
    %v3765 = vadd.f32 %v3596, %v3764
    %3766 = vmatmul.bf16.gmra.mxu0 %v1418
    %v3767 = vpop.f32.mrf.mxu0
    %v3768 = vadd.f32 %v3599, %v3767
    %v3769 = vpop.f32.mrf.mxu0
    %v3770 = vadd.f32 %v3601, %v3769
    %3771 = vmatmul.bf16.gmra.mxu0 %v1422
    %v3772 = vpop.f32.mrf.mxu0
    %v3773 = vadd.f32 %v3604, %v3772
    %v3774 = vpop.f32.mrf.mxu0
    %v3775 = vadd.f32 %v3606, %v3774
    %3776 = vmatmul.bf16.gmra.mxu0 %v1426
    %v3777 = vpop.f32.mrf.mxu0
    %v3778 = vadd.f32 %v3609, %v3777
    %v3779 = vpop.f32.mrf.mxu0
    %v3780 = vadd.f32 %v3611, %v3779
    %3781 = vmatmul.bf16.gmra.mxu0 %v1430
    %v3782 = vpop.f32.mrf.mxu0
    %v3783 = vadd.f32 %v3614, %v3782
    %v3784 = vpop.f32.mrf.mxu0
    %v3785 = vadd.f32 %v3616, %v3784
    %3786 = vmatmul.bf16.gmra.mxu0 %v1434
    %v3787 = vpop.f32.mrf.mxu0
    %v3788 = vadd.f32 %v3619, %v3787
    %v3789 = vpop.f32.mrf.mxu0
    %v3790 = vadd.f32 %v3621, %v3789
    %3791 = vmatmul.bf16.gmra.mxu0 %v1438
    %v3792 = vpop.f32.mrf.mxu0
    %v3793 = vadd.f32 %v3624, %v3792
    %v3794 = vpop.f32.mrf.mxu0
    %v3795 = vadd.f32 %v3626, %v3794
    %3796 = vmatmul.bf16.gmra.mxu0 %v1442
    %v3797 = vpop.f32.mrf.mxu0
    %v3798 = vadd.f32 %v3629, %v3797
    %v3799 = vpop.f32.mrf.mxu0
    %v3800 = vadd.f32 %v3631, %v3799
    %3801 = vmatmul.bf16.gmra.mxu0 %v1446
    %v3802 = vpop.f32.mrf.mxu0
    %v3803 = vadd.f32 %v3634, %v3802
    %v3804 = vpop.f32.mrf.mxu0
    %v3805 = vadd.f32 %v3636, %v3804
    %3806 = vmatmul.bf16.gmra.mxu0 %v1450
    %v3807 = vpop.f32.mrf.mxu0
    %v3808 = vadd.f32 %v3639, %v3807
    %v3809 = vpop.f32.mrf.mxu0
    %v3810 = vadd.f32 %v3641, %v3809
    %3811 = vmatmul.bf16.gmra.mxu0 %v1454
    %v3812 = vpop.f32.mrf.mxu0
    %v3813 = vadd.f32 %v3644, %v3812
    %v3814 = vpop.f32.mrf.mxu0
    %v3815 = vadd.f32 %v3646, %v3814
    %3816 = vmatmul.bf16.gmra.mxu0 %v1458
    %v3817 = vpop.f32.mrf.mxu0
    %v3818 = vadd.f32 %v3649, %v3817
    %v3819 = vpop.f32.mrf.mxu0
    %v3820 = vadd.f32 %v3651, %v3819
    %3821 = vmatmul.bf16.gmra.mxu0 %v1462
    %v3822 = vpop.f32.mrf.mxu0
    %v3823 = vadd.f32 %v3654, %v3822
    %v3824 = vpop.f32.mrf.mxu0
    %v3825 = vadd.f32 %v3656, %v3824
    %3826 = vmatmul.bf16.gmra.mxu0 %v1466
    %v3827 = vpop.f32.mrf.mxu0
    %v3828 = vadd.f32 %v3659, %v3827
    %v3829 = vpop.f32.mrf.mxu0
    %v3830 = vadd.f32 %v3661, %v3829
    %3831 = vmatmul.bf16.gmra.mxu0 %v1470
    %v3832 = vpop.f32.mrf.mxu0
    %v3833 = vadd.f32 %v3664, %v3832
    %v3834 = vpop.f32.mrf.mxu0
    %v3835 = vadd.f32 %v3666, %v3834
    %3836 = vmatmul.bf16.gmra.mxu0 %v1474
    %v3837 = vpop.f32.mrf.mxu0
    %v3838 = vadd.f32 %v3669, %v3837
    %v3839 = vpop.f32.mrf.mxu0
    %v3840 = vadd.f32 %v3671, %v3839
    %3841 = vmatmul.bf16.gmra.mxu0 %v1478
    %v3842 = vpop.f32.mrf.mxu0
    %v3843 = vadd.f32 %v3674, %v3842
    %v3844 = vpop.f32.mrf.mxu0
    %v3845 = vadd.f32 %v3676, %v3844
    %3846 = vmatmul.bf16.gmra.mxu0 %v1482
    %v3847 = vpop.f32.mrf.mxu0
    %v3848 = vadd.f32 %v3679, %v3847
    %v3849 = vpop.f32.mrf.mxu0
    %v3850 = vadd.f32 %v3681, %v3849
    %3851 = vmatmul.bf16.gmra.mxu0 %v1486
    %v3852 = vpop.f32.mrf.mxu0
    %v3853 = vadd.f32 %v3684, %v3852
    %v3854 = vpop.f32.mrf.mxu0
    %v3855 = vadd.f32 %v3686, %v3854
    %3856 = vdwg.mxu0
    %3857 = vmatpush.bf16.msra.mxu0 %v2576
    %3858 = vmatpush.bf16.msra.mxu0 %v2573
    %3859 = vmatpush.bf16.msra.mxu0 %v2570
    %3860 = vmatpush.bf16.msra.mxu0 %v2567
    %3861 = vmatpush.bf16.msra.mxu0 %v2564
    %3862 = vmatpush.bf16.msra.mxu0 %v2561
    %3863 = vmatpush.bf16.msra.mxu0 %v2558
    %3864 = vmatpush.bf16.msra.mxu0 %v2555
    %3865 = vmatmul.bf16.gmra.mxu0 %v1363
    %v3866 = vpop.f32.mrf.mxu0
    %v3867 = vadd.f32 %v3698, %v3866
    %v3868 = vpop.f32.mrf.mxu0
    %v3869 = vadd.f32 %v3700, %v3868
    %3870 = vmatmul.bf16.gmra.mxu0 %v1367
    %v3871 = vpop.f32.mrf.mxu0
    %v3872 = vadd.f32 %v3703, %v3871
    %v3873 = vpop.f32.mrf.mxu0
    %v3874 = vadd.f32 %v3705, %v3873
    %3875 = vmatmul.bf16.gmra.mxu0 %v1371
    %v3876 = vpop.f32.mrf.mxu0
    %v3877 = vadd.f32 %v3708, %v3876
    %v3878 = vpop.f32.mrf.mxu0
    %v3879 = vadd.f32 %v3710, %v3878
    %3880 = vmatmul.bf16.gmra.mxu0 %v1375
    %v3881 = vpop.f32.mrf.mxu0
    %v3882 = vadd.f32 %v3713, %v3881
    %v3883 = vpop.f32.mrf.mxu0
    %v3884 = vadd.f32 %v3715, %v3883
    %3885 = vmatmul.bf16.gmra.mxu0 %v1379
    %v3886 = vpop.f32.mrf.mxu0
    %v3887 = vadd.f32 %v3718, %v3886
    %v3888 = vpop.f32.mrf.mxu0
    %v3889 = vadd.f32 %v3720, %v3888
    %3890 = vmatmul.bf16.gmra.mxu0 %v1383
    %v3891 = vpop.f32.mrf.mxu0
    %v3892 = vadd.f32 %v3723, %v3891
    %v3893 = vpop.f32.mrf.mxu0
    %v3894 = vadd.f32 %v3725, %v3893
    %3895 = vmatmul.bf16.gmra.mxu0 %v1387
    %v3896 = vpop.f32.mrf.mxu0
    %v3897 = vadd.f32 %v3728, %v3896
    %v3898 = vpop.f32.mrf.mxu0
    %v3899 = vadd.f32 %v3730, %v3898
    %3900 = vmatmul.bf16.gmra.mxu0 %v1391
    %v3901 = vpop.f32.mrf.mxu0
    %v3902 = vadd.f32 %v3733, %v3901
    %v3903 = vpop.f32.mrf.mxu0
    %v3904 = vadd.f32 %v3735, %v3903
    %3905 = vmatmul.bf16.gmra.mxu0 %v1395
    %v3906 = vpop.f32.mrf.mxu0
    %v3907 = vadd.f32 %v3738, %v3906
    %v3908 = vpop.f32.mrf.mxu0
    %v3909 = vadd.f32 %v3740, %v3908
    %3910 = vmatmul.bf16.gmra.mxu0 %v1399
    %v3911 = vpop.f32.mrf.mxu0
    %v3912 = vadd.f32 %v3743, %v3911
    %v3913 = vpop.f32.mrf.mxu0
    %v3914 = vadd.f32 %v3745, %v3913
    %3915 = vmatmul.bf16.gmra.mxu0 %v1403
    %v3916 = vpop.f32.mrf.mxu0
    %v3917 = vadd.f32 %v3748, %v3916
    %v3918 = vpop.f32.mrf.mxu0
    %v3919 = vadd.f32 %v3750, %v3918
    %3920 = vmatmul.bf16.gmra.mxu0 %v1407
    %v3921 = vpop.f32.mrf.mxu0
    %v3922 = vadd.f32 %v3753, %v3921
    %v3923 = vpop.f32.mrf.mxu0
    %v3924 = vadd.f32 %v3755, %v3923
    %3925 = vmatmul.bf16.gmra.mxu0 %v1411
    %v3926 = vpop.f32.mrf.mxu0
    %v3927 = vadd.f32 %v3758, %v3926
    %v3928 = vpop.f32.mrf.mxu0
    %v3929 = vadd.f32 %v3760, %v3928
    %3930 = vmatmul.bf16.gmra.mxu0 %v1415
    %v3931 = vpop.f32.mrf.mxu0
    %v3932 = vadd.f32 %v3763, %v3931
    %v3933 = vpop.f32.mrf.mxu0
    %v3934 = vadd.f32 %v3765, %v3933
    %3935 = vmatmul.bf16.gmra.mxu0 %v1419
    %v3936 = vpop.f32.mrf.mxu0
    %v3937 = vadd.f32 %v3768, %v3936
    %v3938 = vpop.f32.mrf.mxu0
    %v3939 = vadd.f32 %v3770, %v3938
    %3940 = vmatmul.bf16.gmra.mxu0 %v1423
    %v3941 = vpop.f32.mrf.mxu0
    %v3942 = vadd.f32 %v3773, %v3941
    %v3943 = vpop.f32.mrf.mxu0
    %v3944 = vadd.f32 %v3775, %v3943
    %3945 = vmatmul.bf16.gmra.mxu0 %v1427
    %v3946 = vpop.f32.mrf.mxu0
    %v3947 = vadd.f32 %v3778, %v3946
    %v3948 = vpop.f32.mrf.mxu0
    %v3949 = vadd.f32 %v3780, %v3948
    %3950 = vmatmul.bf16.gmra.mxu0 %v1431
    %v3951 = vpop.f32.mrf.mxu0
    %v3952 = vadd.f32 %v3783, %v3951
    %v3953 = vpop.f32.mrf.mxu0
    %v3954 = vadd.f32 %v3785, %v3953
    %3955 = vmatmul.bf16.gmra.mxu0 %v1435
    %v3956 = vpop.f32.mrf.mxu0
    %v3957 = vadd.f32 %v3788, %v3956
    %v3958 = vpop.f32.mrf.mxu0
    %v3959 = vadd.f32 %v3790, %v3958
    %3960 = vmatmul.bf16.gmra.mxu0 %v1439
    %v3961 = vpop.f32.mrf.mxu0
    %v3962 = vadd.f32 %v3793, %v3961
    %v3963 = vpop.f32.mrf.mxu0
    %v3964 = vadd.f32 %v3795, %v3963
    %3965 = vmatmul.bf16.gmra.mxu0 %v1443
    %v3966 = vpop.f32.mrf.mxu0
    %v3967 = vadd.f32 %v3798, %v3966
    %v3968 = vpop.f32.mrf.mxu0
    %v3969 = vadd.f32 %v3800, %v3968
    %3970 = vmatmul.bf16.gmra.mxu0 %v1447
    %v3971 = vpop.f32.mrf.mxu0
    %v3972 = vadd.f32 %v3803, %v3971
    %v3973 = vpop.f32.mrf.mxu0
    %v3974 = vadd.f32 %v3805, %v3973
    %3975 = vmatmul.bf16.gmra.mxu0 %v1451
    %v3976 = vpop.f32.mrf.mxu0
    %v3977 = vadd.f32 %v3808, %v3976
    %v3978 = vpop.f32.mrf.mxu0
    %v3979 = vadd.f32 %v3810, %v3978
    %3980 = vmatmul.bf16.gmra.mxu0 %v1455
    %v3981 = vpop.f32.mrf.mxu0
    %v3982 = vadd.f32 %v3813, %v3981
    %v3983 = vpop.f32.mrf.mxu0
    %v3984 = vadd.f32 %v3815, %v3983
    %3985 = vmatmul.bf16.gmra.mxu0 %v1459
    %v3986 = vpop.f32.mrf.mxu0
    %v3987 = vadd.f32 %v3818, %v3986
    %v3988 = vpop.f32.mrf.mxu0
    %v3989 = vadd.f32 %v3820, %v3988
    %3990 = vmatmul.bf16.gmra.mxu0 %v1463
    %v3991 = vpop.f32.mrf.mxu0
    %v3992 = vadd.f32 %v3823, %v3991
    %v3993 = vpop.f32.mrf.mxu0
    %v3994 = vadd.f32 %v3825, %v3993
    %3995 = vmatmul.bf16.gmra.mxu0 %v1467
    %v3996 = vpop.f32.mrf.mxu0
    %v3997 = vadd.f32 %v3828, %v3996
    %v3998 = vpop.f32.mrf.mxu0
    %v3999 = vadd.f32 %v3830, %v3998
    %4000 = vmatmul.bf16.gmra.mxu0 %v1471
    %v4001 = vpop.f32.mrf.mxu0
    %v4002 = vadd.f32 %v3833, %v4001
    %v4003 = vpop.f32.mrf.mxu0
    %v4004 = vadd.f32 %v3835, %v4003
    %4005 = vmatmul.bf16.gmra.mxu0 %v1475
    %v4006 = vpop.f32.mrf.mxu0
    %v4007 = vadd.f32 %v3838, %v4006
    %v4008 = vpop.f32.mrf.mxu0
    %v4009 = vadd.f32 %v3840, %v4008
    %4010 = vmatmul.bf16.gmra.mxu0 %v1479
    %v4011 = vpop.f32.mrf.mxu0
    %v4012 = vadd.f32 %v3843, %v4011
    %v4013 = vpop.f32.mrf.mxu0
    %v4014 = vadd.f32 %v3845, %v4013
    %4015 = vmatmul.bf16.gmra.mxu0 %v1483
    %v4016 = vpop.f32.mrf.mxu0
    %v4017 = vadd.f32 %v3848, %v4016
    %v4018 = vpop.f32.mrf.mxu0
    %v4019 = vadd.f32 %v3850, %v4018
    %4020 = vmatmul.bf16.gmra.mxu0 %v1487
    %v4021 = vpop.f32.mrf.mxu0
    %v4022 = vadd.f32 %v3853, %v4021
    %v4023 = vpop.f32.mrf.mxu0
    %v4024 = vadd.f32 %v3855, %v4023
    %4025 = vdwg.mxu0
    %4026 = vmatpush.bf16.msra.mxu0 %v2505
    %4027 = vmatpush.bf16.msra.mxu0 %v2502
    %4028 = vmatpush.bf16.msra.mxu0 %v2499
    %4029 = vmatpush.bf16.msra.mxu0 %v2496
    %4030 = vmatpush.bf16.msra.mxu0 %v2493
    %4031 = vmatpush.bf16.msra.mxu0 %v2490
    %4032 = vmatpush.bf16.msra.mxu0 %v2487
    %4033 = vmatpush.bf16.msra.mxu0 %v2484
    %4034 = vmatmul.bf16.gmra.mxu0 %v1360
    %v4035 = vpop.f32.mrf.mxu0
    %v4036 = vadd.f32 %v2003, %v4035
    %v4037 = vpop.f32.mrf.mxu0
    %v4038 = vadd.f32 %v2005, %v4037
    %4039 = vmatmul.bf16.gmra.mxu0 %v1364
    %v4040 = vpop.f32.mrf.mxu0
    %v4041 = vadd.f32 %v2008, %v4040
    %v4042 = vpop.f32.mrf.mxu0
    %v4043 = vadd.f32 %v2010, %v4042
    %4044 = vmatmul.bf16.gmra.mxu0 %v1368
    %v4045 = vpop.f32.mrf.mxu0
    %v4046 = vadd.f32 %v2013, %v4045
    %v4047 = vpop.f32.mrf.mxu0
    %v4048 = vadd.f32 %v2015, %v4047
    %4049 = vmatmul.bf16.gmra.mxu0 %v1372
    %v4050 = vpop.f32.mrf.mxu0
    %v4051 = vadd.f32 %v2018, %v4050
    %v4052 = vpop.f32.mrf.mxu0
    %v4053 = vadd.f32 %v2020, %v4052
    %4054 = vmatmul.bf16.gmra.mxu0 %v1376
    %v4055 = vpop.f32.mrf.mxu0
    %v4056 = vadd.f32 %v2023, %v4055
    %v4057 = vpop.f32.mrf.mxu0
    %v4058 = vadd.f32 %v2025, %v4057
    %4059 = vmatmul.bf16.gmra.mxu0 %v1380
    %v4060 = vpop.f32.mrf.mxu0
    %v4061 = vadd.f32 %v2028, %v4060
    %v4062 = vpop.f32.mrf.mxu0
    %v4063 = vadd.f32 %v2030, %v4062
    %4064 = vmatmul.bf16.gmra.mxu0 %v1384
    %v4065 = vpop.f32.mrf.mxu0
    %v4066 = vadd.f32 %v2033, %v4065
    %v4067 = vpop.f32.mrf.mxu0
    %v4068 = vadd.f32 %v2035, %v4067
    %4069 = vmatmul.bf16.gmra.mxu0 %v1388
    %v4070 = vpop.f32.mrf.mxu0
    %v4071 = vadd.f32 %v2038, %v4070
    %v4072 = vpop.f32.mrf.mxu0
    %v4073 = vadd.f32 %v2040, %v4072
    %4074 = vmatmul.bf16.gmra.mxu0 %v1392
    %v4075 = vpop.f32.mrf.mxu0
    %v4076 = vadd.f32 %v2043, %v4075
    %v4077 = vpop.f32.mrf.mxu0
    %v4078 = vadd.f32 %v2045, %v4077
    %4079 = vmatmul.bf16.gmra.mxu0 %v1396
    %v4080 = vpop.f32.mrf.mxu0
    %v4081 = vadd.f32 %v2048, %v4080
    %v4082 = vpop.f32.mrf.mxu0
    %v4083 = vadd.f32 %v2050, %v4082
    %4084 = vmatmul.bf16.gmra.mxu0 %v1400
    %v4085 = vpop.f32.mrf.mxu0
    %v4086 = vadd.f32 %v2053, %v4085
    %v4087 = vpop.f32.mrf.mxu0
    %v4088 = vadd.f32 %v2055, %v4087
    %4089 = vmatmul.bf16.gmra.mxu0 %v1404
    %v4090 = vpop.f32.mrf.mxu0
    %v4091 = vadd.f32 %v2058, %v4090
    %v4092 = vpop.f32.mrf.mxu0
    %v4093 = vadd.f32 %v2060, %v4092
    %4094 = vmatmul.bf16.gmra.mxu0 %v1408
    %v4095 = vpop.f32.mrf.mxu0
    %v4096 = vadd.f32 %v2063, %v4095
    %v4097 = vpop.f32.mrf.mxu0
    %v4098 = vadd.f32 %v2065, %v4097
    %4099 = vmatmul.bf16.gmra.mxu0 %v1412
    %v4100 = vpop.f32.mrf.mxu0
    %v4101 = vadd.f32 %v2068, %v4100
    %v4102 = vpop.f32.mrf.mxu0
    %v4103 = vadd.f32 %v2070, %v4102
    %4104 = vmatmul.bf16.gmra.mxu0 %v1416
    %v4105 = vpop.f32.mrf.mxu0
    %v4106 = vadd.f32 %v2073, %v4105
    %v4107 = vpop.f32.mrf.mxu0
    %v4108 = vadd.f32 %v2075, %v4107
    %4109 = vmatmul.bf16.gmra.mxu0 %v1420
    %v4110 = vpop.f32.mrf.mxu0
    %v4111 = vadd.f32 %v2078, %v4110
    %v4112 = vpop.f32.mrf.mxu0
    %v4113 = vadd.f32 %v2080, %v4112
    %4114 = vmatmul.bf16.gmra.mxu0 %v1424
    %v4115 = vpop.f32.mrf.mxu0
    %v4116 = vadd.f32 %v2083, %v4115
    %v4117 = vpop.f32.mrf.mxu0
    %v4118 = vadd.f32 %v2085, %v4117
    %4119 = vmatmul.bf16.gmra.mxu0 %v1428
    %v4120 = vpop.f32.mrf.mxu0
    %v4121 = vadd.f32 %v2088, %v4120
    %v4122 = vpop.f32.mrf.mxu0
    %v4123 = vadd.f32 %v2090, %v4122
    %4124 = vmatmul.bf16.gmra.mxu0 %v1432
    %v4125 = vpop.f32.mrf.mxu0
    %v4126 = vadd.f32 %v2093, %v4125
    %v4127 = vpop.f32.mrf.mxu0
    %v4128 = vadd.f32 %v2095, %v4127
    %4129 = vmatmul.bf16.gmra.mxu0 %v1436
    %v4130 = vpop.f32.mrf.mxu0
    %v4131 = vadd.f32 %v2098, %v4130
    %v4132 = vpop.f32.mrf.mxu0
    %v4133 = vadd.f32 %v2100, %v4132
    %4134 = vmatmul.bf16.gmra.mxu0 %v1440
    %v4135 = vpop.f32.mrf.mxu0
    %v4136 = vadd.f32 %v2103, %v4135
    %v4137 = vpop.f32.mrf.mxu0
    %v4138 = vadd.f32 %v2105, %v4137
    %4139 = vmatmul.bf16.gmra.mxu0 %v1444
    %v4140 = vpop.f32.mrf.mxu0
    %v4141 = vadd.f32 %v2108, %v4140
    %v4142 = vpop.f32.mrf.mxu0
    %v4143 = vadd.f32 %v2110, %v4142
    %4144 = vmatmul.bf16.gmra.mxu0 %v1448
    %v4145 = vpop.f32.mrf.mxu0
    %v4146 = vadd.f32 %v2113, %v4145
    %v4147 = vpop.f32.mrf.mxu0
    %v4148 = vadd.f32 %v2115, %v4147
    %4149 = vmatmul.bf16.gmra.mxu0 %v1452
    %v4150 = vpop.f32.mrf.mxu0
    %v4151 = vadd.f32 %v2118, %v4150
    %v4152 = vpop.f32.mrf.mxu0
    %v4153 = vadd.f32 %v2120, %v4152
    %4154 = vmatmul.bf16.gmra.mxu0 %v1456
    %v4155 = vpop.f32.mrf.mxu0
    %v4156 = vadd.f32 %v2123, %v4155
    %v4157 = vpop.f32.mrf.mxu0
    %v4158 = vadd.f32 %v2125, %v4157
    %4159 = vmatmul.bf16.gmra.mxu0 %v1460
    %v4160 = vpop.f32.mrf.mxu0
    %v4161 = vadd.f32 %v2128, %v4160
    %v4162 = vpop.f32.mrf.mxu0
    %v4163 = vadd.f32 %v2130, %v4162
    %4164 = vmatmul.bf16.gmra.mxu0 %v1464
    %v4165 = vpop.f32.mrf.mxu0
    %v4166 = vadd.f32 %v2133, %v4165
    %v4167 = vpop.f32.mrf.mxu0
    %v4168 = vadd.f32 %v2135, %v4167
    %4169 = vmatmul.bf16.gmra.mxu0 %v1468
    %v4170 = vpop.f32.mrf.mxu0
    %v4171 = vadd.f32 %v2138, %v4170
    %v4172 = vpop.f32.mrf.mxu0
    %v4173 = vadd.f32 %v2140, %v4172
    %4174 = vmatmul.bf16.gmra.mxu0 %v1472
    %v4175 = vpop.f32.mrf.mxu0
    %v4176 = vadd.f32 %v2143, %v4175
    %v4177 = vpop.f32.mrf.mxu0
    %v4178 = vadd.f32 %v2145, %v4177
    %4179 = vmatmul.bf16.gmra.mxu0 %v1476
    %v4180 = vpop.f32.mrf.mxu0
    %v4181 = vadd.f32 %v2148, %v4180
    %v4182 = vpop.f32.mrf.mxu0
    %v4183 = vadd.f32 %v2150, %v4182
    %4184 = vmatmul.bf16.gmra.mxu0 %v1480
    %v4185 = vpop.f32.mrf.mxu0
    %v4186 = vadd.f32 %v2153, %v4185
    %v4187 = vpop.f32.mrf.mxu0
    %v4188 = vadd.f32 %v2155, %v4187
    %4189 = vmatmul.bf16.gmra.mxu0 %v1484
    %v4190 = vpop.f32.mrf.mxu0
    %v4191 = vadd.f32 %v2158, %v4190
    %v4192 = vpop.f32.mrf.mxu0
    %v4193 = vadd.f32 %v2160, %v4192
    %4194 = vdwg.mxu0
    %4195 = vmatpush.bf16.msra.mxu0 %v2529
    %4196 = vmatpush.bf16.msra.mxu0 %v2526
    %4197 = vmatpush.bf16.msra.mxu0 %v2523
    %4198 = vmatpush.bf16.msra.mxu0 %v2520
    %4199 = vmatpush.bf16.msra.mxu0 %v2517
    %4200 = vmatpush.bf16.msra.mxu0 %v2514
    %4201 = vmatpush.bf16.msra.mxu0 %v2511
    %4202 = vmatpush.bf16.msra.mxu0 %v2508
    %4203 = vmatmul.bf16.gmra.mxu0 %v1361
    %v4204 = vpop.f32.mrf.mxu0
    %v4205 = vadd.f32 %v4036, %v4204
    %v4206 = vpop.f32.mrf.mxu0
    %v4207 = vadd.f32 %v4038, %v4206
    %4208 = vmatmul.bf16.gmra.mxu0 %v1365
    %v4209 = vpop.f32.mrf.mxu0
    %v4210 = vadd.f32 %v4041, %v4209
    %v4211 = vpop.f32.mrf.mxu0
    %v4212 = vadd.f32 %v4043, %v4211
    %4213 = vmatmul.bf16.gmra.mxu0 %v1369
    %v4214 = vpop.f32.mrf.mxu0
    %v4215 = vadd.f32 %v4046, %v4214
    %v4216 = vpop.f32.mrf.mxu0
    %v4217 = vadd.f32 %v4048, %v4216
    %4218 = vmatmul.bf16.gmra.mxu0 %v1373
    %v4219 = vpop.f32.mrf.mxu0
    %v4220 = vadd.f32 %v4051, %v4219
    %v4221 = vpop.f32.mrf.mxu0
    %v4222 = vadd.f32 %v4053, %v4221
    %4223 = vmatmul.bf16.gmra.mxu0 %v1377
    %v4224 = vpop.f32.mrf.mxu0
    %v4225 = vadd.f32 %v4056, %v4224
    %v4226 = vpop.f32.mrf.mxu0
    %v4227 = vadd.f32 %v4058, %v4226
    %4228 = vmatmul.bf16.gmra.mxu0 %v1381
    %v4229 = vpop.f32.mrf.mxu0
    %v4230 = vadd.f32 %v4061, %v4229
    %v4231 = vpop.f32.mrf.mxu0
    %v4232 = vadd.f32 %v4063, %v4231
    %4233 = vmatmul.bf16.gmra.mxu0 %v1385
    %v4234 = vpop.f32.mrf.mxu0
    %v4235 = vadd.f32 %v4066, %v4234
    %v4236 = vpop.f32.mrf.mxu0
    %v4237 = vadd.f32 %v4068, %v4236
    %4238 = vmatmul.bf16.gmra.mxu0 %v1389
    %v4239 = vpop.f32.mrf.mxu0
    %v4240 = vadd.f32 %v4071, %v4239
    %v4241 = vpop.f32.mrf.mxu0
    %v4242 = vadd.f32 %v4073, %v4241
    %4243 = vmatmul.bf16.gmra.mxu0 %v1393
    %v4244 = vpop.f32.mrf.mxu0
    %v4245 = vadd.f32 %v4076, %v4244
    %v4246 = vpop.f32.mrf.mxu0
    %v4247 = vadd.f32 %v4078, %v4246
    %4248 = vmatmul.bf16.gmra.mxu0 %v1397
    %v4249 = vpop.f32.mrf.mxu0
    %v4250 = vadd.f32 %v4081, %v4249
    %v4251 = vpop.f32.mrf.mxu0
    %v4252 = vadd.f32 %v4083, %v4251
    %4253 = vmatmul.bf16.gmra.mxu0 %v1401
    %v4254 = vpop.f32.mrf.mxu0
    %v4255 = vadd.f32 %v4086, %v4254
    %v4256 = vpop.f32.mrf.mxu0
    %v4257 = vadd.f32 %v4088, %v4256
    %4258 = vmatmul.bf16.gmra.mxu0 %v1405
    %v4259 = vpop.f32.mrf.mxu0
    %v4260 = vadd.f32 %v4091, %v4259
    %v4261 = vpop.f32.mrf.mxu0
    %v4262 = vadd.f32 %v4093, %v4261
    %4263 = vmatmul.bf16.gmra.mxu0 %v1409
    %v4264 = vpop.f32.mrf.mxu0
    %v4265 = vadd.f32 %v4096, %v4264
    %v4266 = vpop.f32.mrf.mxu0
    %v4267 = vadd.f32 %v4098, %v4266
    %4268 = vmatmul.bf16.gmra.mxu0 %v1413
    %v4269 = vpop.f32.mrf.mxu0
    %v4270 = vadd.f32 %v4101, %v4269
    %v4271 = vpop.f32.mrf.mxu0
    %v4272 = vadd.f32 %v4103, %v4271
    %4273 = vmatmul.bf16.gmra.mxu0 %v1417
    %v4274 = vpop.f32.mrf.mxu0
    %v4275 = vadd.f32 %v4106, %v4274
    %v4276 = vpop.f32.mrf.mxu0
    %v4277 = vadd.f32 %v4108, %v4276
    %4278 = vmatmul.bf16.gmra.mxu0 %v1421
    %v4279 = vpop.f32.mrf.mxu0
    %v4280 = vadd.f32 %v4111, %v4279
    %v4281 = vpop.f32.mrf.mxu0
    %v4282 = vadd.f32 %v4113, %v4281
    %4283 = vmatmul.bf16.gmra.mxu0 %v1425
    %v4284 = vpop.f32.mrf.mxu0
    %v4285 = vadd.f32 %v4116, %v4284
    %v4286 = vpop.f32.mrf.mxu0
    %v4287 = vadd.f32 %v4118, %v4286
    %4288 = vmatmul.bf16.gmra.mxu0 %v1429
    %v4289 = vpop.f32.mrf.mxu0
    %v4290 = vadd.f32 %v4121, %v4289
    %v4291 = vpop.f32.mrf.mxu0
    %v4292 = vadd.f32 %v4123, %v4291
    %4293 = vmatmul.bf16.gmra.mxu0 %v1433
    %v4294 = vpop.f32.mrf.mxu0
    %v4295 = vadd.f32 %v4126, %v4294
    %v4296 = vpop.f32.mrf.mxu0
    %v4297 = vadd.f32 %v4128, %v4296
    %4298 = vmatmul.bf16.gmra.mxu0 %v1437
    %v4299 = vpop.f32.mrf.mxu0
    %v4300 = vadd.f32 %v4131, %v4299
    %v4301 = vpop.f32.mrf.mxu0
    %v4302 = vadd.f32 %v4133, %v4301
    %4303 = vmatmul.bf16.gmra.mxu0 %v1441
    %v4304 = vpop.f32.mrf.mxu0
    %v4305 = vadd.f32 %v4136, %v4304
    %v4306 = vpop.f32.mrf.mxu0
    %v4307 = vadd.f32 %v4138, %v4306
    %4308 = vmatmul.bf16.gmra.mxu0 %v1445
    %v4309 = vpop.f32.mrf.mxu0
    %v4310 = vadd.f32 %v4141, %v4309
    %v4311 = vpop.f32.mrf.mxu0
    %v4312 = vadd.f32 %v4143, %v4311
    %4313 = vmatmul.bf16.gmra.mxu0 %v1449
    %v4314 = vpop.f32.mrf.mxu0
    %v4315 = vadd.f32 %v4146, %v4314
    %v4316 = vpop.f32.mrf.mxu0
    %v4317 = vadd.f32 %v4148, %v4316
    %4318 = vmatmul.bf16.gmra.mxu0 %v1453
    %v4319 = vpop.f32.mrf.mxu0
    %v4320 = vadd.f32 %v4151, %v4319
    %v4321 = vpop.f32.mrf.mxu0
    %v4322 = vadd.f32 %v4153, %v4321
    %4323 = vmatmul.bf16.gmra.mxu0 %v1457
    %v4324 = vpop.f32.mrf.mxu0
    %v4325 = vadd.f32 %v4156, %v4324
    %v4326 = vpop.f32.mrf.mxu0
    %v4327 = vadd.f32 %v4158, %v4326
    %4328 = vmatmul.bf16.gmra.mxu0 %v1461
    %v4329 = vpop.f32.mrf.mxu0
    %v4330 = vadd.f32 %v4161, %v4329
    %v4331 = vpop.f32.mrf.mxu0
    %v4332 = vadd.f32 %v4163, %v4331
    %4333 = vmatmul.bf16.gmra.mxu0 %v1465
    %v4334 = vpop.f32.mrf.mxu0
    %v4335 = vadd.f32 %v4166, %v4334
    %v4336 = vpop.f32.mrf.mxu0
    %v4337 = vadd.f32 %v4168, %v4336
    %4338 = vmatmul.bf16.gmra.mxu0 %v1469
    %v4339 = vpop.f32.mrf.mxu0
    %v4340 = vadd.f32 %v4171, %v4339
    %v4341 = vpop.f32.mrf.mxu0
    %v4342 = vadd.f32 %v4173, %v4341
    %4343 = vmatmul.bf16.gmra.mxu0 %v1473
    %v4344 = vpop.f32.mrf.mxu0
    %v4345 = vadd.f32 %v4176, %v4344
    %v4346 = vpop.f32.mrf.mxu0
    %v4347 = vadd.f32 %v4178, %v4346
    %4348 = vmatmul.bf16.gmra.mxu0 %v1477
    %v4349 = vpop.f32.mrf.mxu0
    %v4350 = vadd.f32 %v4181, %v4349
    %v4351 = vpop.f32.mrf.mxu0
    %v4352 = vadd.f32 %v4183, %v4351
    %4353 = vmatmul.bf16.gmra.mxu0 %v1481
    %v4354 = vpop.f32.mrf.mxu0
    %v4355 = vadd.f32 %v4186, %v4354
    %v4356 = vpop.f32.mrf.mxu0
    %v4357 = vadd.f32 %v4188, %v4356
    %4358 = vmatmul.bf16.gmra.mxu0 %v1485
    %v4359 = vpop.f32.mrf.mxu0
    %v4360 = vadd.f32 %v4191, %v4359
    %v4361 = vpop.f32.mrf.mxu0
    %v4362 = vadd.f32 %v4193, %v4361
    %4363 = vdwg.mxu0
    %4364 = vmatpush.bf16.msra.mxu0 %v2553
    %4365 = vmatpush.bf16.msra.mxu0 %v2550
    %4366 = vmatpush.bf16.msra.mxu0 %v2547
    %4367 = vmatpush.bf16.msra.mxu0 %v2544
    %4368 = vmatpush.bf16.msra.mxu0 %v2541
    %4369 = vmatpush.bf16.msra.mxu0 %v2538
    %4370 = vmatpush.bf16.msra.mxu0 %v2535
    %4371 = vmatpush.bf16.msra.mxu0 %v2532
    %4372 = vmatmul.bf16.gmra.mxu0 %v1362
    %v4373 = vpop.f32.mrf.mxu0
    %v4374 = vadd.f32 %v4205, %v4373
    %v4375 = vpop.f32.mrf.mxu0
    %v4376 = vadd.f32 %v4207, %v4375
    %4377 = vmatmul.bf16.gmra.mxu0 %v1366
    %v4378 = vpop.f32.mrf.mxu0
    %v4379 = vadd.f32 %v4210, %v4378
    %v4380 = vpop.f32.mrf.mxu0
    %v4381 = vadd.f32 %v4212, %v4380
    %4382 = vmatmul.bf16.gmra.mxu0 %v1370
    %v4383 = vpop.f32.mrf.mxu0
    %v4384 = vadd.f32 %v4215, %v4383
    %v4385 = vpop.f32.mrf.mxu0
    %v4386 = vadd.f32 %v4217, %v4385
    %4387 = vmatmul.bf16.gmra.mxu0 %v1374
    %v4388 = vpop.f32.mrf.mxu0
    %v4389 = vadd.f32 %v4220, %v4388
    %v4390 = vpop.f32.mrf.mxu0
    %v4391 = vadd.f32 %v4222, %v4390
    %4392 = vmatmul.bf16.gmra.mxu0 %v1378
    %v4393 = vpop.f32.mrf.mxu0
    %v4394 = vadd.f32 %v4225, %v4393
    %v4395 = vpop.f32.mrf.mxu0
    %v4396 = vadd.f32 %v4227, %v4395
    %4397 = vmatmul.bf16.gmra.mxu0 %v1382
    %v4398 = vpop.f32.mrf.mxu0
    %v4399 = vadd.f32 %v4230, %v4398
    %v4400 = vpop.f32.mrf.mxu0
    %v4401 = vadd.f32 %v4232, %v4400
    %4402 = vmatmul.bf16.gmra.mxu0 %v1386
    %v4403 = vpop.f32.mrf.mxu0
    %v4404 = vadd.f32 %v4235, %v4403
    %v4405 = vpop.f32.mrf.mxu0
    %v4406 = vadd.f32 %v4237, %v4405
    %4407 = vmatmul.bf16.gmra.mxu0 %v1390
    %v4408 = vpop.f32.mrf.mxu0
    %v4409 = vadd.f32 %v4240, %v4408
    %v4410 = vpop.f32.mrf.mxu0
    %v4411 = vadd.f32 %v4242, %v4410
    %4412 = vmatmul.bf16.gmra.mxu0 %v1394
    %v4413 = vpop.f32.mrf.mxu0
    %v4414 = vadd.f32 %v4245, %v4413
    %v4415 = vpop.f32.mrf.mxu0
    %v4416 = vadd.f32 %v4247, %v4415
    %4417 = vmatmul.bf16.gmra.mxu0 %v1398
    %v4418 = vpop.f32.mrf.mxu0
    %v4419 = vadd.f32 %v4250, %v4418
    %v4420 = vpop.f32.mrf.mxu0
    %v4421 = vadd.f32 %v4252, %v4420
    %4422 = vmatmul.bf16.gmra.mxu0 %v1402
    %v4423 = vpop.f32.mrf.mxu0
    %v4424 = vadd.f32 %v4255, %v4423
    %v4425 = vpop.f32.mrf.mxu0
    %v4426 = vadd.f32 %v4257, %v4425
    %4427 = vmatmul.bf16.gmra.mxu0 %v1406
    %v4428 = vpop.f32.mrf.mxu0
    %v4429 = vadd.f32 %v4260, %v4428
    %v4430 = vpop.f32.mrf.mxu0
    %v4431 = vadd.f32 %v4262, %v4430
    %4432 = vmatmul.bf16.gmra.mxu0 %v1410
    %v4433 = vpop.f32.mrf.mxu0
    %v4434 = vadd.f32 %v4265, %v4433
    %v4435 = vpop.f32.mrf.mxu0
    %v4436 = vadd.f32 %v4267, %v4435
    %4437 = vmatmul.bf16.gmra.mxu0 %v1414
    %v4438 = vpop.f32.mrf.mxu0
    %v4439 = vadd.f32 %v4270, %v4438
    %v4440 = vpop.f32.mrf.mxu0
    %v4441 = vadd.f32 %v4272, %v4440
    %4442 = vmatmul.bf16.gmra.mxu0 %v1418
    %v4443 = vpop.f32.mrf.mxu0
    %v4444 = vadd.f32 %v4275, %v4443
    %v4445 = vpop.f32.mrf.mxu0
    %v4446 = vadd.f32 %v4277, %v4445
    %4447 = vmatmul.bf16.gmra.mxu0 %v1422
    %v4448 = vpop.f32.mrf.mxu0
    %v4449 = vadd.f32 %v4280, %v4448
    %v4450 = vpop.f32.mrf.mxu0
    %v4451 = vadd.f32 %v4282, %v4450
    %4452 = vmatmul.bf16.gmra.mxu0 %v1426
    %v4453 = vpop.f32.mrf.mxu0
    %v4454 = vadd.f32 %v4285, %v4453
    %v4455 = vpop.f32.mrf.mxu0
    %v4456 = vadd.f32 %v4287, %v4455
    %4457 = vmatmul.bf16.gmra.mxu0 %v1430
    %v4458 = vpop.f32.mrf.mxu0
    %v4459 = vadd.f32 %v4290, %v4458
    %v4460 = vpop.f32.mrf.mxu0
    %v4461 = vadd.f32 %v4292, %v4460
    %4462 = vmatmul.bf16.gmra.mxu0 %v1434
    %v4463 = vpop.f32.mrf.mxu0
    %v4464 = vadd.f32 %v4295, %v4463
    %v4465 = vpop.f32.mrf.mxu0
    %v4466 = vadd.f32 %v4297, %v4465
    %4467 = vmatmul.bf16.gmra.mxu0 %v1438
    %v4468 = vpop.f32.mrf.mxu0
    %v4469 = vadd.f32 %v4300, %v4468
    %v4470 = vpop.f32.mrf.mxu0
    %v4471 = vadd.f32 %v4302, %v4470
    %4472 = vmatmul.bf16.gmra.mxu0 %v1442
    %v4473 = vpop.f32.mrf.mxu0
    %v4474 = vadd.f32 %v4305, %v4473
    %v4475 = vpop.f32.mrf.mxu0
    %v4476 = vadd.f32 %v4307, %v4475
    %4477 = vmatmul.bf16.gmra.mxu0 %v1446
    %v4478 = vpop.f32.mrf.mxu0
    %v4479 = vadd.f32 %v4310, %v4478
    %v4480 = vpop.f32.mrf.mxu0
    %v4481 = vadd.f32 %v4312, %v4480
    %4482 = vmatmul.bf16.gmra.mxu0 %v1450
    %v4483 = vpop.f32.mrf.mxu0
    %v4484 = vadd.f32 %v4315, %v4483
    %v4485 = vpop.f32.mrf.mxu0
    %v4486 = vadd.f32 %v4317, %v4485
    %4487 = vmatmul.bf16.gmra.mxu0 %v1454
    %v4488 = vpop.f32.mrf.mxu0
    %v4489 = vadd.f32 %v4320, %v4488
    %v4490 = vpop.f32.mrf.mxu0
    %v4491 = vadd.f32 %v4322, %v4490
    %4492 = vmatmul.bf16.gmra.mxu0 %v1458
    %v4493 = vpop.f32.mrf.mxu0
    %v4494 = vadd.f32 %v4325, %v4493
    %v4495 = vpop.f32.mrf.mxu0
    %v4496 = vadd.f32 %v4327, %v4495
    %4497 = vmatmul.bf16.gmra.mxu0 %v1462
    %v4498 = vpop.f32.mrf.mxu0
    %v4499 = vadd.f32 %v4330, %v4498
    %v4500 = vpop.f32.mrf.mxu0
    %v4501 = vadd.f32 %v4332, %v4500
    %4502 = vmatmul.bf16.gmra.mxu0 %v1466
    %v4503 = vpop.f32.mrf.mxu0
    %v4504 = vadd.f32 %v4335, %v4503
    %v4505 = vpop.f32.mrf.mxu0
    %v4506 = vadd.f32 %v4337, %v4505
    %4507 = vmatmul.bf16.gmra.mxu0 %v1470
    %v4508 = vpop.f32.mrf.mxu0
    %v4509 = vadd.f32 %v4340, %v4508
    %v4510 = vpop.f32.mrf.mxu0
    %v4511 = vadd.f32 %v4342, %v4510
    %4512 = vmatmul.bf16.gmra.mxu0 %v1474
    %v4513 = vpop.f32.mrf.mxu0
    %v4514 = vadd.f32 %v4345, %v4513
    %v4515 = vpop.f32.mrf.mxu0
    %v4516 = vadd.f32 %v4347, %v4515
    %4517 = vmatmul.bf16.gmra.mxu0 %v1478
    %v4518 = vpop.f32.mrf.mxu0
    %v4519 = vadd.f32 %v4350, %v4518
    %v4520 = vpop.f32.mrf.mxu0
    %v4521 = vadd.f32 %v4352, %v4520
    %4522 = vmatmul.bf16.gmra.mxu0 %v1482
    %v4523 = vpop.f32.mrf.mxu0
    %v4524 = vadd.f32 %v4355, %v4523
    %v4525 = vpop.f32.mrf.mxu0
    %v4526 = vadd.f32 %v4357, %v4525
    %4527 = vmatmul.bf16.gmra.mxu0 %v1486
    %v4528 = vpop.f32.mrf.mxu0
    %v4529 = vadd.f32 %v4360, %v4528
    %v4530 = vpop.f32.mrf.mxu0
    %v4531 = vadd.f32 %v4362, %v4530
    %4532 = vdwg.mxu0
    %4533 = vmatpush.bf16.msra.mxu0 %v2577
    %4534 = vmatpush.bf16.msra.mxu0 %v2574
    %4535 = vmatpush.bf16.msra.mxu0 %v2571
    %4536 = vmatpush.bf16.msra.mxu0 %v2568
    %4537 = vmatpush.bf16.msra.mxu0 %v2565
    %4538 = vmatpush.bf16.msra.mxu0 %v2562
    %4539 = vmatpush.bf16.msra.mxu0 %v2559
    %4540 = vmatpush.bf16.msra.mxu0 %v2556
    %4541 = vmatmul.bf16.gmra.mxu0 %v1363
    %v4542 = vpop.f32.mrf.mxu0
    %v4543 = vadd.f32 %v4374, %v4542
    %v4544 = vpop.f32.mrf.mxu0
    %v4545 = vadd.f32 %v4376, %v4544
    %4546 = vmatmul.bf16.gmra.mxu0 %v1367
    %v4547 = vpop.f32.mrf.mxu0
    %v4548 = vadd.f32 %v4379, %v4547
    %v4549 = vpop.f32.mrf.mxu0
    %v4550 = vadd.f32 %v4381, %v4549
    %4551 = vmatmul.bf16.gmra.mxu0 %v1371
    %v4552 = vpop.f32.mrf.mxu0
    %v4553 = vadd.f32 %v4384, %v4552
    %v4554 = vpop.f32.mrf.mxu0
    %v4555 = vadd.f32 %v4386, %v4554
    %4556 = vmatmul.bf16.gmra.mxu0 %v1375
    %v4557 = vpop.f32.mrf.mxu0
    %v4558 = vadd.f32 %v4389, %v4557
    %v4559 = vpop.f32.mrf.mxu0
    %v4560 = vadd.f32 %v4391, %v4559
    %4561 = vmatmul.bf16.gmra.mxu0 %v1379
    %v4562 = vpop.f32.mrf.mxu0
    %v4563 = vadd.f32 %v4394, %v4562
    %v4564 = vpop.f32.mrf.mxu0
    %v4565 = vadd.f32 %v4396, %v4564
    %4566 = vmatmul.bf16.gmra.mxu0 %v1383
    %v4567 = vpop.f32.mrf.mxu0
    %v4568 = vadd.f32 %v4399, %v4567
    %v4569 = vpop.f32.mrf.mxu0
    %v4570 = vadd.f32 %v4401, %v4569
    %4571 = vmatmul.bf16.gmra.mxu0 %v1387
    %v4572 = vpop.f32.mrf.mxu0
    %v4573 = vadd.f32 %v4404, %v4572
    %v4574 = vpop.f32.mrf.mxu0
    %v4575 = vadd.f32 %v4406, %v4574
    %4576 = vmatmul.bf16.gmra.mxu0 %v1391
    %v4577 = vpop.f32.mrf.mxu0
    %v4578 = vadd.f32 %v4409, %v4577
    %v4579 = vpop.f32.mrf.mxu0
    %v4580 = vadd.f32 %v4411, %v4579
    %4581 = vmatmul.bf16.gmra.mxu0 %v1395
    %v4582 = vpop.f32.mrf.mxu0
    %v4583 = vadd.f32 %v4414, %v4582
    %v4584 = vpop.f32.mrf.mxu0
    %v4585 = vadd.f32 %v4416, %v4584
    %4586 = vmatmul.bf16.gmra.mxu0 %v1399
    %v4587 = vpop.f32.mrf.mxu0
    %v4588 = vadd.f32 %v4419, %v4587
    %v4589 = vpop.f32.mrf.mxu0
    %v4590 = vadd.f32 %v4421, %v4589
    %4591 = vmatmul.bf16.gmra.mxu0 %v1403
    %v4592 = vpop.f32.mrf.mxu0
    %v4593 = vadd.f32 %v4424, %v4592
    %v4594 = vpop.f32.mrf.mxu0
    %v4595 = vadd.f32 %v4426, %v4594
    %4596 = vmatmul.bf16.gmra.mxu0 %v1407
    %v4597 = vpop.f32.mrf.mxu0
    %v4598 = vadd.f32 %v4429, %v4597
    %v4599 = vpop.f32.mrf.mxu0
    %v4600 = vadd.f32 %v4431, %v4599
    %4601 = vmatmul.bf16.gmra.mxu0 %v1411
    %v4602 = vpop.f32.mrf.mxu0
    %v4603 = vadd.f32 %v4434, %v4602
    %v4604 = vpop.f32.mrf.mxu0
    %v4605 = vadd.f32 %v4436, %v4604
    %4606 = vmatmul.bf16.gmra.mxu0 %v1415
    %v4607 = vpop.f32.mrf.mxu0
    %v4608 = vadd.f32 %v4439, %v4607
    %v4609 = vpop.f32.mrf.mxu0
    %v4610 = vadd.f32 %v4441, %v4609
    %4611 = vmatmul.bf16.gmra.mxu0 %v1419
    %v4612 = vpop.f32.mrf.mxu0
    %v4613 = vadd.f32 %v4444, %v4612
    %v4614 = vpop.f32.mrf.mxu0
    %v4615 = vadd.f32 %v4446, %v4614
    %4616 = vmatmul.bf16.gmra.mxu0 %v1423
    %v4617 = vpop.f32.mrf.mxu0
    %v4618 = vadd.f32 %v4449, %v4617
    %v4619 = vpop.f32.mrf.mxu0
    %v4620 = vadd.f32 %v4451, %v4619
    %4621 = vmatmul.bf16.gmra.mxu0 %v1427
    %v4622 = vpop.f32.mrf.mxu0
    %v4623 = vadd.f32 %v4454, %v4622
    %v4624 = vpop.f32.mrf.mxu0
    %v4625 = vadd.f32 %v4456, %v4624
    %4626 = vmatmul.bf16.gmra.mxu0 %v1431
    %v4627 = vpop.f32.mrf.mxu0
    %v4628 = vadd.f32 %v4459, %v4627
    %v4629 = vpop.f32.mrf.mxu0
    %v4630 = vadd.f32 %v4461, %v4629
    %4631 = vmatmul.bf16.gmra.mxu0 %v1435
    %v4632 = vpop.f32.mrf.mxu0
    %v4633 = vadd.f32 %v4464, %v4632
    %v4634 = vpop.f32.mrf.mxu0
    %v4635 = vadd.f32 %v4466, %v4634
    %4636 = vmatmul.bf16.gmra.mxu0 %v1439
    %v4637 = vpop.f32.mrf.mxu0
    %v4638 = vadd.f32 %v4469, %v4637
    %v4639 = vpop.f32.mrf.mxu0
    %v4640 = vadd.f32 %v4471, %v4639
    %4641 = vmatmul.bf16.gmra.mxu0 %v1443
    %v4642 = vpop.f32.mrf.mxu0
    %v4643 = vadd.f32 %v4474, %v4642
    %v4644 = vpop.f32.mrf.mxu0
    %v4645 = vadd.f32 %v4476, %v4644
    %4646 = vmatmul.bf16.gmra.mxu0 %v1447
    %v4647 = vpop.f32.mrf.mxu0
    %v4648 = vadd.f32 %v4479, %v4647
    %v4649 = vpop.f32.mrf.mxu0
    %v4650 = vadd.f32 %v4481, %v4649
    %4651 = vmatmul.bf16.gmra.mxu0 %v1451
    %v4652 = vpop.f32.mrf.mxu0
    %v4653 = vadd.f32 %v4484, %v4652
    %v4654 = vpop.f32.mrf.mxu0
    %v4655 = vadd.f32 %v4486, %v4654
    %4656 = vmatmul.bf16.gmra.mxu0 %v1455
    %v4657 = vpop.f32.mrf.mxu0
    %v4658 = vadd.f32 %v4489, %v4657
    %v4659 = vpop.f32.mrf.mxu0
    %v4660 = vadd.f32 %v4491, %v4659
    %4661 = vmatmul.bf16.gmra.mxu0 %v1459
    %v4662 = vpop.f32.mrf.mxu0
    %v4663 = vadd.f32 %v4494, %v4662
    %v4664 = vpop.f32.mrf.mxu0
    %v4665 = vadd.f32 %v4496, %v4664
    %4666 = vmatmul.bf16.gmra.mxu0 %v1463
    %v4667 = vpop.f32.mrf.mxu0
    %v4668 = vadd.f32 %v4499, %v4667
    %v4669 = vpop.f32.mrf.mxu0
    %v4670 = vadd.f32 %v4501, %v4669
    %4671 = vmatmul.bf16.gmra.mxu0 %v1467
    %v4672 = vpop.f32.mrf.mxu0
    %v4673 = vadd.f32 %v4504, %v4672
    %v4674 = vpop.f32.mrf.mxu0
    %v4675 = vadd.f32 %v4506, %v4674
    %4676 = vmatmul.bf16.gmra.mxu0 %v1471
    %v4677 = vpop.f32.mrf.mxu0
    %v4678 = vadd.f32 %v4509, %v4677
    %v4679 = vpop.f32.mrf.mxu0
    %v4680 = vadd.f32 %v4511, %v4679
    %4681 = vmatmul.bf16.gmra.mxu0 %v1475
    %v4682 = vpop.f32.mrf.mxu0
    %v4683 = vadd.f32 %v4514, %v4682
    %v4684 = vpop.f32.mrf.mxu0
    %v4685 = vadd.f32 %v4516, %v4684
    %4686 = vmatmul.bf16.gmra.mxu0 %v1479
    %v4687 = vpop.f32.mrf.mxu0
    %v4688 = vadd.f32 %v4519, %v4687
    %v4689 = vpop.f32.mrf.mxu0
    %v4690 = vadd.f32 %v4521, %v4689
    %4691 = vmatmul.bf16.gmra.mxu0 %v1483
    %v4692 = vpop.f32.mrf.mxu0
    %v4693 = vadd.f32 %v4524, %v4692
    %v4694 = vpop.f32.mrf.mxu0
    %v4695 = vadd.f32 %v4526, %v4694
    %4696 = vmatmul.bf16.gmra.mxu0 %v1487
    %v4697 = vpop.f32.mrf.mxu0
    %v4698 = vadd.f32 %v4529, %v4697
    %v4699 = vpop.f32.mrf.mxu0
    %v4700 = vadd.f32 %v4531, %v4699
    %4701 = vdwg.mxu0
    %v4702 = vld [vmem:[%s5] sm:$0x7]
    %v4704 = vperm.slane %v4702, 0
    %v4705 = vperm.slane %v4702, 1
    %v4706 = vperm.slane %v4702, 2
    %v4710 = vadd.f32 %v3191, %v4704
    %v4711 = vadd.f32 %v3867, %v4705
    %v4712 = vadd.f32 %v4543, %v4706
    %v4713 = vadd.f32 %v3193, %v4704
    %v4714 = vadd.f32 %v3869, %v4705
    %v4715 = vadd.f32 %v4545, %v4706
    %v4716 = vadd.f32 %v3196, %v4704
    %v4717 = vadd.f32 %v3872, %v4705
    %v4718 = vadd.f32 %v4548, %v4706
    %v4719 = vadd.f32 %v3198, %v4704
    %v4720 = vadd.f32 %v3874, %v4705
    %v4721 = vadd.f32 %v4550, %v4706
    %v4722 = vadd.f32 %v3201, %v4704
    %v4723 = vadd.f32 %v3877, %v4705
    %v4724 = vadd.f32 %v4553, %v4706
    %v4725 = vadd.f32 %v3203, %v4704
    %v4726 = vadd.f32 %v3879, %v4705
    %v4727 = vadd.f32 %v4555, %v4706
    %v4728 = vadd.f32 %v3206, %v4704
    %v4729 = vadd.f32 %v3882, %v4705
    %v4730 = vadd.f32 %v4558, %v4706
    %v4731 = vadd.f32 %v3208, %v4704
    %v4732 = vadd.f32 %v3884, %v4705
    %v4733 = vadd.f32 %v4560, %v4706
    %v4734 = vadd.f32 %v3211, %v4704
    %v4735 = vadd.f32 %v3887, %v4705
    %v4736 = vadd.f32 %v4563, %v4706
    %v4737 = vadd.f32 %v3213, %v4704
    %v4738 = vadd.f32 %v3889, %v4705
    %v4739 = vadd.f32 %v4565, %v4706
    %v4740 = vadd.f32 %v3216, %v4704
    %v4741 = vadd.f32 %v3892, %v4705
    %v4742 = vadd.f32 %v4568, %v4706
    %v4743 = vadd.f32 %v3218, %v4704
    %v4744 = vadd.f32 %v3894, %v4705
    %v4745 = vadd.f32 %v4570, %v4706
    %v4746 = vadd.f32 %v3221, %v4704
    %v4747 = vadd.f32 %v3897, %v4705
    %v4748 = vadd.f32 %v4573, %v4706
    %v4749 = vadd.f32 %v3223, %v4704
    %v4750 = vadd.f32 %v3899, %v4705
    %v4751 = vadd.f32 %v4575, %v4706
    %v4752 = vadd.f32 %v3226, %v4704
    %v4753 = vadd.f32 %v3902, %v4705
    %v4754 = vadd.f32 %v4578, %v4706
    %v4755 = vadd.f32 %v3228, %v4704
    %v4756 = vadd.f32 %v3904, %v4705
    %v4757 = vadd.f32 %v4580, %v4706
    %v4758 = vadd.f32 %v3231, %v4704
    %v4759 = vadd.f32 %v3907, %v4705
    %v4760 = vadd.f32 %v4583, %v4706
    %v4761 = vadd.f32 %v3233, %v4704
    %v4762 = vadd.f32 %v3909, %v4705
    %v4763 = vadd.f32 %v4585, %v4706
    %v4764 = vadd.f32 %v3236, %v4704
    %v4765 = vadd.f32 %v3912, %v4705
    %v4766 = vadd.f32 %v4588, %v4706
    %v4767 = vadd.f32 %v3238, %v4704
    %v4768 = vadd.f32 %v3914, %v4705
    %v4769 = vadd.f32 %v4590, %v4706
    %v4770 = vadd.f32 %v3241, %v4704
    %v4771 = vadd.f32 %v3917, %v4705
    %v4772 = vadd.f32 %v4593, %v4706
    %v4773 = vadd.f32 %v3243, %v4704
    %v4774 = vadd.f32 %v3919, %v4705
    %v4775 = vadd.f32 %v4595, %v4706
    %v4776 = vadd.f32 %v3246, %v4704
    %v4777 = vadd.f32 %v3922, %v4705
    %v4778 = vadd.f32 %v4598, %v4706
    %v4779 = vadd.f32 %v3248, %v4704
    %v4780 = vadd.f32 %v3924, %v4705
    %v4781 = vadd.f32 %v4600, %v4706
    %v4782 = vadd.f32 %v3251, %v4704
    %v4783 = vadd.f32 %v3927, %v4705
    %v4784 = vadd.f32 %v4603, %v4706
    %v4785 = vadd.f32 %v3253, %v4704
    %v4786 = vadd.f32 %v3929, %v4705
    %v4787 = vadd.f32 %v4605, %v4706
    %v4788 = vadd.f32 %v3256, %v4704
    %v4789 = vadd.f32 %v3932, %v4705
    %v4790 = vadd.f32 %v4608, %v4706
    %v4791 = vadd.f32 %v3258, %v4704
    %v4792 = vadd.f32 %v3934, %v4705
    %v4793 = vadd.f32 %v4610, %v4706
    %v4794 = vadd.f32 %v3261, %v4704
    %v4795 = vadd.f32 %v3937, %v4705
    %v4796 = vadd.f32 %v4613, %v4706
    %v4797 = vadd.f32 %v3263, %v4704
    %v4798 = vadd.f32 %v3939, %v4705
    %v4799 = vadd.f32 %v4615, %v4706
    %v4800 = vadd.f32 %v3266, %v4704
    %v4801 = vadd.f32 %v3942, %v4705
    %v4802 = vadd.f32 %v4618, %v4706
    %v4803 = vadd.f32 %v3268, %v4704
    %v4804 = vadd.f32 %v3944, %v4705
    %v4805 = vadd.f32 %v4620, %v4706
    %v4806 = vadd.f32 %v3271, %v4704
    %v4807 = vadd.f32 %v3947, %v4705
    %v4808 = vadd.f32 %v4623, %v4706
    %v4809 = vadd.f32 %v3273, %v4704
    %v4810 = vadd.f32 %v3949, %v4705
    %v4811 = vadd.f32 %v4625, %v4706
    %v4812 = vadd.f32 %v3276, %v4704
    %v4813 = vadd.f32 %v3952, %v4705
    %v4814 = vadd.f32 %v4628, %v4706
    %v4815 = vadd.f32 %v3278, %v4704
    %v4816 = vadd.f32 %v3954, %v4705
    %v4817 = vadd.f32 %v4630, %v4706
    %v4818 = vadd.f32 %v3281, %v4704
    %v4819 = vadd.f32 %v3957, %v4705
    %v4820 = vadd.f32 %v4633, %v4706
    %v4821 = vadd.f32 %v3283, %v4704
    %v4822 = vadd.f32 %v3959, %v4705
    %v4823 = vadd.f32 %v4635, %v4706
    %v4824 = vadd.f32 %v3286, %v4704
    %v4825 = vadd.f32 %v3962, %v4705
    %v4826 = vadd.f32 %v4638, %v4706
    %v4827 = vadd.f32 %v3288, %v4704
    %v4828 = vadd.f32 %v3964, %v4705
    %v4829 = vadd.f32 %v4640, %v4706
    %v4830 = vadd.f32 %v3291, %v4704
    %v4831 = vadd.f32 %v3967, %v4705
    %v4832 = vadd.f32 %v4643, %v4706
    %v4833 = vadd.f32 %v3293, %v4704
    %v4834 = vadd.f32 %v3969, %v4705
    %v4835 = vadd.f32 %v4645, %v4706
    %v4836 = vadd.f32 %v3296, %v4704
    %v4837 = vadd.f32 %v3972, %v4705
    %v4838 = vadd.f32 %v4648, %v4706
    %v4839 = vadd.f32 %v3298, %v4704
    %v4840 = vadd.f32 %v3974, %v4705
    %v4841 = vadd.f32 %v4650, %v4706
    %v4842 = vadd.f32 %v3301, %v4704
    %v4843 = vadd.f32 %v3977, %v4705
    %v4844 = vadd.f32 %v4653, %v4706
    %v4845 = vadd.f32 %v3303, %v4704
    %v4846 = vadd.f32 %v3979, %v4705
    %v4847 = vadd.f32 %v4655, %v4706
    %v4848 = vadd.f32 %v3306, %v4704
    %v4849 = vadd.f32 %v3982, %v4705
    %v4850 = vadd.f32 %v4658, %v4706
    %v4851 = vadd.f32 %v3308, %v4704
    %v4852 = vadd.f32 %v3984, %v4705
    %v4853 = vadd.f32 %v4660, %v4706
    %v4854 = vadd.f32 %v3311, %v4704
    %v4855 = vadd.f32 %v3987, %v4705
    %v4856 = vadd.f32 %v4663, %v4706
    %v4857 = vadd.f32 %v3313, %v4704
    %v4858 = vadd.f32 %v3989, %v4705
    %v4859 = vadd.f32 %v4665, %v4706
    %v4860 = vadd.f32 %v3316, %v4704
    %v4861 = vadd.f32 %v3992, %v4705
    %v4862 = vadd.f32 %v4668, %v4706
    %v4863 = vadd.f32 %v3318, %v4704
    %v4864 = vadd.f32 %v3994, %v4705
    %v4865 = vadd.f32 %v4670, %v4706
    %v4866 = vadd.f32 %v3321, %v4704
    %v4867 = vadd.f32 %v3997, %v4705
    %v4868 = vadd.f32 %v4673, %v4706
    %v4869 = vadd.f32 %v3323, %v4704
    %v4870 = vadd.f32 %v3999, %v4705
    %v4871 = vadd.f32 %v4675, %v4706
    %v4872 = vadd.f32 %v3326, %v4704
    %v4873 = vadd.f32 %v4002, %v4705
    %v4874 = vadd.f32 %v4678, %v4706
    %v4875 = vadd.f32 %v3328, %v4704
    %v4876 = vadd.f32 %v4004, %v4705
    %v4877 = vadd.f32 %v4680, %v4706
    %v4878 = vadd.f32 %v3331, %v4704
    %v4879 = vadd.f32 %v4007, %v4705
    %v4880 = vadd.f32 %v4683, %v4706
    %v4881 = vadd.f32 %v3333, %v4704
    %v4882 = vadd.f32 %v4009, %v4705
    %v4883 = vadd.f32 %v4685, %v4706
    %v4884 = vadd.f32 %v3336, %v4704
    %v4885 = vadd.f32 %v4012, %v4705
    %v4886 = vadd.f32 %v4688, %v4706
    %v4887 = vadd.f32 %v3338, %v4704
    %v4888 = vadd.f32 %v4014, %v4705
    %v4889 = vadd.f32 %v4690, %v4706
    %v4890 = vadd.f32 %v3341, %v4704
    %v4891 = vadd.f32 %v4017, %v4705
    %v4892 = vadd.f32 %v4693, %v4706
    %v4893 = vadd.f32 %v3343, %v4704
    %v4894 = vadd.f32 %v4019, %v4705
    %v4895 = vadd.f32 %v4695, %v4706
    %v4896 = vadd.f32 %v3346, %v4704
    %v4897 = vadd.f32 %v4022, %v4705
    %v4898 = vadd.f32 %v4698, %v4706
    %v4899 = vadd.f32 %v3348, %v4704
    %v4900 = vadd.f32 %v4024, %v4705
    %v4901 = vadd.f32 %v4700, %v4706
    %v4902 = vmax.f32 %v4710, 0.0
    %v4903 = vmax.f32 %v4711, 0.0
    %v4904 = vmax.f32 %v4712, 0.0
    %v4905 = vmax.f32 %v4713, 0.0
    %v4906 = vmax.f32 %v4714, 0.0
    %v4907 = vmax.f32 %v4715, 0.0
    %v4908 = vmax.f32 %v4716, 0.0
    %v4909 = vmax.f32 %v4717, 0.0
    %v4910 = vmax.f32 %v4718, 0.0
    %v4911 = vmax.f32 %v4719, 0.0
    %v4912 = vmax.f32 %v4720, 0.0
    %v4913 = vmax.f32 %v4721, 0.0
    %v4914 = vmax.f32 %v4722, 0.0
    %v4915 = vmax.f32 %v4723, 0.0
    %v4916 = vmax.f32 %v4724, 0.0
    %v4917 = vmax.f32 %v4725, 0.0
    %v4918 = vmax.f32 %v4726, 0.0
    %v4919 = vmax.f32 %v4727, 0.0
    %v4920 = vmax.f32 %v4728, 0.0
    %v4921 = vmax.f32 %v4729, 0.0
    %v4922 = vmax.f32 %v4730, 0.0
    %v4923 = vmax.f32 %v4731, 0.0
    %v4924 = vmax.f32 %v4732, 0.0
    %v4925 = vmax.f32 %v4733, 0.0
    %v4926 = vmax.f32 %v4734, 0.0
    %v4927 = vmax.f32 %v4735, 0.0
    %v4928 = vmax.f32 %v4736, 0.0
    %v4929 = vmax.f32 %v4737, 0.0
    %v4930 = vmax.f32 %v4738, 0.0
    %v4931 = vmax.f32 %v4739, 0.0
    %v4932 = vmax.f32 %v4740, 0.0
    %v4933 = vmax.f32 %v4741, 0.0
    %v4934 = vmax.f32 %v4742, 0.0
    %v4935 = vmax.f32 %v4743, 0.0
    %v4936 = vmax.f32 %v4744, 0.0
    %v4937 = vmax.f32 %v4745, 0.0
    %v4938 = vmax.f32 %v4746, 0.0
    %v4939 = vmax.f32 %v4747, 0.0
    %v4940 = vmax.f32 %v4748, 0.0
    %v4941 = vmax.f32 %v4749, 0.0
    %v4942 = vmax.f32 %v4750, 0.0
    %v4943 = vmax.f32 %v4751, 0.0
    %v4944 = vmax.f32 %v4752, 0.0
    %v4945 = vmax.f32 %v4753, 0.0
    %v4946 = vmax.f32 %v4754, 0.0
    %v4947 = vmax.f32 %v4755, 0.0
    %v4948 = vmax.f32 %v4756, 0.0
    %v4949 = vmax.f32 %v4757, 0.0
    %v4950 = vmax.f32 %v4758, 0.0
    %v4951 = vmax.f32 %v4759, 0.0
    %v4952 = vmax.f32 %v4760, 0.0
    %v4953 = vmax.f32 %v4761, 0.0
    %v4954 = vmax.f32 %v4762, 0.0
    %v4955 = vmax.f32 %v4763, 0.0
    %v4956 = vmax.f32 %v4764, 0.0
    %v4957 = vmax.f32 %v4765, 0.0
    %v4958 = vmax.f32 %v4766, 0.0
    %v4959 = vmax.f32 %v4767, 0.0
    %v4960 = vmax.f32 %v4768, 0.0
    %v4961 = vmax.f32 %v4769, 0.0
    %v4962 = vmax.f32 %v4770, 0.0
    %v4963 = vmax.f32 %v4771, 0.0
    %v4964 = vmax.f32 %v4772, 0.0
    %v4965 = vmax.f32 %v4773, 0.0
    %v4966 = vmax.f32 %v4774, 0.0
    %v4967 = vmax.f32 %v4775, 0.0
    %v4968 = vmax.f32 %v4776, 0.0
    %v4969 = vmax.f32 %v4777, 0.0
    %v4970 = vmax.f32 %v4778, 0.0
    %v4971 = vmax.f32 %v4779, 0.0
    %v4972 = vmax.f32 %v4780, 0.0
    %v4973 = vmax.f32 %v4781, 0.0
    %v4974 = vmax.f32 %v4782, 0.0
    %v4975 = vmax.f32 %v4783, 0.0
    %v4976 = vmax.f32 %v4784, 0.0
    %v4977 = vmax.f32 %v4785, 0.0
    %v4978 = vmax.f32 %v4786, 0.0
    %v4979 = vmax.f32 %v4787, 0.0
    %v4980 = vmax.f32 %v4788, 0.0
    %v4981 = vmax.f32 %v4789, 0.0
    %v4982 = vmax.f32 %v4790, 0.0
    %v4983 = vmax.f32 %v4791, 0.0
    %v4984 = vmax.f32 %v4792, 0.0
    %v4985 = vmax.f32 %v4793, 0.0
    %v4986 = vmax.f32 %v4794, 0.0
    %v4987 = vmax.f32 %v4795, 0.0
    %v4988 = vmax.f32 %v4796, 0.0
    %v4989 = vmax.f32 %v4797, 0.0
    %v4990 = vmax.f32 %v4798, 0.0
    %v4991 = vmax.f32 %v4799, 0.0
    %v4992 = vmax.f32 %v4800, 0.0
    %v4993 = vmax.f32 %v4801, 0.0
    %v4994 = vmax.f32 %v4802, 0.0
    %v4995 = vmax.f32 %v4803, 0.0
    %v4996 = vmax.f32 %v4804, 0.0
    %v4997 = vmax.f32 %v4805, 0.0
    %v4998 = vmax.f32 %v4806, 0.0
    %v4999 = vmax.f32 %v4807, 0.0
    %v5000 = vmax.f32 %v4808, 0.0
    %v5001 = vmax.f32 %v4809, 0.0
    %v5002 = vmax.f32 %v4810, 0.0
    %v5003 = vmax.f32 %v4811, 0.0
    %v5004 = vmax.f32 %v4812, 0.0
    %v5005 = vmax.f32 %v4813, 0.0
    %v5006 = vmax.f32 %v4814, 0.0
    %v5007 = vmax.f32 %v4815, 0.0
    %v5008 = vmax.f32 %v4816, 0.0
    %v5009 = vmax.f32 %v4817, 0.0
    %v5010 = vmax.f32 %v4818, 0.0
    %v5011 = vmax.f32 %v4819, 0.0
    %v5012 = vmax.f32 %v4820, 0.0
    %v5013 = vmax.f32 %v4821, 0.0
    %v5014 = vmax.f32 %v4822, 0.0
    %v5015 = vmax.f32 %v4823, 0.0
    %v5016 = vmax.f32 %v4824, 0.0
    %v5017 = vmax.f32 %v4825, 0.0
    %v5018 = vmax.f32 %v4826, 0.0
    %v5019 = vmax.f32 %v4827, 0.0
    %v5020 = vmax.f32 %v4828, 0.0
    %v5021 = vmax.f32 %v4829, 0.0
    %v5022 = vmax.f32 %v4830, 0.0
    %v5023 = vmax.f32 %v4831, 0.0
    %v5024 = vmax.f32 %v4832, 0.0
    %v5025 = vmax.f32 %v4833, 0.0
    %v5026 = vmax.f32 %v4834, 0.0
    %v5027 = vmax.f32 %v4835, 0.0
    %v5028 = vmax.f32 %v4836, 0.0
    %v5029 = vmax.f32 %v4837, 0.0
    %v5030 = vmax.f32 %v4838, 0.0
    %v5031 = vmax.f32 %v4839, 0.0
    %v5032 = vmax.f32 %v4840, 0.0
    %v5033 = vmax.f32 %v4841, 0.0
    %v5034 = vmax.f32 %v4842, 0.0
    %v5035 = vmax.f32 %v4843, 0.0
    %v5036 = vmax.f32 %v4844, 0.0
    %v5037 = vmax.f32 %v4845, 0.0
    %v5038 = vmax.f32 %v4846, 0.0
    %v5039 = vmax.f32 %v4847, 0.0
    %v5040 = vmax.f32 %v4848, 0.0
    %v5041 = vmax.f32 %v4849, 0.0
    %v5042 = vmax.f32 %v4850, 0.0
    %v5043 = vmax.f32 %v4851, 0.0
    %v5044 = vmax.f32 %v4852, 0.0
    %v5045 = vmax.f32 %v4853, 0.0
    %v5046 = vmax.f32 %v4854, 0.0
    %v5047 = vmax.f32 %v4855, 0.0
    %v5048 = vmax.f32 %v4856, 0.0
    %v5049 = vmax.f32 %v4857, 0.0
    %v5050 = vmax.f32 %v4858, 0.0
    %v5051 = vmax.f32 %v4859, 0.0
    %v5052 = vmax.f32 %v4860, 0.0
    %v5053 = vmax.f32 %v4861, 0.0
    %v5054 = vmax.f32 %v4862, 0.0
    %v5055 = vmax.f32 %v4863, 0.0
    %v5056 = vmax.f32 %v4864, 0.0
    %v5057 = vmax.f32 %v4865, 0.0
    %v5058 = vmax.f32 %v4866, 0.0
    %v5059 = vmax.f32 %v4867, 0.0
    %v5060 = vmax.f32 %v4868, 0.0
    %v5061 = vmax.f32 %v4869, 0.0
    %v5062 = vmax.f32 %v4870, 0.0
    %v5063 = vmax.f32 %v4871, 0.0
    %v5064 = vmax.f32 %v4872, 0.0
    %v5065 = vmax.f32 %v4873, 0.0
    %v5066 = vmax.f32 %v4874, 0.0
    %v5067 = vmax.f32 %v4875, 0.0
    %v5068 = vmax.f32 %v4876, 0.0
    %v5069 = vmax.f32 %v4877, 0.0
    %v5070 = vmax.f32 %v4878, 0.0
    %v5071 = vmax.f32 %v4879, 0.0
    %v5072 = vmax.f32 %v4880, 0.0
    %v5073 = vmax.f32 %v4881, 0.0
    %v5074 = vmax.f32 %v4882, 0.0
    %v5075 = vmax.f32 %v4883, 0.0
    %v5076 = vmax.f32 %v4884, 0.0
    %v5077 = vmax.f32 %v4885, 0.0
    %v5078 = vmax.f32 %v4886, 0.0
    %v5079 = vmax.f32 %v4887, 0.0
    %v5080 = vmax.f32 %v4888, 0.0
    %v5081 = vmax.f32 %v4889, 0.0
    %v5082 = vmax.f32 %v4890, 0.0
    %v5083 = vmax.f32 %v4891, 0.0
    %v5084 = vmax.f32 %v4892, 0.0
    %v5085 = vmax.f32 %v4893, 0.0
    %v5086 = vmax.f32 %v4894, 0.0
    %v5087 = vmax.f32 %v4895, 0.0
    %v5088 = vmax.f32 %v4896, 0.0
    %v5089 = vmax.f32 %v4897, 0.0
    %v5090 = vmax.f32 %v4898, 0.0
    %v5091 = vmax.f32 %v4899, 0.0
    %v5092 = vmax.f32 %v4900, 0.0
    %v5093 = vmax.f32 %v4901, 0.0
    %v5094 = vld [vmem:[%s6] sm:$0x7]
    %v5095 = vunpack.c.l.bf16 %v5094
    %v5097 = vperm.slane %v5095, 0
    %v5098 = vperm.slane %v5095, 2
    %v5099 = vperm.slane %v5095, 4
    %v5103 = vperm.slane %v5097, 0
    %v5104 = vperm.slane %v5098, 0
    %v5105 = vperm.slane %v5099, 0
    %v5106 = vmul.f32 %v4902, %v5103
    %v5107 = vmul.f32 %v4903, %v5104
    %v5108 = vmul.f32 %v4904, %v5105
    %v5109 = vmul.f32 %v4905, %v5103
    %v5110 = vmul.f32 %v4906, %v5104
    %v5111 = vmul.f32 %v4907, %v5105
    %v5112 = vmul.f32 %v4908, %v5103
    %v5113 = vmul.f32 %v4909, %v5104
    %v5114 = vmul.f32 %v4910, %v5105
    %v5115 = vmul.f32 %v4911, %v5103
    %v5116 = vmul.f32 %v4912, %v5104
    %v5117 = vmul.f32 %v4913, %v5105
    %v5118 = vmul.f32 %v4914, %v5103
    %v5119 = vmul.f32 %v4915, %v5104
    %v5120 = vmul.f32 %v4916, %v5105
    %v5121 = vmul.f32 %v4917, %v5103
    %v5122 = vmul.f32 %v4918, %v5104
    %v5123 = vmul.f32 %v4919, %v5105
    %v5124 = vmul.f32 %v4920, %v5103
    %v5125 = vmul.f32 %v4921, %v5104
    %v5126 = vmul.f32 %v4922, %v5105
    %v5127 = vmul.f32 %v4923, %v5103
    %v5128 = vmul.f32 %v4924, %v5104
    %v5129 = vmul.f32 %v4925, %v5105
    %v5130 = vmul.f32 %v4926, %v5103
    %v5131 = vmul.f32 %v4927, %v5104
    %v5132 = vmul.f32 %v4928, %v5105
    %v5133 = vmul.f32 %v4929, %v5103
    %v5134 = vmul.f32 %v4930, %v5104
    %v5135 = vmul.f32 %v4931, %v5105
    %v5136 = vmul.f32 %v4932, %v5103
    %v5137 = vmul.f32 %v4933, %v5104
    %v5138 = vmul.f32 %v4934, %v5105
    %v5139 = vmul.f32 %v4935, %v5103
    %v5140 = vmul.f32 %v4936, %v5104
    %v5141 = vmul.f32 %v4937, %v5105
    %v5142 = vmul.f32 %v4938, %v5103
    %v5143 = vmul.f32 %v4939, %v5104
    %v5144 = vmul.f32 %v4940, %v5105
    %v5145 = vmul.f32 %v4941, %v5103
    %v5146 = vmul.f32 %v4942, %v5104
    %v5147 = vmul.f32 %v4943, %v5105
    %v5148 = vmul.f32 %v4944, %v5103
    %v5149 = vmul.f32 %v4945, %v5104
    %v5150 = vmul.f32 %v4946, %v5105
    %v5151 = vmul.f32 %v4947, %v5103
    %v5152 = vmul.f32 %v4948, %v5104
    %v5153 = vmul.f32 %v4949, %v5105
    %v5154 = vmul.f32 %v4950, %v5103
    %v5155 = vmul.f32 %v4951, %v5104
    %v5156 = vmul.f32 %v4952, %v5105
    %v5157 = vmul.f32 %v4953, %v5103
    %v5158 = vmul.f32 %v4954, %v5104
    %v5159 = vmul.f32 %v4955, %v5105
    %v5160 = vmul.f32 %v4956, %v5103
    %v5161 = vmul.f32 %v4957, %v5104
    %v5162 = vmul.f32 %v4958, %v5105
    %v5163 = vmul.f32 %v4959, %v5103
    %v5164 = vmul.f32 %v4960, %v5104
    %v5165 = vmul.f32 %v4961, %v5105
    %v5166 = vmul.f32 %v4962, %v5103
    %v5167 = vmul.f32 %v4963, %v5104
    %v5168 = vmul.f32 %v4964, %v5105
    %v5169 = vmul.f32 %v4965, %v5103
    %v5170 = vmul.f32 %v4966, %v5104
    %v5171 = vmul.f32 %v4967, %v5105
    %v5172 = vmul.f32 %v4968, %v5103
    %v5173 = vmul.f32 %v4969, %v5104
    %v5174 = vmul.f32 %v4970, %v5105
    %v5175 = vmul.f32 %v4971, %v5103
    %v5176 = vmul.f32 %v4972, %v5104
    %v5177 = vmul.f32 %v4973, %v5105
    %v5178 = vmul.f32 %v4974, %v5103
    %v5179 = vmul.f32 %v4975, %v5104
    %v5180 = vmul.f32 %v4976, %v5105
    %v5181 = vmul.f32 %v4977, %v5103
    %v5182 = vmul.f32 %v4978, %v5104
    %v5183 = vmul.f32 %v4979, %v5105
    %v5184 = vmul.f32 %v4980, %v5103
    %v5185 = vmul.f32 %v4981, %v5104
    %v5186 = vmul.f32 %v4982, %v5105
    %v5187 = vmul.f32 %v4983, %v5103
    %v5188 = vmul.f32 %v4984, %v5104
    %v5189 = vmul.f32 %v4985, %v5105
    %v5190 = vmul.f32 %v4986, %v5103
    %v5191 = vmul.f32 %v4987, %v5104
    %v5192 = vmul.f32 %v4988, %v5105
    %v5193 = vmul.f32 %v4989, %v5103
    %v5194 = vmul.f32 %v4990, %v5104
    %v5195 = vmul.f32 %v4991, %v5105
    %v5196 = vmul.f32 %v4992, %v5103
    %v5197 = vmul.f32 %v4993, %v5104
    %v5198 = vmul.f32 %v4994, %v5105
    %v5199 = vmul.f32 %v4995, %v5103
    %v5200 = vmul.f32 %v4996, %v5104
    %v5201 = vmul.f32 %v4997, %v5105
    %v5202 = vmul.f32 %v4998, %v5103
    %v5203 = vmul.f32 %v4999, %v5104
    %v5204 = vmul.f32 %v5000, %v5105
    %v5205 = vmul.f32 %v5001, %v5103
    %v5206 = vmul.f32 %v5002, %v5104
    %v5207 = vmul.f32 %v5003, %v5105
    %v5208 = vmul.f32 %v5004, %v5103
    %v5209 = vmul.f32 %v5005, %v5104
    %v5210 = vmul.f32 %v5006, %v5105
    %v5211 = vmul.f32 %v5007, %v5103
    %v5212 = vmul.f32 %v5008, %v5104
    %v5213 = vmul.f32 %v5009, %v5105
    %v5214 = vmul.f32 %v5010, %v5103
    %v5215 = vmul.f32 %v5011, %v5104
    %v5216 = vmul.f32 %v5012, %v5105
    %v5217 = vmul.f32 %v5013, %v5103
    %v5218 = vmul.f32 %v5014, %v5104
    %v5219 = vmul.f32 %v5015, %v5105
    %v5220 = vmul.f32 %v5016, %v5103
    %v5221 = vmul.f32 %v5017, %v5104
    %v5222 = vmul.f32 %v5018, %v5105
    %v5223 = vmul.f32 %v5019, %v5103
    %v5224 = vmul.f32 %v5020, %v5104
    %v5225 = vmul.f32 %v5021, %v5105
    %v5226 = vmul.f32 %v5022, %v5103
    %v5227 = vmul.f32 %v5023, %v5104
    %v5228 = vmul.f32 %v5024, %v5105
    %v5229 = vmul.f32 %v5025, %v5103
    %v5230 = vmul.f32 %v5026, %v5104
    %v5231 = vmul.f32 %v5027, %v5105
    %v5232 = vmul.f32 %v5028, %v5103
    %v5233 = vmul.f32 %v5029, %v5104
    %v5234 = vmul.f32 %v5030, %v5105
    %v5235 = vmul.f32 %v5031, %v5103
    %v5236 = vmul.f32 %v5032, %v5104
    %v5237 = vmul.f32 %v5033, %v5105
    %v5238 = vmul.f32 %v5034, %v5103
    %v5239 = vmul.f32 %v5035, %v5104
    %v5240 = vmul.f32 %v5036, %v5105
    %v5241 = vmul.f32 %v5037, %v5103
    %v5242 = vmul.f32 %v5038, %v5104
    %v5243 = vmul.f32 %v5039, %v5105
    %v5244 = vmul.f32 %v5040, %v5103
    %v5245 = vmul.f32 %v5041, %v5104
    %v5246 = vmul.f32 %v5042, %v5105
    %v5247 = vmul.f32 %v5043, %v5103
    %v5248 = vmul.f32 %v5044, %v5104
    %v5249 = vmul.f32 %v5045, %v5105
    %v5250 = vmul.f32 %v5046, %v5103
    %v5251 = vmul.f32 %v5047, %v5104
    %v5252 = vmul.f32 %v5048, %v5105
    %v5253 = vmul.f32 %v5049, %v5103
    %v5254 = vmul.f32 %v5050, %v5104
    %v5255 = vmul.f32 %v5051, %v5105
    %v5256 = vmul.f32 %v5052, %v5103
    %v5257 = vmul.f32 %v5053, %v5104
    %v5258 = vmul.f32 %v5054, %v5105
    %v5259 = vmul.f32 %v5055, %v5103
    %v5260 = vmul.f32 %v5056, %v5104
    %v5261 = vmul.f32 %v5057, %v5105
    %v5262 = vmul.f32 %v5058, %v5103
    %v5263 = vmul.f32 %v5059, %v5104
    %v5264 = vmul.f32 %v5060, %v5105
    %v5265 = vmul.f32 %v5061, %v5103
    %v5266 = vmul.f32 %v5062, %v5104
    %v5267 = vmul.f32 %v5063, %v5105
    %v5268 = vmul.f32 %v5064, %v5103
    %v5269 = vmul.f32 %v5065, %v5104
    %v5270 = vmul.f32 %v5066, %v5105
    %v5271 = vmul.f32 %v5067, %v5103
    %v5272 = vmul.f32 %v5068, %v5104
    %v5273 = vmul.f32 %v5069, %v5105
    %v5274 = vmul.f32 %v5070, %v5103
    %v5275 = vmul.f32 %v5071, %v5104
    %v5276 = vmul.f32 %v5072, %v5105
    %v5277 = vmul.f32 %v5073, %v5103
    %v5278 = vmul.f32 %v5074, %v5104
    %v5279 = vmul.f32 %v5075, %v5105
    %v5280 = vmul.f32 %v5076, %v5103
    %v5281 = vmul.f32 %v5077, %v5104
    %v5282 = vmul.f32 %v5078, %v5105
    %v5283 = vmul.f32 %v5079, %v5103
    %v5284 = vmul.f32 %v5080, %v5104
    %v5285 = vmul.f32 %v5081, %v5105
    %v5286 = vmul.f32 %v5082, %v5103
    %v5287 = vmul.f32 %v5083, %v5104
    %v5288 = vmul.f32 %v5084, %v5105
    %v5289 = vmul.f32 %v5085, %v5103
    %v5290 = vmul.f32 %v5086, %v5104
    %v5291 = vmul.f32 %v5087, %v5105
    %v5292 = vmul.f32 %v5088, %v5103
    %v5293 = vmul.f32 %v5089, %v5104
    %v5294 = vmul.f32 %v5090, %v5105
    %v5295 = vmul.f32 %v5091, %v5103
    %v5296 = vmul.f32 %v5092, %v5104
    %v5297 = vmul.f32 %v5093, %v5105
    %v5298 = vadd.f32 %v5106, %v5107
    %v5299 = vadd.f32 %v5298, %v5108
    %5300 = vadd.xlane.f32.xlu0 %v5299
    %v5301 = vpop.xlane.xlu0 %5300
    %v5302 = vadd.f32 %v5109, %v5110
    %v5303 = vadd.f32 %v5302, %v5111
    %5304 = vadd.xlane.f32.xlu0 %v5303
    %v5305 = vpop.xlane.xlu0 %5304
    %v5306 = vadd.f32 %v5112, %v5113
    %v5307 = vadd.f32 %v5306, %v5114
    %5308 = vadd.xlane.f32.xlu0 %v5307
    %v5309 = vpop.xlane.xlu0 %5308
    %v5310 = vadd.f32 %v5115, %v5116
    %v5311 = vadd.f32 %v5310, %v5117
    %5312 = vadd.xlane.f32.xlu0 %v5311
    %v5313 = vpop.xlane.xlu0 %5312
    %v5314 = vadd.f32 %v5118, %v5119
    %v5315 = vadd.f32 %v5314, %v5120
    %5316 = vadd.xlane.f32.xlu0 %v5315
    %v5317 = vpop.xlane.xlu0 %5316
    %v5318 = vadd.f32 %v5121, %v5122
    %v5319 = vadd.f32 %v5318, %v5123
    %5320 = vadd.xlane.f32.xlu0 %v5319
    %v5321 = vpop.xlane.xlu0 %5320
    %v5322 = vadd.f32 %v5124, %v5125
    %v5323 = vadd.f32 %v5322, %v5126
    %5324 = vadd.xlane.f32.xlu0 %v5323
    %v5325 = vpop.xlane.xlu0 %5324
    %v5326 = vadd.f32 %v5127, %v5128
    %v5327 = vadd.f32 %v5326, %v5129
    %5328 = vadd.xlane.f32.xlu0 %v5327
    %v5329 = vpop.xlane.xlu0 %5328
    %v5330 = vadd.f32 %v5130, %v5131
    %v5331 = vadd.f32 %v5330, %v5132
    %5332 = vadd.xlane.f32.xlu0 %v5331
    %v5333 = vpop.xlane.xlu0 %5332
    %v5334 = vadd.f32 %v5133, %v5134
    %v5335 = vadd.f32 %v5334, %v5135
    %5336 = vadd.xlane.f32.xlu0 %v5335
    %v5337 = vpop.xlane.xlu0 %5336
    %v5338 = vadd.f32 %v5136, %v5137
    %v5339 = vadd.f32 %v5338, %v5138
    %5340 = vadd.xlane.f32.xlu0 %v5339
    %v5341 = vpop.xlane.xlu0 %5340
    %v5342 = vadd.f32 %v5139, %v5140
    %v5343 = vadd.f32 %v5342, %v5141
    %5344 = vadd.xlane.f32.xlu0 %v5343
    %v5345 = vpop.xlane.xlu0 %5344
    %v5346 = vadd.f32 %v5142, %v5143
    %v5347 = vadd.f32 %v5346, %v5144
    %5348 = vadd.xlane.f32.xlu0 %v5347
    %v5349 = vpop.xlane.xlu0 %5348
    %v5350 = vadd.f32 %v5145, %v5146
    %v5351 = vadd.f32 %v5350, %v5147
    %5352 = vadd.xlane.f32.xlu0 %v5351
    %v5353 = vpop.xlane.xlu0 %5352
    %v5354 = vadd.f32 %v5148, %v5149
    %v5355 = vadd.f32 %v5354, %v5150
    %5356 = vadd.xlane.f32.xlu0 %v5355
    %v5357 = vpop.xlane.xlu0 %5356
    %v5358 = vadd.f32 %v5151, %v5152
    %v5359 = vadd.f32 %v5358, %v5153
    %5360 = vadd.xlane.f32.xlu0 %v5359
    %v5361 = vpop.xlane.xlu0 %5360
    %v5362 = vadd.f32 %v5154, %v5155
    %v5363 = vadd.f32 %v5362, %v5156
    %5364 = vadd.xlane.f32.xlu0 %v5363
    %v5365 = vpop.xlane.xlu0 %5364
    %v5366 = vadd.f32 %v5157, %v5158
    %v5367 = vadd.f32 %v5366, %v5159
    %5368 = vadd.xlane.f32.xlu0 %v5367
    %v5369 = vpop.xlane.xlu0 %5368
    %v5370 = vadd.f32 %v5160, %v5161
    %v5371 = vadd.f32 %v5370, %v5162
    %5372 = vadd.xlane.f32.xlu0 %v5371
    %v5373 = vpop.xlane.xlu0 %5372
    %v5374 = vadd.f32 %v5163, %v5164
    %v5375 = vadd.f32 %v5374, %v5165
    %5376 = vadd.xlane.f32.xlu0 %v5375
    %v5377 = vpop.xlane.xlu0 %5376
    %v5378 = vadd.f32 %v5166, %v5167
    %v5379 = vadd.f32 %v5378, %v5168
    %5380 = vadd.xlane.f32.xlu0 %v5379
    %v5381 = vpop.xlane.xlu0 %5380
    %v5382 = vadd.f32 %v5169, %v5170
    %v5383 = vadd.f32 %v5382, %v5171
    %5384 = vadd.xlane.f32.xlu0 %v5383
    %v5385 = vpop.xlane.xlu0 %5384
    %v5386 = vadd.f32 %v5172, %v5173
    %v5387 = vadd.f32 %v5386, %v5174
    %5388 = vadd.xlane.f32.xlu0 %v5387
    %v5389 = vpop.xlane.xlu0 %5388
    %v5390 = vadd.f32 %v5175, %v5176
    %v5391 = vadd.f32 %v5390, %v5177
    %5392 = vadd.xlane.f32.xlu0 %v5391
    %v5393 = vpop.xlane.xlu0 %5392
    %v5394 = vadd.f32 %v5178, %v5179
    %v5395 = vadd.f32 %v5394, %v5180
    %5396 = vadd.xlane.f32.xlu0 %v5395
    %v5397 = vpop.xlane.xlu0 %5396
    %v5398 = vadd.f32 %v5181, %v5182
    %v5399 = vadd.f32 %v5398, %v5183
    %5400 = vadd.xlane.f32.xlu0 %v5399
    %v5401 = vpop.xlane.xlu0 %5400
    %v5402 = vadd.f32 %v5184, %v5185
    %v5403 = vadd.f32 %v5402, %v5186
    %5404 = vadd.xlane.f32.xlu0 %v5403
    %v5405 = vpop.xlane.xlu0 %5404
    %v5406 = vadd.f32 %v5187, %v5188
    %v5407 = vadd.f32 %v5406, %v5189
    %5408 = vadd.xlane.f32.xlu0 %v5407
    %v5409 = vpop.xlane.xlu0 %5408
    %v5410 = vadd.f32 %v5190, %v5191
    %v5411 = vadd.f32 %v5410, %v5192
    %5412 = vadd.xlane.f32.xlu0 %v5411
    %v5413 = vpop.xlane.xlu0 %5412
    %v5414 = vadd.f32 %v5193, %v5194
    %v5415 = vadd.f32 %v5414, %v5195
    %5416 = vadd.xlane.f32.xlu0 %v5415
    %v5417 = vpop.xlane.xlu0 %5416
    %v5418 = vadd.f32 %v5196, %v5197
    %v5419 = vadd.f32 %v5418, %v5198
    %5420 = vadd.xlane.f32.xlu0 %v5419
    %v5421 = vpop.xlane.xlu0 %5420
    %v5422 = vadd.f32 %v5199, %v5200
    %v5423 = vadd.f32 %v5422, %v5201
    %5424 = vadd.xlane.f32.xlu0 %v5423
    %v5425 = vpop.xlane.xlu0 %5424
    %v5426 = vadd.f32 %v5202, %v5203
    %v5427 = vadd.f32 %v5426, %v5204
    %5428 = vadd.xlane.f32.xlu0 %v5427
    %v5429 = vpop.xlane.xlu0 %5428
    %v5430 = vadd.f32 %v5205, %v5206
    %v5431 = vadd.f32 %v5430, %v5207
    %5432 = vadd.xlane.f32.xlu0 %v5431
    %v5433 = vpop.xlane.xlu0 %5432
    %v5434 = vadd.f32 %v5208, %v5209
    %v5435 = vadd.f32 %v5434, %v5210
    %5436 = vadd.xlane.f32.xlu0 %v5435
    %v5437 = vpop.xlane.xlu0 %5436
    %v5438 = vadd.f32 %v5211, %v5212
    %v5439 = vadd.f32 %v5438, %v5213
    %5440 = vadd.xlane.f32.xlu0 %v5439
    %v5441 = vpop.xlane.xlu0 %5440
    %v5442 = vadd.f32 %v5214, %v5215
    %v5443 = vadd.f32 %v5442, %v5216
    %5444 = vadd.xlane.f32.xlu0 %v5443
    %v5445 = vpop.xlane.xlu0 %5444
    %v5446 = vadd.f32 %v5217, %v5218
    %v5447 = vadd.f32 %v5446, %v5219
    %5448 = vadd.xlane.f32.xlu0 %v5447
    %v5449 = vpop.xlane.xlu0 %5448
    %v5450 = vadd.f32 %v5220, %v5221
    %v5451 = vadd.f32 %v5450, %v5222
    %5452 = vadd.xlane.f32.xlu0 %v5451
    %v5453 = vpop.xlane.xlu0 %5452
    %v5454 = vadd.f32 %v5223, %v5224
    %v5455 = vadd.f32 %v5454, %v5225
    %5456 = vadd.xlane.f32.xlu0 %v5455
    %v5457 = vpop.xlane.xlu0 %5456
    %v5458 = vadd.f32 %v5226, %v5227
    %v5459 = vadd.f32 %v5458, %v5228
    %5460 = vadd.xlane.f32.xlu0 %v5459
    %v5461 = vpop.xlane.xlu0 %5460
    %v5462 = vadd.f32 %v5229, %v5230
    %v5463 = vadd.f32 %v5462, %v5231
    %5464 = vadd.xlane.f32.xlu0 %v5463
    %v5465 = vpop.xlane.xlu0 %5464
    %v5466 = vadd.f32 %v5232, %v5233
    %v5467 = vadd.f32 %v5466, %v5234
    %5468 = vadd.xlane.f32.xlu0 %v5467
    %v5469 = vpop.xlane.xlu0 %5468
    %v5470 = vadd.f32 %v5235, %v5236
    %v5471 = vadd.f32 %v5470, %v5237
    %5472 = vadd.xlane.f32.xlu0 %v5471
    %v5473 = vpop.xlane.xlu0 %5472
    %v5474 = vadd.f32 %v5238, %v5239
    %v5475 = vadd.f32 %v5474, %v5240
    %5476 = vadd.xlane.f32.xlu0 %v5475
    %v5477 = vpop.xlane.xlu0 %5476
    %v5478 = vadd.f32 %v5241, %v5242
    %v5479 = vadd.f32 %v5478, %v5243
    %5480 = vadd.xlane.f32.xlu0 %v5479
    %v5481 = vpop.xlane.xlu0 %5480
    %v5482 = vadd.f32 %v5244, %v5245
    %v5483 = vadd.f32 %v5482, %v5246
    %5484 = vadd.xlane.f32.xlu0 %v5483
    %v5485 = vpop.xlane.xlu0 %5484
    %v5486 = vadd.f32 %v5247, %v5248
    %v5487 = vadd.f32 %v5486, %v5249
    %5488 = vadd.xlane.f32.xlu0 %v5487
    %v5489 = vpop.xlane.xlu0 %5488
    %v5490 = vadd.f32 %v5250, %v5251
    %v5491 = vadd.f32 %v5490, %v5252
    %5492 = vadd.xlane.f32.xlu0 %v5491
    %v5493 = vpop.xlane.xlu0 %5492
    %v5494 = vadd.f32 %v5253, %v5254
    %v5495 = vadd.f32 %v5494, %v5255
    %5496 = vadd.xlane.f32.xlu0 %v5495
    %v5497 = vpop.xlane.xlu0 %5496
    %v5498 = vadd.f32 %v5256, %v5257
    %v5499 = vadd.f32 %v5498, %v5258
    %5500 = vadd.xlane.f32.xlu0 %v5499
    %v5501 = vpop.xlane.xlu0 %5500
    %v5502 = vadd.f32 %v5259, %v5260
    %v5503 = vadd.f32 %v5502, %v5261
    %5504 = vadd.xlane.f32.xlu0 %v5503
    %v5505 = vpop.xlane.xlu0 %5504
    %v5506 = vadd.f32 %v5262, %v5263
    %v5507 = vadd.f32 %v5506, %v5264
    %5508 = vadd.xlane.f32.xlu0 %v5507
    %v5509 = vpop.xlane.xlu0 %5508
    %v5510 = vadd.f32 %v5265, %v5266
    %v5511 = vadd.f32 %v5510, %v5267
    %5512 = vadd.xlane.f32.xlu0 %v5511
    %v5513 = vpop.xlane.xlu0 %5512
    %v5514 = vadd.f32 %v5268, %v5269
    %v5515 = vadd.f32 %v5514, %v5270
    %5516 = vadd.xlane.f32.xlu0 %v5515
    %v5517 = vpop.xlane.xlu0 %5516
    %v5518 = vadd.f32 %v5271, %v5272
    %v5519 = vadd.f32 %v5518, %v5273
    %5520 = vadd.xlane.f32.xlu0 %v5519
    %v5521 = vpop.xlane.xlu0 %5520
    %v5522 = vadd.f32 %v5274, %v5275
    %v5523 = vadd.f32 %v5522, %v5276
    %5524 = vadd.xlane.f32.xlu0 %v5523
    %v5525 = vpop.xlane.xlu0 %5524
    %v5526 = vadd.f32 %v5277, %v5278
    %v5527 = vadd.f32 %v5526, %v5279
    %5528 = vadd.xlane.f32.xlu0 %v5527
    %v5529 = vpop.xlane.xlu0 %5528
    %v5530 = vadd.f32 %v5280, %v5281
    %v5531 = vadd.f32 %v5530, %v5282
    %5532 = vadd.xlane.f32.xlu0 %v5531
    %v5533 = vpop.xlane.xlu0 %5532
    %v5534 = vadd.f32 %v5283, %v5284
    %v5535 = vadd.f32 %v5534, %v5285
    %5536 = vadd.xlane.f32.xlu0 %v5535
    %v5537 = vpop.xlane.xlu0 %5536
    %v5538 = vadd.f32 %v5286, %v5287
    %v5539 = vadd.f32 %v5538, %v5288
    %5540 = vadd.xlane.f32.xlu0 %v5539
    %v5541 = vpop.xlane.xlu0 %5540
    %v5542 = vadd.f32 %v5289, %v5290
    %v5543 = vadd.f32 %v5542, %v5291
    %5544 = vadd.xlane.f32.xlu0 %v5543
    %v5545 = vpop.xlane.xlu0 %5544
    %v5546 = vadd.f32 %v5292, %v5293
    %v5547 = vadd.f32 %v5546, %v5294
    %5548 = vadd.xlane.f32.xlu0 %v5547
    %v5549 = vpop.xlane.xlu0 %5548
    %v5550 = vadd.f32 %v5295, %v5296
    %v5551 = vadd.f32 %v5550, %v5297
    %5552 = vadd.xlane.f32.xlu0 %v5551
    %v5553 = vpop.xlane.xlu0 %5552
    %v5554 = vld [vmem:[#allocation2] sm:$0x1]
    %v5556 = vperm.slane %v5554, 0
    %v5558 = vadd.f32 %v5301, %v5556
    %v5559 = vadd.f32 %v5305, %v5556
    %v5560 = vadd.f32 %v5309, %v5556
    %v5561 = vadd.f32 %v5313, %v5556
    %v5562 = vadd.f32 %v5317, %v5556
    %v5563 = vadd.f32 %v5321, %v5556
    %v5564 = vadd.f32 %v5325, %v5556
    %v5565 = vadd.f32 %v5329, %v5556
    %v5566 = vadd.f32 %v5333, %v5556
    %v5567 = vadd.f32 %v5337, %v5556
    %v5568 = vadd.f32 %v5341, %v5556
    %v5569 = vadd.f32 %v5345, %v5556
    %v5570 = vadd.f32 %v5349, %v5556
    %v5571 = vadd.f32 %v5353, %v5556
    %v5572 = vadd.f32 %v5357, %v5556
    %v5573 = vadd.f32 %v5361, %v5556
    %v5574 = vadd.f32 %v5365, %v5556
    %v5575 = vadd.f32 %v5369, %v5556
    %v5576 = vadd.f32 %v5373, %v5556
    %v5577 = vadd.f32 %v5377, %v5556
    %v5578 = vadd.f32 %v5381, %v5556
    %v5579 = vadd.f32 %v5385, %v5556
    %v5580 = vadd.f32 %v5389, %v5556
    %v5581 = vadd.f32 %v5393, %v5556
    %v5582 = vadd.f32 %v5397, %v5556
    %v5583 = vadd.f32 %v5401, %v5556
    %v5584 = vadd.f32 %v5405, %v5556
    %v5585 = vadd.f32 %v5409, %v5556
    %v5586 = vadd.f32 %v5413, %v5556
    %v5587 = vadd.f32 %v5417, %v5556
    %v5588 = vadd.f32 %v5421, %v5556
    %v5589 = vadd.f32 %v5425, %v5556
    %v5590 = vadd.f32 %v5429, %v5556
    %v5591 = vadd.f32 %v5433, %v5556
    %v5592 = vadd.f32 %v5437, %v5556
    %v5593 = vadd.f32 %v5441, %v5556
    %v5594 = vadd.f32 %v5445, %v5556
    %v5595 = vadd.f32 %v5449, %v5556
    %v5596 = vadd.f32 %v5453, %v5556
    %v5597 = vadd.f32 %v5457, %v5556
    %v5598 = vadd.f32 %v5461, %v5556
    %v5599 = vadd.f32 %v5465, %v5556
    %v5600 = vadd.f32 %v5469, %v5556
    %v5601 = vadd.f32 %v5473, %v5556
    %v5602 = vadd.f32 %v5477, %v5556
    %v5603 = vadd.f32 %v5481, %v5556
    %v5604 = vadd.f32 %v5485, %v5556
    %v5605 = vadd.f32 %v5489, %v5556
    %v5606 = vadd.f32 %v5493, %v5556
    %v5607 = vadd.f32 %v5497, %v5556
    %v5608 = vadd.f32 %v5501, %v5556
    %v5609 = vadd.f32 %v5505, %v5556
    %v5610 = vadd.f32 %v5509, %v5556
    %v5611 = vadd.f32 %v5513, %v5556
    %v5612 = vadd.f32 %v5517, %v5556
    %v5613 = vadd.f32 %v5521, %v5556
    %v5614 = vadd.f32 %v5525, %v5556
    %v5615 = vadd.f32 %v5529, %v5556
    %v5616 = vadd.f32 %v5533, %v5556
    %v5617 = vadd.f32 %v5537, %v5556
    %v5618 = vadd.f32 %v5541, %v5556
    %v5619 = vadd.f32 %v5545, %v5556
    %v5620 = vadd.f32 %v5549, %v5556
    %v5621 = vadd.f32 %v5553, %v5556
    %vm5622 = vcmask 7168
    %5623 = vst.msk [vmem:[%s8] sm:$0xff] %vm5622, %v5558
    %5624 = vst.msk [vmem:[%s8 + $0x8] sm:$0xff] %vm5622, %v5559
    %5625 = vst.msk [vmem:[%s8 + $0x10] sm:$0xff] %vm5622, %v5560
    %5626 = vst.msk [vmem:[%s8 + $0x18] sm:$0xff] %vm5622, %v5561
    %5627 = vst.msk [vmem:[%s8 + $0x20] sm:$0xff] %vm5622, %v5562
    %5628 = vst.msk [vmem:[%s8 + $0x28] sm:$0xff] %vm5622, %v5563
    %5629 = vst.msk [vmem:[%s8 + $0x30] sm:$0xff] %vm5622, %v5564
    %5630 = vst.msk [vmem:[%s8 + $0x38] sm:$0xff] %vm5622, %v5565
    %5631 = vst.msk [vmem:[%s8 + $0x40] sm:$0xff] %vm5622, %v5566
    %5632 = vst.msk [vmem:[%s8 + $0x48] sm:$0xff] %vm5622, %v5567
    %5633 = vst.msk [vmem:[%s8 + $0x50] sm:$0xff] %vm5622, %v5568
    %5634 = vst.msk [vmem:[%s8 + $0x58] sm:$0xff] %vm5622, %v5569
    %5635 = vst.msk [vmem:[%s8 + $0x60] sm:$0xff] %vm5622, %v5570
    %5636 = vst.msk [vmem:[%s8 + $0x68] sm:$0xff] %vm5622, %v5571
    %5637 = vst.msk [vmem:[%s8 + $0x70] sm:$0xff] %vm5622, %v5572
    %5638 = vst.msk [vmem:[%s8 + $0x78] sm:$0xff] %vm5622, %v5573
    %5639 = vst.msk [vmem:[%s8 + $0x80] sm:$0xff] %vm5622, %v5574
    %5640 = vst.msk [vmem:[%s8 + $0x88] sm:$0xff] %vm5622, %v5575
    %5641 = vst.msk [vmem:[%s8 + $0x90] sm:$0xff] %vm5622, %v5576
    %5642 = vst.msk [vmem:[%s8 + $0x98] sm:$0xff] %vm5622, %v5577
    %5643 = vst.msk [vmem:[%s8 + $0xa0] sm:$0xff] %vm5622, %v5578
    %5644 = vst.msk [vmem:[%s8 + $0xa8] sm:$0xff] %vm5622, %v5579
    %5645 = vst.msk [vmem:[%s8 + $0xb0] sm:$0xff] %vm5622, %v5580
    %5646 = vst.msk [vmem:[%s8 + $0xb8] sm:$0xff] %vm5622, %v5581
    %5647 = vst.msk [vmem:[%s8 + $0xc0] sm:$0xff] %vm5622, %v5582
    %5648 = vst.msk [vmem:[%s8 + $0xc8] sm:$0xff] %vm5622, %v5583
    %5649 = vst.msk [vmem:[%s8 + $0xd0] sm:$0xff] %vm5622, %v5584
    %5650 = vst.msk [vmem:[%s8 + $0xd8] sm:$0xff] %vm5622, %v5585
    %5651 = vst.msk [vmem:[%s8 + $0xe0] sm:$0xff] %vm5622, %v5586
    %5652 = vst.msk [vmem:[%s8 + $0xe8] sm:$0xff] %vm5622, %v5587
    %5653 = vst.msk [vmem:[%s8 + $0xf0] sm:$0xff] %vm5622, %v5588
    %5654 = vst.msk [vmem:[%s8 + $0xf8] sm:$0xff] %vm5622, %v5589
    %5655 = vst.msk [vmem:[%s8 + $0x100] sm:$0xff] %vm5622, %v5590
    %5656 = vst.msk [vmem:[%s8 + $0x108] sm:$0xff] %vm5622, %v5591
    %5657 = vst.msk [vmem:[%s8 + $0x110] sm:$0xff] %vm5622, %v5592
    %5658 = vst.msk [vmem:[%s8 + $0x118] sm:$0xff] %vm5622, %v5593
    %5659 = vst.msk [vmem:[%s8 + $0x120] sm:$0xff] %vm5622, %v5594
    %5660 = vst.msk [vmem:[%s8 + $0x128] sm:$0xff] %vm5622, %v5595
    %5661 = vst.msk [vmem:[%s8 + $0x130] sm:$0xff] %vm5622, %v5596
    %5662 = vst.msk [vmem:[%s8 + $0x138] sm:$0xff] %vm5622, %v5597
    %5663 = vst.msk [vmem:[%s8 + $0x140] sm:$0xff] %vm5622, %v5598
    %5664 = vst.msk [vmem:[%s8 + $0x148] sm:$0xff] %vm5622, %v5599
    %5665 = vst.msk [vmem:[%s8 + $0x150] sm:$0xff] %vm5622, %v5600
    %5666 = vst.msk [vmem:[%s8 + $0x158] sm:$0xff] %vm5622, %v5601
    %5667 = vst.msk [vmem:[%s8 + $0x160] sm:$0xff] %vm5622, %v5602
    %5668 = vst.msk [vmem:[%s8 + $0x168] sm:$0xff] %vm5622, %v5603
    %5669 = vst.msk [vmem:[%s8 + $0x170] sm:$0xff] %vm5622, %v5604
    %5670 = vst.msk [vmem:[%s8 + $0x178] sm:$0xff] %vm5622, %v5605
    %5671 = vst.msk [vmem:[%s8 + $0x180] sm:$0xff] %vm5622, %v5606
    %5672 = vst.msk [vmem:[%s8 + $0x188] sm:$0xff] %vm5622, %v5607
    %5673 = vst.msk [vmem:[%s8 + $0x190] sm:$0xff] %vm5622, %v5608
    %5674 = vst.msk [vmem:[%s8 + $0x198] sm:$0xff] %vm5622, %v5609
    %5675 = vst.msk [vmem:[%s8 + $0x1a0] sm:$0xff] %vm5622, %v5610
    %5676 = vst.msk [vmem:[%s8 + $0x1a8] sm:$0xff] %vm5622, %v5611
    %5677 = vst.msk [vmem:[%s8 + $0x1b0] sm:$0xff] %vm5622, %v5612
    %5678 = vst.msk [vmem:[%s8 + $0x1b8] sm:$0xff] %vm5622, %v5613
    %5679 = vst.msk [vmem:[%s8 + $0x1c0] sm:$0xff] %vm5622, %v5614
    %5680 = vst.msk [vmem:[%s8 + $0x1c8] sm:$0xff] %vm5622, %v5615
    %5681 = vst.msk [vmem:[%s8 + $0x1d0] sm:$0xff] %vm5622, %v5616
    %5682 = vst.msk [vmem:[%s8 + $0x1d8] sm:$0xff] %vm5622, %v5617
    %5683 = vst.msk [vmem:[%s8 + $0x1e0] sm:$0xff] %vm5622, %v5618
    %5684 = vst.msk [vmem:[%s8 + $0x1e8] sm:$0xff] %vm5622, %v5619
    %5685 = vst.msk [vmem:[%s8 + $0x1f0] sm:$0xff] %vm5622, %v5620
    %5686 = vst.msk [vmem:[%s8 + $0x1f8] sm:$0xff] %vm5622, %v5621
    // Predicated region
    $region38: #{tpu_custom_call.1} parent=1 // pred_check
      _
    $region39: #{tpu_custom_call.1} parent=1 // pred_check_branch
      %5688 = sbr.rel (0) target = $region41
    $region40: #{tpu_custom_call.1} parent=1 // pred_region
      _
    $region41: #{tpu_custom_call.1} parent=1 // pred_fallthru
      _
    // Predicated region
    $region42: #{tpu_custom_call.1} parent=1 // pred_check
      _
    $region43: #{tpu_custom_call.1} parent=1 // pred_check_branch
      %5690 = sbr.rel (0) target = $region45
    $region44: #{tpu_custom_call.1} parent=1 // pred_region
      _
    $region45: #{tpu_custom_call.1} parent=1 // pred_fallthru
      _
    %5691 = vsyncpa [#allocation4], 1

</llo_original>
